<compile_context>
chip_gen: v7x
topology: tpu7x:2x2x1
jax: 0.10.0
libtpu: 0.0.40
codegen_flags: <defaults>
</compile_context>

<pallas_src>
import functools

import numpy as np
import jax
import jax.numpy as jnp
from jax import lax
from jax.experimental import pallas as pl
from jax.experimental.pallas import tpu as pltpu

DTYPE = jnp.float32
EPS = 1e-5


def _layer_norm(x, g, b):
    mu = jnp.mean(x, axis=-1, keepdims=True)
    var = jnp.mean((x - mu) ** 2, axis=-1, keepdims=True)
    return (x - mu) * lax.rsqrt(var + EPS) * g + b


# --------------------------- fused Pallas kernel -----------------------------

def tex_encoder_kernel(eot_ref,                                   # SMEM: (B,) int32
                       x_hbm, causal_ref,
                       ln1_g, ln1_b, wqkv_r, bqkv_r, wo_r, bo_r,
                       ln2_g, ln2_b, wfc_r, bfc_r, wpj_r, bpj_r,
                       lnf_g, lnf_b, proj_r,
                       out_ref,
                       x_scr, sel_scr,
                       *, num_heads, batch, seq):
    """Whole text-encoder forward; grid axis = transformer layer (sequential)."""
    layer = pl.program_id(0)
    n_layers = pl.num_programs(0)
    BL, D = x_scr.shape
    hd = D // num_heads
    scale = hd ** -0.5

    # ---- layer 0: one-shot DMA of the (pos-added, flattened) embeddings into the
    # resident VMEM scratch; x itself stays in HBM (no dead double-buffered copy).
    @pl.when(layer == 0)
    def _():
        pltpu.sync_copy(x_hbm, x_scr)

    x2 = x_scr[...]                                   # (B*L, D) f32 residual stream

    # ---- pre-LN multi-head causal self-attention ----
    # LN/softmax math in f32; matmul operands bf16 with f32 MXU accumulation.
    h = _layer_norm(x2, ln1_g[0], ln1_b[0]).astype(jnp.bfloat16)
    qkv = jnp.dot(h, wqkv_r[0], preferred_element_type=jnp.float32) + bqkv_r[0]
    q_all = (qkv[:, :D] * scale).astype(jnp.bfloat16)          # fold 1/sqrt(hd) once
    k_all = qkv[:, D:2 * D].astype(jnp.bfloat16)
    v_all = qkv[:, 2 * D:].astype(jnp.bfloat16)
    causal = causal_ref[...][None, :, :]                       # (1, L, L), hoisted

    # Per-head loop with 3-D (single-batch-dim) einsums — the known-good Mosaic
    # dot_general path.  Instead of scattering head outputs into lane slices of a
    # scratch (masked partial stores) or concatenating along lanes, each head's
    # context is contracted against the matching sublane slice of W_o and
    # accumulated: sum_h o_h @ W_o[h*hd:(h+1)*hd, :] == concat(heads) @ W_o.
    # TODO(synk): collapse to one batched einsum ('blhd,bmhd->bhlm') when Mosaic
    # dot_general supports two batch dimensions.
    wo = wo_r[0]                                               # (D, D) bf16
    attn_out = None
    for hi in range(num_heads):
        sl = slice(hi * hd, (hi + 1) * hd)
        q_h = q_all[:, sl].reshape(batch, seq, hd)
        k_h = k_all[:, sl].reshape(batch, seq, hd)
        v_h = v_all[:, sl].reshape(batch, seq, hd)
        s = jnp.einsum("bld,bmd->blm", q_h, k_h,
                       preferred_element_type=jnp.float32) + causal
        s = s - jnp.max(s, axis=-1, keepdims=True)
        p = jnp.exp(s)
        p = p * pl.reciprocal(jnp.sum(p, axis=-1, keepdims=True), approx=True)
        o_h = jnp.einsum("blm,bmd->bld", p.astype(jnp.bfloat16), v_h,
                         preferred_element_type=jnp.float32)
        o_h = o_h.astype(jnp.bfloat16).reshape(BL, hd)
        contrib = jnp.dot(o_h, wo[sl, :], preferred_element_type=jnp.float32)
        attn_out = contrib if attn_out is None else attn_out + contrib
    x2 = x2 + attn_out + bo_r[0]

    # ---- pre-LN MLP: Linear -> QuickGELU -> Linear ----
    h2 = _layer_norm(x2, ln2_g[0], ln2_b[0]).astype(jnp.bfloat16)
    f = jnp.dot(h2, wfc_r[0], preferred_element_type=jnp.float32) + bfc_r[0]
    f = f * jax.nn.sigmoid(1.702 * f)                          # QuickGELU (f32)
    x2 = x2 + jnp.dot(f.astype(jnp.bfloat16), wpj_r[0],
                      preferred_element_type=jnp.float32) + bpj_r[0]

    x_scr[...] = x2                                  # carry; 2-D layout => no relayout

    # ---- last layer: EOT gather (SMEM scalars) -> ln_final -> text projection ----
    @pl.when(layer == n_layers - 1)
    def _():
        for b in range(batch):                       # B scalar-indexed row copies
            row = b * seq + eot_ref[b]
            sel_scr[pl.ds(b, 1), :] = x_scr[pl.ds(row, 1), :]
        hf = _layer_norm(sel_scr[...], lnf_g[...], lnf_b[...])
        out_ref[...] = jnp.dot(hf, proj_r[...],
                               preferred_element_type=jnp.float32).astype(out_ref.dtype)


# --------------------------- pallas_call wrapper ------------------------------

def tex_encoder_forward(x, tokenized_prompts, params, num_heads):
    B, L, D = x.shape
    E = params["proj"].shape[1]
    F = 4 * D
    n_layers = len(params["layers"])
    assert D % num_heads == 0

    # Stack per-layer weights along a leading layer axis -> the BlockSpec pipeline
    # streams (double-buffers) them across the layer grid axis.  Matmul weights are
    # bf16 (halves the dominant weight DMA; native MXU rate); LN params/biases f32.
    stk = lambda name, dt=jnp.float32: jnp.stack(
        [p[name] for p in params["layers"]], axis=0).astype(dt)
    ln1_g, ln1_b = stk("ln1_g"), stk("ln1_b")
    w_qkv, b_qkv = stk("w_qkv", jnp.bfloat16), stk("b_qkv")
    w_o, b_o = stk("w_o", jnp.bfloat16), stk("b_o")
    ln2_g, ln2_b = stk("ln2_g"), stk("ln2_b")
    w_fc, b_fc = stk("w_fc", jnp.bfloat16), stk("b_fc")
    w_pj, b_pj = stk("w_pj", jnp.bfloat16), stk("b_pj")

    # Glue hoisted out of the kernel: positional add + flatten to the canonical
    # 2-D residual layout, causal mask, EOT indices for the SMEM scalar gather.
    x2d = (x + params["pos"][None, :, :]).astype(jnp.float32).reshape(B * L, D)
    causal = jnp.where(jnp.arange(L)[None, :] > jnp.arange(L)[:, None],
                       jnp.float32(-1e30), jnp.float32(0.0))
    eot = jnp.argmax(tokenized_prompts, axis=-1).astype(jnp.int32)       # (B,)

    def cspec(shape):
        nd = len(shape)
        return pl.BlockSpec(shape, lambda l, _eot, nd=nd: (0,) * nd)

    def lspec(shape):
        nd = len(shape)
        return pl.BlockSpec((1,) + shape, lambda l, _eot, nd=nd: (l,) + (0,) * nd)

    kern = functools.partial(tex_encoder_kernel,
                             num_heads=num_heads, batch=B, seq=L)

    # VMEM budget: 2x (double-buffer) every pipelined block + the output block,
    # plus the resident scratches, plus headroom for live values / tile padding.
    nbytes = lambda shape, dt: int(np.prod(shape)) * jnp.dtype(dt).itemsize
    blocks = [((L, L), jnp.float32), ((D, E), jnp.float32), ((B, E), jnp.float32),
              ((1, D), jnp.float32), ((1, D), jnp.float32),
              ((1, 1, D), jnp.float32), ((1, 1, D), jnp.float32),
              ((1, D, 3 * D), jnp.bfloat16), ((1, 1, 3 * D), jnp.float32),
              ((1, D, D), jnp.bfloat16), ((1, 1, D), jnp.float32),
              ((1, 1, D), jnp.float32), ((1, 1, D), jnp.float32),
              ((1, D, F), jnp.bfloat16), ((1, 1, F), jnp.float32),
              ((1, F, D), jnp.bfloat16), ((1, 1, D), jnp.float32)]
    buffered = 2 * sum(nbytes(s, d) for s, d in blocks)
    scratch = nbytes((B * L, D), jnp.float32) + nbytes((B, D), jnp.float32)
    need = int(1.5 * (buffered + scratch)) + (8 << 20)
    try:
        cap = int(pltpu.get_tpu_info().vmem_capacity_bytes)  # 128 MiB v5e/v6e, 64 MiB v7x
    except Exception:
        cap = 64 << 20
    vmem_limit = max(min(need, int(0.9 * cap)), 32 << 20)
    # Further perf knobs (not applied here, see review): pipeline_mode=pl.Buffered(3)
    # on w_fc/w_pj for v5e/v6e's 128 MiB VMEM; a leading parallel batch grid axis
    # to use v7x's second TensorCore once the kernel is not weight-DMA-bound.

    return pl.pallas_call(
        kern,
        out_shape=jax.ShapeDtypeStruct((B, E), jnp.float32),
        grid_spec=pltpu.PrefetchScalarGridSpec(
            num_scalar_prefetch=1,                     # eot indices -> SMEM
            grid=(n_layers,),
            in_specs=[
                pl.BlockSpec(memory_space=pl.ANY),     # x2d: HBM, one-shot DMA at layer 0
                cspec((L, L)),                         # causal mask
                lspec((1, D)), lspec((1, D)),          # ln_1
                lspec((D, 3 * D)), lspec((1, 3 * D)),  # attn in_proj (bf16 w)
                lspec((D, D)), lspec((1, D)),          # attn out_proj (bf16 w)
                lspec((1, D)), lspec((1, D)),          # ln_2
                lspec((D, F)), lspec((1, F)),          # mlp c_fc (bf16 w)
                lspec((F, D)), lspec((1, D)),          # mlp c_proj (bf16 w)
                cspec((1, D)), cspec((1, D)),          # ln_final
                cspec((D, E)),                         # text_projection
            ],
            out_specs=pl.BlockSpec((B, E), lambda l, _eot: (0, 0)),
            scratch_shapes=[pltpu.VMEM((B * L, D), jnp.float32),   # resident activations
                            pltpu.VMEM((B, D), jnp.float32)],      # gathered EOT rows
        ),
        compiler_params=pltpu.CompilerParams(
            dimension_semantics=("arbitrary",),
            vmem_limit_bytes=vmem_limit),
    )(eot, x2d, causal,
      ln1_g, ln1_b, w_qkv, b_qkv, w_o, b_o,
      ln2_g, ln2_b, w_fc, b_fc, w_pj, b_pj,
      params["lnf_g"], params["lnf_b"], params["proj"])


# --------------------------- parameter init / reference ----------------------

def init_params(key, L, D, E, n_layers):
    F = 4 * D
    keys = iter(jax.random.split(key, 12 * n_layers + 8))
    nrm = lambda shape, s=0.02: (s * jax.random.normal(next(keys), shape)).astype(DTYPE)
    layers = []
    for _ in range(n_layers):
        layers.append(dict(
            ln1_g=(1.0 + nrm((1, D), 0.1)), ln1_b=nrm((1, D), 0.05),
            w_qkv=nrm((D, 3 * D)), b_qkv=nrm((1, 3 * D)),
            w_o=nrm((D, D)), b_o=nrm((1, D)),
            ln2_g=(1.0 + nrm((1, D), 0.1)), ln2_b=nrm((1, D), 0.05),
            w_fc=nrm((D, F)), b_fc=nrm((1, F)),
            w_pj=nrm((F, D)), b_pj=nrm((1, D)),
        ))
    return dict(
        pos=nrm((L, D), 0.01),
        layers=layers,
        lnf_g=(1.0 + nrm((1, D), 0.1)), lnf_b=nrm((1, D), 0.05),
        proj=nrm((D, E)),
    )


def reference(x, tok, params, num_heads):
    B, L, D = x.shape
    hd = D // num_heads
    x = x + params["pos"][None]
    causal = jnp.where(jnp.arange(L)[None, :] > jnp.arange(L)[:, None], -1e30, 0.0)
    for p in params["layers"]:
        h = _layer_norm(x, p["ln1_g"], p["ln1_b"])
        qkv = h @ p["w_qkv"] + p["b_qkv"]
        q, k, v = jnp.split(qkv, 3, axis=-1)
        mh = lambda t: t.reshape(B, L, num_heads, hd).transpose(0, 2, 1, 3)
        s = jnp.einsum("bhqd,bhkd->bhqk", mh(q), mh(k)) * (hd ** -0.5) + causal
        a = jnp.einsum("bhqk,bhkd->bhqd", jax.nn.softmax(s, axis=-1), mh(v))
        a = a.transpose(0, 2, 1, 3).reshape(B, L, D)
        x = x + a @ p["w_o"] + p["b_o"]
        h2 = _layer_norm(x, p["ln2_g"], p["ln2_b"])
        f = h2 @ p["w_fc"] + p["b_fc"]
        f = f * jax.nn.sigmoid(1.702 * f)
        x = x + f @ p["w_pj"] + p["b_pj"]
    x = _layer_norm(x, params["lnf_g"], params["lnf_b"])
    sel = x[jnp.arange(B), jnp.argmax(tok, axis=-1)]
    return sel @ params["proj"]


# --------------------------- main --------------------------------------------

if __name__ == "__main__":
    B, L, D, E, NUM_HEADS, N_LAYERS = 2, 8, 32, 32, 4, 2

    key = jax.random.PRNGKey(0)
    kx, kt, kp = jax.random.split(key, 3)
    # x plays the role of the (already embedded) prompt tokens: (B, L, D)
    x = (0.1 * jax.random.normal(kx, (B, L, D))).astype(DTYPE)
    tokenized_prompts = jax.random.randint(kt, (B, L), 0, 1000, dtype=jnp.int32)
    params = init_params(kp, L, D, E, N_LAYERS)

    fwd = jax.jit(tex_encoder_forward, static_argnums=(3,))
    out = fwd(x, tokenized_prompts, params, NUM_HEADS)
    out = jax.block_until_ready(out)

    ref = reference(x, tokenized_prompts, params, NUM_HEADS)
    assert out.shape == (B, E), out.shape
    # bf16 matmul operands (f32 accumulation) inside the kernel vs. f32 reference.
    np.testing.assert_allclose(np.asarray(out), np.asarray(ref), rtol=2e-2, atol=2e-2)
    print("KERNEL_OK")
</pallas_src>

<mosaic_0001>
module attributes {stable_mosaic.version = 11 : i64} {
  func.func @tex_encoder_kernel(%arg0: i32, %arg1: memref<2xi32, #tpu.memory_space<smem>>, %arg2: memref<16x32xf32, #tpu.memory_space<any>>, %arg3: memref<8x8xf32, #tpu.memory_space<vmem>>, %arg4: memref<1x1x32xf32, #tpu.memory_space<vmem>>, %arg5: memref<1x1x32xf32, #tpu.memory_space<vmem>>, %arg6: memref<1x32x96xbf16, #tpu.memory_space<vmem>>, %arg7: memref<1x1x96xf32, #tpu.memory_space<vmem>>, %arg8: memref<1x32x32xbf16, #tpu.memory_space<vmem>>, %arg9: memref<1x1x32xf32, #tpu.memory_space<vmem>>, %arg10: memref<1x1x32xf32, #tpu.memory_space<vmem>>, %arg11: memref<1x1x32xf32, #tpu.memory_space<vmem>>, %arg12: memref<1x32x128xbf16, #tpu.memory_space<vmem>>, %arg13: memref<1x1x128xf32, #tpu.memory_space<vmem>>, %arg14: memref<1x128x32xbf16, #tpu.memory_space<vmem>>, %arg15: memref<1x1x32xf32, #tpu.memory_space<vmem>>, %arg16: memref<1x32xf32, #tpu.memory_space<vmem>>, %arg17: memref<1x32xf32, #tpu.memory_space<vmem>>, %arg18: memref<32x32xf32, #tpu.memory_space<vmem>>, %arg19: memref<2x32xf32, #tpu.memory_space<vmem>>, %arg20: memref<16x32xf32, #tpu.memory_space<vmem>>, %arg21: memref<2x32xf32, #tpu.memory_space<vmem>>) attributes {dimension_semantics = [#tpu.dimension_semantics<arbitrary>], iteration_bounds = array<i64: 2>, scalar_prefetch = 1 : i64, scratch_operands = 2 : i64, tpu.core_type = #tpu.core_type<tc>, window_params = [{}, {pipeline_mode = #tpu.pipeline_mode<synchronous>, transform_indices = @transform_1, window_bounds = array<i64: 8, 8>}, {transform_indices = @transform_2, window_bounds = array<i64: 1, 1, 32>}, {transform_indices = @transform_3, window_bounds = array<i64: 1, 1, 32>}, {transform_indices = @transform_4, window_bounds = array<i64: 1, 32, 96>}, {transform_indices = @transform_5, window_bounds = array<i64: 1, 1, 96>}, {transform_indices = @transform_6, window_bounds = array<i64: 1, 32, 32>}, {transform_indices = @transform_7, window_bounds = array<i64: 1, 1, 32>}, {transform_indices = @transform_8, window_bounds = array<i64: 1, 1, 32>}, {transform_indices = @transform_9, window_bounds = array<i64: 1, 1, 32>}, {transform_indices = @transform_10, window_bounds = array<i64: 1, 32, 128>}, {transform_indices = @transform_11, window_bounds = array<i64: 1, 1, 128>}, {transform_indices = @transform_12, window_bounds = array<i64: 1, 128, 32>}, {transform_indices = @transform_13, window_bounds = array<i64: 1, 1, 32>}, {pipeline_mode = #tpu.pipeline_mode<synchronous>, transform_indices = @transform_14, window_bounds = array<i64: 1, 32>}, {pipeline_mode = #tpu.pipeline_mode<synchronous>, transform_indices = @transform_15, window_bounds = array<i64: 1, 32>}, {pipeline_mode = #tpu.pipeline_mode<synchronous>, transform_indices = @transform_16, window_bounds = array<i64: 32, 32>}, {pipeline_mode = #tpu.pipeline_mode<synchronous>, transform_indices = @transform_17, window_bounds = array<i64: 2, 32>}]} {
    %c0_i32 = arith.constant 0 : i32
    %0 = arith.cmpi eq, %arg0, %c0_i32 : i32
    %1 = arith.extui %0 : i1 to i32
    %c0_i32_0 = arith.constant 0 : i32
    %2 = arith.cmpi ne, %1, %c0_i32_0 : i32
    scf.if %2 {
      "tpu.region"() ({
        %213 = tpu.sem_alloc : memref<!tpu.dma_semaphore, #tpu.memory_space<semaphore_mem>>
        tpu.enqueue_dma source(%arg2 : memref<16x32xf32, #tpu.memory_space<any>>) target(%arg20 : memref<16x32xf32, #tpu.memory_space<vmem>>) target_semaphore(%213 : memref<!tpu.dma_semaphore, #tpu.memory_space<semaphore_mem>>)
        tpu.wait_dma2 semaphore(%213 : memref<!tpu.dma_semaphore, #tpu.memory_space<semaphore_mem>>) src(%arg2 : memref<16x32xf32, #tpu.memory_space<any>>) dst(%arg20 : memref<16x32xf32, #tpu.memory_space<vmem>>)
        tpu.yield
      }) : () -> ()
    } else {
    }
    %c0 = arith.constant 0 : index
    %c0_1 = arith.constant 0 : index
    %3 = vector.load %arg20[%c0, %c0_1] : memref<16x32xf32, #tpu.memory_space<vmem>>, vector<16x32xf32>
    %c0_2 = arith.constant 0 : index
    %c0_3 = arith.constant 0 : index
    %c0_4 = arith.constant 0 : index
    %4 = vector.load %arg4[%c0_2, %c0_3, %c0_4] : memref<1x1x32xf32, #tpu.memory_space<vmem>>, vector<1x1x32xf32>
    %5 = vector.shape_cast %4 : vector<1x1x32xf32> to vector<1x32xf32>
    %c0_5 = arith.constant 0 : index
    %c0_6 = arith.constant 0 : index
    %c0_7 = arith.constant 0 : index
    %6 = vector.load %arg5[%c0_5, %c0_6, %c0_7] : memref<1x1x32xf32, #tpu.memory_space<vmem>>, vector<1x1x32xf32>
    %7 = vector.shape_cast %6 : vector<1x1x32xf32> to vector<1x32xf32>
    %cst = arith.constant dense<0.000000e+00> : vector<16xf32>
    %8 = vector.multi_reduction <add>, %3, %cst [1] : vector<16x32xf32> to vector<16xf32>
    %9 = vector.shape_cast %8 : vector<16xf32> to vector<16x1xf32>
    %cst_8 = arith.constant 3.200000e+01 : f32
    %10 = vector.broadcast %cst_8 : f32 to vector<16x1xf32>
    %11 = arith.divf %9, %10 : vector<16x1xf32>
    %12 = vector.broadcast %11 : vector<16x1xf32> to vector<16x32xf32>
    %13 = arith.subf %3, %12 : vector<16x32xf32>
    %14 = arith.mulf %13, %13 : vector<16x32xf32>
    %cst_9 = arith.constant dense<0.000000e+00> : vector<16xf32>
    %15 = vector.multi_reduction <add>, %14, %cst_9 [1] : vector<16x32xf32> to vector<16xf32>
    %16 = vector.shape_cast %15 : vector<16xf32> to vector<16x1xf32>
    %cst_10 = arith.constant 3.200000e+01 : f32
    %17 = vector.broadcast %cst_10 : f32 to vector<16x1xf32>
    %18 = arith.divf %16, %17 : vector<16x1xf32>
    %19 = vector.broadcast %11 : vector<16x1xf32> to vector<16x32xf32>
    %20 = arith.subf %3, %19 : vector<16x32xf32>
    %cst_11 = arith.constant 9.99999974E-6 : f32
    %21 = vector.broadcast %cst_11 : f32 to vector<16x1xf32>
    %22 = arith.addf %18, %21 : vector<16x1xf32>
    %23 = math.rsqrt %22 : vector<16x1xf32>
    %24 = vector.broadcast %23 : vector<16x1xf32> to vector<16x32xf32>
    %25 = arith.mulf %20, %24 : vector<16x32xf32>
    %26 = vector.broadcast %5 : vector<1x32xf32> to vector<16x32xf32>
    %27 = arith.mulf %25, %26 : vector<16x32xf32>
    %28 = vector.broadcast %7 : vector<1x32xf32> to vector<16x32xf32>
    %29 = arith.addf %27, %28 : vector<16x32xf32>
    %30 = arith.truncf %29 : vector<16x32xf32> to vector<16x32xbf16>
    %c0_12 = arith.constant 0 : index
    %c0_13 = arith.constant 0 : index
    %c0_14 = arith.constant 0 : index
    %31 = vector.load %arg6[%c0_12, %c0_13, %c0_14] : memref<1x32x96xbf16, #tpu.memory_space<vmem>>, vector<1x32x96xbf16>
    %32 = vector.shape_cast %31 : vector<1x32x96xbf16> to vector<32x96xbf16>
    %cst_15 = arith.constant dense<0.000000e+00> : vector<16x96xf32>
    %33 = tpu.matmul %30, %32, %cst_15 {dimension_numbers = #tpu.dot_dimension_numbers<[1], [0], [0], [1], [0, 0, 1, 1], [], []>} : vector<16x32xbf16>, vector<32x96xbf16>, vector<16x96xf32> -> vector<16x96xf32>
    %c0_16 = arith.constant 0 : index
    %c0_17 = arith.constant 0 : index
    %c0_18 = arith.constant 0 : index
    %34 = vector.load %arg7[%c0_16, %c0_17, %c0_18] : memref<1x1x96xf32, #tpu.memory_space<vmem>>, vector<1x1x96xf32>
    %35 = vector.shape_cast %34 : vector<1x1x96xf32> to vector<1x96xf32>
    %36 = vector.broadcast %35 : vector<1x96xf32> to vector<16x96xf32>
    %37 = arith.addf %33, %36 : vector<16x96xf32>
    %38 = vector.extract_strided_slice %37 {offsets = [0, 0], sizes = [16, 32], strides = [1, 1]} : vector<16x96xf32> to vector<16x32xf32>
    %cst_19 = arith.constant 0.353553385 : f32
    %39 = vector.broadcast %cst_19 : f32 to vector<16x32xf32>
    %40 = arith.mulf %38, %39 : vector<16x32xf32>
    %41 = arith.truncf %40 : vector<16x32xf32> to vector<16x32xbf16>
    %42 = vector.extract_strided_slice %37 {offsets = [0, 32], sizes = [16, 32], strides = [1, 1]} : vector<16x96xf32> to vector<16x32xf32>
    %43 = arith.truncf %42 : vector<16x32xf32> to vector<16x32xbf16>
    %44 = vector.extract_strided_slice %37 {offsets = [0, 64], sizes = [16, 32], strides = [1, 1]} : vector<16x96xf32> to vector<16x32xf32>
    %45 = arith.truncf %44 : vector<16x32xf32> to vector<16x32xbf16>
    %c0_20 = arith.constant 0 : index
    %c0_21 = arith.constant 0 : index
    %46 = vector.load %arg3[%c0_20, %c0_21] : memref<8x8xf32, #tpu.memory_space<vmem>>, vector<8x8xf32>
    %47 = vector.shape_cast %46 : vector<8x8xf32> to vector<1x8x8xf32>
    %c0_22 = arith.constant 0 : index
    %c0_23 = arith.constant 0 : index
    %c0_24 = arith.constant 0 : index
    %48 = vector.load %arg8[%c0_22, %c0_23, %c0_24] : memref<1x32x32xbf16, #tpu.memory_space<vmem>>, vector<1x32x32xbf16>
    %49 = vector.shape_cast %48 : vector<1x32x32xbf16> to vector<32x32xbf16>
    %50 = vector.extract_strided_slice %41 {offsets = [0, 0], sizes = [16, 8], strides = [1, 1]} : vector<16x32xbf16> to vector<16x8xbf16>
    %51 = vector.shape_cast %50 : vector<16x8xbf16> to vector<2x8x8xbf16>
    %52 = vector.extract_strided_slice %43 {offsets = [0, 0], sizes = [16, 8], strides = [1, 1]} : vector<16x32xbf16> to vector<16x8xbf16>
    %53 = vector.shape_cast %52 : vector<16x8xbf16> to vector<2x8x8xbf16>
    %54 = vector.extract_strided_slice %45 {offsets = [0, 0], sizes = [16, 8], strides = [1, 1]} : vector<16x32xbf16> to vector<16x8xbf16>
    %55 = vector.shape_cast %54 : vector<16x8xbf16> to vector<2x8x8xbf16>
    "tpu.trace_start"() <{level = 10 : i32, message = "bld,bmd->blm"}> : () -> ()
    %cst_25 = arith.constant dense<0.000000e+00> : vector<2x8x8xf32>
    %56 = tpu.matmul %51, %53, %cst_25 {dimension_numbers = #tpu.dot_dimension_numbers<[2], [2], [1], [1], [0, 0, 0, 1, 1, 1], [0], [0]>} : vector<2x8x8xbf16>, vector<2x8x8xbf16>, vector<2x8x8xf32> -> vector<2x8x8xf32>
    "tpu.trace_stop"() : () -> ()
    %57 = vector.broadcast %47 : vector<1x8x8xf32> to vector<2x8x8xf32>
    %58 = arith.addf %56, %57 : vector<2x8x8xf32>
    %cst_26 = arith.constant dense<0xFF800000> : vector<2x8xf32>
    %59 = vector.multi_reduction <maximumf>, %58, %cst_26 [2] : vector<2x8x8xf32> to vector<2x8xf32>
    %60 = vector.shape_cast %59 : vector<2x8xf32> to vector<2x8x1xf32>
    %61 = vector.broadcast %60 : vector<2x8x1xf32> to vector<2x8x8xf32>
    %62 = arith.subf %58, %61 : vector<2x8x8xf32>
    %63 = math.exp %62 : vector<2x8x8xf32>
    %cst_27 = arith.constant dense<0.000000e+00> : vector<2x8xf32>
    %64 = vector.multi_reduction <add>, %63, %cst_27 [2] : vector<2x8x8xf32> to vector<2x8xf32>
    %65 = vector.shape_cast %64 : vector<2x8xf32> to vector<2x8x1xf32>
    %66 = tpu.reciprocal %65 {approx = true} : vector<2x8x1xf32> -> vector<2x8x1xf32>
    %67 = vector.broadcast %66 : vector<2x8x1xf32> to vector<2x8x8xf32>
    %68 = arith.mulf %63, %67 : vector<2x8x8xf32>
    %69 = arith.truncf %68 : vector<2x8x8xf32> to vector<2x8x8xbf16>
    "tpu.trace_start"() <{level = 10 : i32, message = "blm,bmd->bld"}> : () -> ()
    %cst_28 = arith.constant dense<0.000000e+00> : vector<2x8x8xf32>
    %70 = tpu.matmul %69, %55, %cst_28 {dimension_numbers = #tpu.dot_dimension_numbers<[2], [1], [1], [2], [0, 0, 0, 1, 1, 2], [0], [0]>} : vector<2x8x8xbf16>, vector<2x8x8xbf16>, vector<2x8x8xf32> -> vector<2x8x8xf32>
    "tpu.trace_stop"() : () -> ()
    %71 = arith.truncf %70 : vector<2x8x8xf32> to vector<2x8x8xbf16>
    %72 = vector.shape_cast %71 : vector<2x8x8xbf16> to vector<16x8xbf16>
    %73 = vector.extract_strided_slice %49 {offsets = [0, 0], sizes = [8, 32], strides = [1, 1]} : vector<32x32xbf16> to vector<8x32xbf16>
    %cst_29 = arith.constant dense<0.000000e+00> : vector<16x32xf32>
    %74 = tpu.matmul %72, %73, %cst_29 {dimension_numbers = #tpu.dot_dimension_numbers<[1], [0], [0], [1], [0, 0, 1, 1], [], []>} : vector<16x8xbf16>, vector<8x32xbf16>, vector<16x32xf32> -> vector<16x32xf32>
    %75 = vector.extract_strided_slice %41 {offsets = [0, 8], sizes = [16, 8], strides = [1, 1]} : vector<16x32xbf16> to vector<16x8xbf16>
    %76 = vector.shape_cast %75 : vector<16x8xbf16> to vector<2x8x8xbf16>
    %77 = vector.extract_strided_slice %43 {offsets = [0, 8], sizes = [16, 8], strides = [1, 1]} : vector<16x32xbf16> to vector<16x8xbf16>
    %78 = vector.shape_cast %77 : vector<16x8xbf16> to vector<2x8x8xbf16>
    %79 = vector.extract_strided_slice %45 {offsets = [0, 8], sizes = [16, 8], strides = [1, 1]} : vector<16x32xbf16> to vector<16x8xbf16>
    %80 = vector.shape_cast %79 : vector<16x8xbf16> to vector<2x8x8xbf16>
    "tpu.trace_start"() <{level = 10 : i32, message = "bld,bmd->blm"}> : () -> ()
    %cst_30 = arith.constant dense<0.000000e+00> : vector<2x8x8xf32>
    %81 = tpu.matmul %76, %78, %cst_30 {dimension_numbers = #tpu.dot_dimension_numbers<[2], [2], [1], [1], [0, 0, 0, 1, 1, 1], [0], [0]>} : vector<2x8x8xbf16>, vector<2x8x8xbf16>, vector<2x8x8xf32> -> vector<2x8x8xf32>
    "tpu.trace_stop"() : () -> ()
    %82 = vector.broadcast %47 : vector<1x8x8xf32> to vector<2x8x8xf32>
    %83 = arith.addf %81, %82 : vector<2x8x8xf32>
    %cst_31 = arith.constant dense<0xFF800000> : vector<2x8xf32>
    %84 = vector.multi_reduction <maximumf>, %83, %cst_31 [2] : vector<2x8x8xf32> to vector<2x8xf32>
    %85 = vector.shape_cast %84 : vector<2x8xf32> to vector<2x8x1xf32>
    %86 = vector.broadcast %85 : vector<2x8x1xf32> to vector<2x8x8xf32>
    %87 = arith.subf %83, %86 : vector<2x8x8xf32>
    %88 = math.exp %87 : vector<2x8x8xf32>
    %cst_32 = arith.constant dense<0.000000e+00> : vector<2x8xf32>
    %89 = vector.multi_reduction <add>, %88, %cst_32 [2] : vector<2x8x8xf32> to vector<2x8xf32>
    %90 = vector.shape_cast %89 : vector<2x8xf32> to vector<2x8x1xf32>
    %91 = tpu.reciprocal %90 {approx = true} : vector<2x8x1xf32> -> vector<2x8x1xf32>
    %92 = vector.broadcast %91 : vector<2x8x1xf32> to vector<2x8x8xf32>
    %93 = arith.mulf %88, %92 : vector<2x8x8xf32>
    %94 = arith.truncf %93 : vector<2x8x8xf32> to vector<2x8x8xbf16>
    "tpu.trace_start"() <{level = 10 : i32, message = "blm,bmd->bld"}> : () -> ()
    %cst_33 = arith.constant dense<0.000000e+00> : vector<2x8x8xf32>
    %95 = tpu.matmul %94, %80, %cst_33 {dimension_numbers = #tpu.dot_dimension_numbers<[2], [1], [1], [2], [0, 0, 0, 1, 1, 2], [0], [0]>} : vector<2x8x8xbf16>, vector<2x8x8xbf16>, vector<2x8x8xf32> -> vector<2x8x8xf32>
    "tpu.trace_stop"() : () -> ()
    %96 = arith.truncf %95 : vector<2x8x8xf32> to vector<2x8x8xbf16>
    %97 = vector.shape_cast %96 : vector<2x8x8xbf16> to vector<16x8xbf16>
    %98 = vector.extract_strided_slice %49 {offsets = [8, 0], sizes = [8, 32], strides = [1, 1]} : vector<32x32xbf16> to vector<8x32xbf16>
    %cst_34 = arith.constant dense<0.000000e+00> : vector<16x32xf32>
    %99 = tpu.matmul %97, %98, %cst_34 {dimension_numbers = #tpu.dot_dimension_numbers<[1], [0], [0], [1], [0, 0, 1, 1], [], []>} : vector<16x8xbf16>, vector<8x32xbf16>, vector<16x32xf32> -> vector<16x32xf32>
    %100 = arith.addf %74, %99 : vector<16x32xf32>
    %101 = vector.extract_strided_slice %41 {offsets = [0, 16], sizes = [16, 8], strides = [1, 1]} : vector<16x32xbf16> to vector<16x8xbf16>
    %102 = vector.shape_cast %101 : vector<16x8xbf16> to vector<2x8x8xbf16>
    %103 = vector.extract_strided_slice %43 {offsets = [0, 16], sizes = [16, 8], strides = [1, 1]} : vector<16x32xbf16> to vector<16x8xbf16>
    %104 = vector.shape_cast %103 : vector<16x8xbf16> to vector<2x8x8xbf16>
    %105 = vector.extract_strided_slice %45 {offsets = [0, 16], sizes = [16, 8], strides = [1, 1]} : vector<16x32xbf16> to vector<16x8xbf16>
    %106 = vector.shape_cast %105 : vector<16x8xbf16> to vector<2x8x8xbf16>
    "tpu.trace_start"() <{level = 10 : i32, message = "bld,bmd->blm"}> : () -> ()
    %cst_35 = arith.constant dense<0.000000e+00> : vector<2x8x8xf32>
    %107 = tpu.matmul %102, %104, %cst_35 {dimension_numbers = #tpu.dot_dimension_numbers<[2], [2], [1], [1], [0, 0, 0, 1, 1, 1], [0], [0]>} : vector<2x8x8xbf16>, vector<2x8x8xbf16>, vector<2x8x8xf32> -> vector<2x8x8xf32>
    "tpu.trace_stop"() : () -> ()
    %108 = vector.broadcast %47 : vector<1x8x8xf32> to vector<2x8x8xf32>
    %109 = arith.addf %107, %108 : vector<2x8x8xf32>
    %cst_36 = arith.constant dense<0xFF800000> : vector<2x8xf32>
    %110 = vector.multi_reduction <maximumf>, %109, %cst_36 [2] : vector<2x8x8xf32> to vector<2x8xf32>
    %111 = vector.shape_cast %110 : vector<2x8xf32> to vector<2x8x1xf32>
    %112 = vector.broadcast %111 : vector<2x8x1xf32> to vector<2x8x8xf32>
    %113 = arith.subf %109, %112 : vector<2x8x8xf32>
    %114 = math.exp %113 : vector<2x8x8xf32>
    %cst_37 = arith.constant dense<0.000000e+00> : vector<2x8xf32>
    %115 = vector.multi_reduction <add>, %114, %cst_37 [2] : vector<2x8x8xf32> to vector<2x8xf32>
    %116 = vector.shape_cast %115 : vector<2x8xf32> to vector<2x8x1xf32>
    %117 = tpu.reciprocal %116 {approx = true} : vector<2x8x1xf32> -> vector<2x8x1xf32>
    %118 = vector.broadcast %117 : vector<2x8x1xf32> to vector<2x8x8xf32>
    %119 = arith.mulf %114, %118 : vector<2x8x8xf32>
    %120 = arith.truncf %119 : vector<2x8x8xf32> to vector<2x8x8xbf16>
    "tpu.trace_start"() <{level = 10 : i32, message = "blm,bmd->bld"}> : () -> ()
    %cst_38 = arith.constant dense<0.000000e+00> : vector<2x8x8xf32>
    %121 = tpu.matmul %120, %106, %cst_38 {dimension_numbers = #tpu.dot_dimension_numbers<[2], [1], [1], [2], [0, 0, 0, 1, 1, 2], [0], [0]>} : vector<2x8x8xbf16>, vector<2x8x8xbf16>, vector<2x8x8xf32> -> vector<2x8x8xf32>
    "tpu.trace_stop"() : () -> ()
    %122 = arith.truncf %121 : vector<2x8x8xf32> to vector<2x8x8xbf16>
    %123 = vector.shape_cast %122 : vector<2x8x8xbf16> to vector<16x8xbf16>
    %124 = vector.extract_strided_slice %49 {offsets = [16, 0], sizes = [8, 32], strides = [1, 1]} : vector<32x32xbf16> to vector<8x32xbf16>
    %cst_39 = arith.constant dense<0.000000e+00> : vector<16x32xf32>
    %125 = tpu.matmul %123, %124, %cst_39 {dimension_numbers = #tpu.dot_dimension_numbers<[1], [0], [0], [1], [0, 0, 1, 1], [], []>} : vector<16x8xbf16>, vector<8x32xbf16>, vector<16x32xf32> -> vector<16x32xf32>
    %126 = arith.addf %100, %125 : vector<16x32xf32>
    %127 = vector.extract_strided_slice %41 {offsets = [0, 24], sizes = [16, 8], strides = [1, 1]} : vector<16x32xbf16> to vector<16x8xbf16>
    %128 = vector.shape_cast %127 : vector<16x8xbf16> to vector<2x8x8xbf16>
    %129 = vector.extract_strided_slice %43 {offsets = [0, 24], sizes = [16, 8], strides = [1, 1]} : vector<16x32xbf16> to vector<16x8xbf16>
    %130 = vector.shape_cast %129 : vector<16x8xbf16> to vector<2x8x8xbf16>
    %131 = vector.extract_strided_slice %45 {offsets = [0, 24], sizes = [16, 8], strides = [1, 1]} : vector<16x32xbf16> to vector<16x8xbf16>
    %132 = vector.shape_cast %131 : vector<16x8xbf16> to vector<2x8x8xbf16>
    "tpu.trace_start"() <{level = 10 : i32, message = "bld,bmd->blm"}> : () -> ()
    %cst_40 = arith.constant dense<0.000000e+00> : vector<2x8x8xf32>
    %133 = tpu.matmul %128, %130, %cst_40 {dimension_numbers = #tpu.dot_dimension_numbers<[2], [2], [1], [1], [0, 0, 0, 1, 1, 1], [0], [0]>} : vector<2x8x8xbf16>, vector<2x8x8xbf16>, vector<2x8x8xf32> -> vector<2x8x8xf32>
    "tpu.trace_stop"() : () -> ()
    %134 = vector.broadcast %47 : vector<1x8x8xf32> to vector<2x8x8xf32>
    %135 = arith.addf %133, %134 : vector<2x8x8xf32>
    %cst_41 = arith.constant dense<0xFF800000> : vector<2x8xf32>
    %136 = vector.multi_reduction <maximumf>, %135, %cst_41 [2] : vector<2x8x8xf32> to vector<2x8xf32>
    %137 = vector.shape_cast %136 : vector<2x8xf32> to vector<2x8x1xf32>
    %138 = vector.broadcast %137 : vector<2x8x1xf32> to vector<2x8x8xf32>
    %139 = arith.subf %135, %138 : vector<2x8x8xf32>
    %140 = math.exp %139 : vector<2x8x8xf32>
    %cst_42 = arith.constant dense<0.000000e+00> : vector<2x8xf32>
    %141 = vector.multi_reduction <add>, %140, %cst_42 [2] : vector<2x8x8xf32> to vector<2x8xf32>
    %142 = vector.shape_cast %141 : vector<2x8xf32> to vector<2x8x1xf32>
    %143 = tpu.reciprocal %142 {approx = true} : vector<2x8x1xf32> -> vector<2x8x1xf32>
    %144 = vector.broadcast %143 : vector<2x8x1xf32> to vector<2x8x8xf32>
    %145 = arith.mulf %140, %144 : vector<2x8x8xf32>
    %146 = arith.truncf %145 : vector<2x8x8xf32> to vector<2x8x8xbf16>
    "tpu.trace_start"() <{level = 10 : i32, message = "blm,bmd->bld"}> : () -> ()
    %cst_43 = arith.constant dense<0.000000e+00> : vector<2x8x8xf32>
    %147 = tpu.matmul %146, %132, %cst_43 {dimension_numbers = #tpu.dot_dimension_numbers<[2], [1], [1], [2], [0, 0, 0, 1, 1, 2], [0], [0]>} : vector<2x8x8xbf16>, vector<2x8x8xbf16>, vector<2x8x8xf32> -> vector<2x8x8xf32>
    "tpu.trace_stop"() : () -> ()
    %148 = arith.truncf %147 : vector<2x8x8xf32> to vector<2x8x8xbf16>
    %149 = vector.shape_cast %148 : vector<2x8x8xbf16> to vector<16x8xbf16>
    %150 = vector.extract_strided_slice %49 {offsets = [24, 0], sizes = [8, 32], strides = [1, 1]} : vector<32x32xbf16> to vector<8x32xbf16>
    %cst_44 = arith.constant dense<0.000000e+00> : vector<16x32xf32>
    %151 = tpu.matmul %149, %150, %cst_44 {dimension_numbers = #tpu.dot_dimension_numbers<[1], [0], [0], [1], [0, 0, 1, 1], [], []>} : vector<16x8xbf16>, vector<8x32xbf16>, vector<16x32xf32> -> vector<16x32xf32>
    %152 = arith.addf %126, %151 : vector<16x32xf32>
    %153 = arith.addf %3, %152 : vector<16x32xf32>
    %c0_45 = arith.constant 0 : index
    %c0_46 = arith.constant 0 : index
    %c0_47 = arith.constant 0 : index
    %154 = vector.load %arg9[%c0_45, %c0_46, %c0_47] : memref<1x1x32xf32, #tpu.memory_space<vmem>>, vector<1x1x32xf32>
    %155 = vector.shape_cast %154 : vector<1x1x32xf32> to vector<1x32xf32>
    %156 = vector.broadcast %155 : vector<1x32xf32> to vector<16x32xf32>
    %157 = arith.addf %153, %156 : vector<16x32xf32>
    %c0_48 = arith.constant 0 : index
    %c0_49 = arith.constant 0 : index
    %c0_50 = arith.constant 0 : index
    %158 = vector.load %arg10[%c0_48, %c0_49, %c0_50] : memref<1x1x32xf32, #tpu.memory_space<vmem>>, vector<1x1x32xf32>
    %159 = vector.shape_cast %158 : vector<1x1x32xf32> to vector<1x32xf32>
    %c0_51 = arith.constant 0 : index
    %c0_52 = arith.constant 0 : index
    %c0_53 = arith.constant 0 : index
    %160 = vector.load %arg11[%c0_51, %c0_52, %c0_53] : memref<1x1x32xf32, #tpu.memory_space<vmem>>, vector<1x1x32xf32>
    %161 = vector.shape_cast %160 : vector<1x1x32xf32> to vector<1x32xf32>
    %cst_54 = arith.constant dense<0.000000e+00> : vector<16xf32>
    %162 = vector.multi_reduction <add>, %157, %cst_54 [1] : vector<16x32xf32> to vector<16xf32>
    %163 = vector.shape_cast %162 : vector<16xf32> to vector<16x1xf32>
    %cst_55 = arith.constant 3.200000e+01 : f32
    %164 = vector.broadcast %cst_55 : f32 to vector<16x1xf32>
    %165 = arith.divf %163, %164 : vector<16x1xf32>
    %166 = vector.broadcast %165 : vector<16x1xf32> to vector<16x32xf32>
    %167 = arith.subf %157, %166 : vector<16x32xf32>
    %168 = arith.mulf %167, %167 : vector<16x32xf32>
    %cst_56 = arith.constant dense<0.000000e+00> : vector<16xf32>
    %169 = vector.multi_reduction <add>, %168, %cst_56 [1] : vector<16x32xf32> to vector<16xf32>
    %170 = vector.shape_cast %169 : vector<16xf32> to vector<16x1xf32>
    %cst_57 = arith.constant 3.200000e+01 : f32
    %171 = vector.broadcast %cst_57 : f32 to vector<16x1xf32>
    %172 = arith.divf %170, %171 : vector<16x1xf32>
    %173 = vector.broadcast %165 : vector<16x1xf32> to vector<16x32xf32>
    %174 = arith.subf %157, %173 : vector<16x32xf32>
    %cst_58 = arith.constant 9.99999974E-6 : f32
    %175 = vector.broadcast %cst_58 : f32 to vector<16x1xf32>
    %176 = arith.addf %172, %175 : vector<16x1xf32>
    %177 = math.rsqrt %176 : vector<16x1xf32>
    %178 = vector.broadcast %177 : vector<16x1xf32> to vector<16x32xf32>
    %179 = arith.mulf %174, %178 : vector<16x32xf32>
    %180 = vector.broadcast %159 : vector<1x32xf32> to vector<16x32xf32>
    %181 = arith.mulf %179, %180 : vector<16x32xf32>
    %182 = vector.broadcast %161 : vector<1x32xf32> to vector<16x32xf32>
    %183 = arith.addf %181, %182 : vector<16x32xf32>
    %184 = arith.truncf %183 : vector<16x32xf32> to vector<16x32xbf16>
    %c0_59 = arith.constant 0 : index
    %c0_60 = arith.constant 0 : index
    %c0_61 = arith.constant 0 : index
    %185 = vector.load %arg12[%c0_59, %c0_60, %c0_61] : memref<1x32x128xbf16, #tpu.memory_space<vmem>>, vector<1x32x128xbf16>
    %186 = vector.shape_cast %185 : vector<1x32x128xbf16> to vector<32x128xbf16>
    %cst_62 = arith.constant dense<0.000000e+00> : vector<16x128xf32>
    %187 = tpu.matmul %184, %186, %cst_62 {dimension_numbers = #tpu.dot_dimension_numbers<[1], [0], [0], [1], [0, 0, 1, 1], [], []>} : vector<16x32xbf16>, vector<32x128xbf16>, vector<16x128xf32> -> vector<16x128xf32>
    %c0_63 = arith.constant 0 : index
    %c0_64 = arith.constant 0 : index
    %c0_65 = arith.constant 0 : index
    %188 = vector.load %arg13[%c0_63, %c0_64, %c0_65] : memref<1x1x128xf32, #tpu.memory_space<vmem>>, vector<1x1x128xf32>
    %189 = vector.shape_cast %188 : vector<1x1x128xf32> to vector<1x128xf32>
    %190 = vector.broadcast %189 : vector<1x128xf32> to vector<16x128xf32>
    %191 = arith.addf %187, %190 : vector<16x128xf32>
    %cst_66 = arith.constant 1.702000e+00 : f32
    %192 = vector.broadcast %cst_66 : f32 to vector<16x128xf32>
    %193 = arith.mulf %192, %191 : vector<16x128xf32>
    %194 = arith.negf %193 : vector<16x128xf32>
    %195 = math.exp %194 : vector<16x128xf32>
    %cst_67 = arith.constant 1.000000e+00 : f32
    %196 = vector.broadcast %cst_67 : f32 to vector<16x128xf32>
    %197 = arith.addf %196, %195 : vector<16x128xf32>
    %198 = arith.divf %196, %197 : vector<16x128xf32>
    %199 = arith.mulf %191, %198 : vector<16x128xf32>
    %200 = arith.truncf %199 : vector<16x128xf32> to vector<16x128xbf16>
    %c0_68 = arith.constant 0 : index
    %c0_69 = arith.constant 0 : index
    %c0_70 = arith.constant 0 : index
    %201 = vector.load %arg14[%c0_68, %c0_69, %c0_70] : memref<1x128x32xbf16, #tpu.memory_space<vmem>>, vector<1x128x32xbf16>
    %202 = vector.shape_cast %201 : vector<1x128x32xbf16> to vector<128x32xbf16>
    %cst_71 = arith.constant dense<0.000000e+00> : vector<16x32xf32>
    %203 = tpu.matmul %200, %202, %cst_71 {dimension_numbers = #tpu.dot_dimension_numbers<[1], [0], [0], [1], [0, 0, 1, 1], [], []>} : vector<16x128xbf16>, vector<128x32xbf16>, vector<16x32xf32> -> vector<16x32xf32>
    %204 = arith.addf %157, %203 : vector<16x32xf32>
    %c0_72 = arith.constant 0 : index
    %c0_73 = arith.constant 0 : index
    %c0_74 = arith.constant 0 : index
    %205 = vector.load %arg15[%c0_72, %c0_73, %c0_74] : memref<1x1x32xf32, #tpu.memory_space<vmem>>, vector<1x1x32xf32>
    %206 = vector.shape_cast %205 : vector<1x1x32xf32> to vector<1x32xf32>
    %207 = vector.broadcast %206 : vector<1x32xf32> to vector<16x32xf32>
    %208 = arith.addf %204, %207 : vector<16x32xf32>
    %c0_75 = arith.constant 0 : index
    %c0_76 = arith.constant 0 : index
    %209 = vector.load %arg20[%c0_75, %c0_76] : memref<16x32xf32, #tpu.memory_space<vmem>>, vector<16x32xf32>
    tpu.vector_store %arg20[%c0_75, %c0_76], %208 {strides = array<i32>} : memref<16x32xf32, #tpu.memory_space<vmem>>, vector<16x32xf32>,
    %c1_i32 = arith.constant 1 : i32
    %210 = arith.cmpi eq, %arg0, %c1_i32 : i32
    %211 = arith.extui %210 : i1 to i32
    %c0_i32_77 = arith.constant 0 : i32
    %212 = arith.cmpi ne, %211, %c0_i32_77 : i32
    scf.if %212 {
      %c0_78 = arith.constant 0 : index
      %213 = memref.load %arg1[%c0_78] : memref<2xi32, #tpu.memory_space<smem>>
      %c0_i32_79 = arith.constant 0 : i32
      %214 = arith.addi %c0_i32_79, %213 : i32
      %215 = arith.index_cast %214 : i32 to index
      %c0_80 = arith.constant 0 : index
      %216 = vector.load %arg20[%215, %c0_80] : memref<16x32xf32, #tpu.memory_space<vmem>>, vector<1x32xf32>
      %c0_81 = arith.constant 0 : index
      %c0_82 = arith.constant 0 : index
      %217 = vector.load %arg21[%c0_81, %c0_82] : memref<2x32xf32, #tpu.memory_space<vmem>>, vector<1x32xf32>
      tpu.vector_store %arg21[%c0_81, %c0_82], %216 {strides = array<i32>} : memref<2x32xf32, #tpu.memory_space<vmem>>, vector<1x32xf32>,
      %c1 = arith.constant 1 : index
      %218 = memref.load %arg1[%c1] : memref<2xi32, #tpu.memory_space<smem>>
      %c8_i32 = arith.constant 8 : i32
      %219 = arith.addi %c8_i32, %218 : i32
      %220 = arith.index_cast %219 : i32 to index
      %c0_83 = arith.constant 0 : index
      %221 = vector.load %arg20[%220, %c0_83] : memref<16x32xf32, #tpu.memory_space<vmem>>, vector<1x32xf32>
      %c1_84 = arith.constant 1 : index
      %c0_85 = arith.constant 0 : index
      %222 = vector.load %arg21[%c1_84, %c0_85] : memref<2x32xf32, #tpu.memory_space<vmem>>, vector<1x32xf32>
      tpu.vector_store %arg21[%c1_84, %c0_85], %221 {strides = array<i32>} : memref<2x32xf32, #tpu.memory_space<vmem>>, vector<1x32xf32>,
      %c0_86 = arith.constant 0 : index
      %c0_87 = arith.constant 0 : index
      %223 = vector.load %arg21[%c0_86, %c0_87] : memref<2x32xf32, #tpu.memory_space<vmem>>, vector<2x32xf32>
      %c0_88 = arith.constant 0 : index
      %c0_89 = arith.constant 0 : index
      %224 = vector.load %arg16[%c0_88, %c0_89] : memref<1x32xf32, #tpu.memory_space<vmem>>, vector<1x32xf32>
      %c0_90 = arith.constant 0 : index
      %c0_91 = arith.constant 0 : index
      %225 = vector.load %arg17[%c0_90, %c0_91] : memref<1x32xf32, #tpu.memory_space<vmem>>, vector<1x32xf32>
      %cst_92 = arith.constant dense<0.000000e+00> : vector<2xf32>
      %226 = vector.multi_reduction <add>, %223, %cst_92 [1] : vector<2x32xf32> to vector<2xf32>
      %227 = vector.shape_cast %226 : vector<2xf32> to vector<2x1xf32>
      %cst_93 = arith.constant 3.200000e+01 : f32
      %228 = vector.broadcast %cst_93 : f32 to vector<2x1xf32>
      %229 = arith.divf %227, %228 : vector<2x1xf32>
      %230 = vector.broadcast %229 : vector<2x1xf32> to vector<2x32xf32>
      %231 = arith.subf %223, %230 : vector<2x32xf32>
      %232 = arith.mulf %231, %231 : vector<2x32xf32>
      %cst_94 = arith.constant dense<0.000000e+00> : vector<2xf32>
      %233 = vector.multi_reduction <add>, %232, %cst_94 [1] : vector<2x32xf32> to vector<2xf32>
      %234 = vector.shape_cast %233 : vector<2xf32> to vector<2x1xf32>
      %cst_95 = arith.constant 3.200000e+01 : f32
      %235 = vector.broadcast %cst_95 : f32 to vector<2x1xf32>
      %236 = arith.divf %234, %235 : vector<2x1xf32>
      %237 = vector.broadcast %229 : vector<2x1xf32> to vector<2x32xf32>
      %238 = arith.subf %223, %237 : vector<2x32xf32>
      %cst_96 = arith.constant 9.99999974E-6 : f32
      %239 = vector.broadcast %cst_96 : f32 to vector<2x1xf32>
      %240 = arith.addf %236, %239 : vector<2x1xf32>
      %241 = math.rsqrt %240 : vector<2x1xf32>
      %242 = vector.broadcast %241 : vector<2x1xf32> to vector<2x32xf32>
      %243 = arith.mulf %238, %242 : vector<2x32xf32>
      %244 = vector.broadcast %224 : vector<1x32xf32> to vector<2x32xf32>
      %245 = arith.mulf %243, %244 : vector<2x32xf32>
      %246 = vector.broadcast %225 : vector<1x32xf32> to vector<2x32xf32>
      %247 = arith.addf %245, %246 : vector<2x32xf32>
      %c0_97 = arith.constant 0 : index
      %c0_98 = arith.constant 0 : index
      %248 = vector.load %arg18[%c0_97, %c0_98] : memref<32x32xf32, #tpu.memory_space<vmem>>, vector<32x32xf32>
      %cst_99 = arith.constant dense<0.000000e+00> : vector<2x32xf32>
      %249 = tpu.matmul %247, %248, %cst_99 {dimension_numbers = #tpu.dot_dimension_numbers<[1], [0], [0], [1], [0, 0, 1, 1], [], []>} : vector<2x32xf32>, vector<32x32xf32>, vector<2x32xf32> -> vector<2x32xf32>
      %c0_100 = arith.constant 0 : index
      %c0_101 = arith.constant 0 : index
      %250 = vector.load %arg19[%c0_100, %c0_101] : memref<2x32xf32, #tpu.memory_space<vmem>>, vector<2x32xf32>
      tpu.vector_store %arg19[%c0_100, %c0_101], %249 {strides = array<i32>} : memref<2x32xf32, #tpu.memory_space<vmem>>, vector<2x32xf32>,
    } else {
    }
    return
  }
  func.func @transform_1(%arg0: i32, %arg1: memref<2xi32, #tpu.memory_space<smem>>) -> (i32, i32) {
    %c0_i32 = arith.constant 0 : i32
    %c0_i32_0 = arith.constant 0 : i32
    %c0_i32_1 = arith.constant 0 : i32
    return %c0_i32, %c0_i32_0 : i32, i32
  }
  func.func @transform_2(%arg0: i32, %arg1: memref<2xi32, #tpu.memory_space<smem>>) -> (i32, i32, i32) {
    %c0_i32 = arith.constant 0 : i32
    %c0_i32_0 = arith.constant 0 : i32
    %c0_i32_1 = arith.constant 0 : i32
    return %arg0, %c0_i32, %c0_i32_0 : i32, i32, i32
  }
  func.func @transform_3(%arg0: i32, %arg1: memref<2xi32, #tpu.memory_space<smem>>) -> (i32, i32, i32) {
    %c0_i32 = arith.constant 0 : i32
    %c0_i32_0 = arith.constant 0 : i32
    %c0_i32_1 = arith.constant 0 : i32
    return %arg0, %c0_i32, %c0_i32_0 : i32, i32, i32
  }
  func.func @transform_4(%arg0: i32, %arg1: memref<2xi32, #tpu.memory_space<smem>>) -> (i32, i32, i32) {
    %c0_i32 = arith.constant 0 : i32
    %c0_i32_0 = arith.constant 0 : i32
    %c0_i32_1 = arith.constant 0 : i32
    return %arg0, %c0_i32, %c0_i32_0 : i32, i32, i32
  }
  func.func @transform_5(%arg0: i32, %arg1: memref<2xi32, #tpu.memory_space<smem>>) -> (i32, i32, i32) {
    %c0_i32 = arith.constant 0 : i32
    %c0_i32_0 = arith.constant 0 : i32
    %c0_i32_1 = arith.constant 0 : i32
    return %arg0, %c0_i32, %c0_i32_0 : i32, i32, i32
  }
  func.func @transform_6(%arg0: i32, %arg1: memref<2xi32, #tpu.memory_space<smem>>) -> (i32, i32, i32) {
    %c0_i32 = arith.constant 0 : i32
    %c0_i32_0 = arith.constant 0 : i32
    %c0_i32_1 = arith.constant 0 : i32
    return %arg0, %c0_i32, %c0_i32_0 : i32, i32, i32
  }
  func.func @transform_7(%arg0: i32, %arg1: memref<2xi32, #tpu.memory_space<smem>>) -> (i32, i32, i32) {
    %c0_i32 = arith.constant 0 : i32
    %c0_i32_0 = arith.constant 0 : i32
    %c0_i32_1 = arith.constant 0 : i32
    return %arg0, %c0_i32, %c0_i32_0 : i32, i32, i32
  }
  func.func @transform_8(%arg0: i32, %arg1: memref<2xi32, #tpu.memory_space<smem>>) -> (i32, i32, i32) {
    %c0_i32 = arith.constant 0 : i32
    %c0_i32_0 = arith.constant 0 : i32
    %c0_i32_1 = arith.constant 0 : i32
    return %arg0, %c0_i32, %c0_i32_0 : i32, i32, i32
  }
  func.func @transform_9(%arg0: i32, %arg1: memref<2xi32, #tpu.memory_space<smem>>) -> (i32, i32, i32) {
    %c0_i32 = arith.constant 0 : i32
    %c0_i32_0 = arith.constant 0 : i32
    %c0_i32_1 = arith.constant 0 : i32
    return %arg0, %c0_i32, %c0_i32_0 : i32, i32, i32
  }
  func.func @transform_10(%arg0: i32, %arg1: memref<2xi32, #tpu.memory_space<smem>>) -> (i32, i32, i32) {
    %c0_i32 = arith.constant 0 : i32
    %c0_i32_0 = arith.constant 0 : i32
    %c0_i32_1 = arith.constant 0 : i32
    return %arg0, %c0_i32, %c0_i32_0 : i32, i32, i32
  }
  func.func @transform_11(%arg0: i32, %arg1: memref<2xi32, #tpu.memory_space<smem>>) -> (i32, i32, i32) {
    %c0_i32 = arith.constant 0 : i32
    %c0_i32_0 = arith.constant 0 : i32
    %c0_i32_1 = arith.constant 0 : i32
    return %arg0, %c0_i32, %c0_i32_0 : i32, i32, i32
  }
  func.func @transform_12(%arg0: i32, %arg1: memref<2xi32, #tpu.memory_space<smem>>) -> (i32, i32, i32) {
    %c0_i32 = arith.constant 0 : i32
    %c0_i32_0 = arith.constant 0 : i32
    %c0_i32_1 = arith.constant 0 : i32
    return %arg0, %c0_i32, %c0_i32_0 : i32, i32, i32
  }
  func.func @transform_13(%arg0: i32, %arg1: memref<2xi32, #tpu.memory_space<smem>>) -> (i32, i32, i32) {
    %c0_i32 = arith.constant 0 : i32
    %c0_i32_0 = arith.constant 0 : i32
    %c0_i32_1 = arith.constant 0 : i32
    return %arg0, %c0_i32, %c0_i32_0 : i32, i32, i32
  }
  func.func @transform_14(%arg0: i32, %arg1: memref<2xi32, #tpu.memory_space<smem>>) -> (i32, i32) {
    %c0_i32 = arith.constant 0 : i32
    %c0_i32_0 = arith.constant 0 : i32
    %c0_i32_1 = arith.constant 0 : i32
    return %c0_i32, %c0_i32_0 : i32, i32
  }
  func.func @transform_15(%arg0: i32, %arg1: memref<2xi32, #tpu.memory_space<smem>>) -> (i32, i32) {
    %c0_i32 = arith.constant 0 : i32
    %c0_i32_0 = arith.constant 0 : i32
    %c0_i32_1 = arith.constant 0 : i32
    return %c0_i32, %c0_i32_0 : i32, i32
  }
  func.func @transform_16(%arg0: i32, %arg1: memref<2xi32, #tpu.memory_space<smem>>) -> (i32, i32) {
    %c0_i32 = arith.constant 0 : i32
    %c0_i32_0 = arith.constant 0 : i32
    %c0_i32_1 = arith.constant 0 : i32
    return %c0_i32, %c0_i32_0 : i32, i32
  }
  func.func @transform_17(%arg0: i32, %arg1: memref<2xi32, #tpu.memory_space<smem>>) -> (i32, i32) {
    %c0_i32 = arith.constant 0 : i32
    %c0_i32_0 = arith.constant 0 : i32
    %c0_i32_1 = arith.constant 0 : i32
    return %c0_i32, %c0_i32_0 : i32, i32
  }
}

</mosaic_0001>

<llo_original>
// kernel: tex_encoder_forward.1
$region0: #{tex_encoder_forward.1}
  #allocation0 [shape = 'u32[]', space=smem, size = 0x4, offset = 0x4, fixed_abs, tag = 'smem constant byte address 0x4 - core index']
  #allocation1 [shape = 'u32[144,128]{1,0:T(1,128)}', space=vmem, size = 0x12000, scoped, tag = 'internal scratch']
  #allocation2 [shape = 'f32[16,32]{1,0:T(8,128)}', space=vmem, size = 0x2000, scoped, tag = 'scratch operand']
  #allocation3 [shape = 'f32[2,32]{1,0:T(2,128)}', space=vmem, size = 0x400, scoped, tag = 'scratch operand']
  #allocation4 [shape = 's32[1]{0}', space=sflag, size = 0x4, scoped, tag = 'scoped memory for tex_encoder_forward.1']
  #allocation5 [shape = 'u8[512]{0}', space=smem, size = 0x200, scoped, tag = 'prefetched SMEM operand 0']
  #allocation9 [shape = 's32[]', space=sflag, size = 0x4, offset = 0, fixed_abs, tag = 'sflag constant byte address 0x0 - dummy sync flag']
  %s0 = inlined_call_operand.vmem [shape: s32[2], index: 0, kind: input, shape index: {}]
  %s1 = inlined_call_operand.vmem [shape: f32[16,32], index: 1, kind: input, shape index: {}]
  %s2 = inlined_call_operand.vmem [shape: f32[8,8], index: 2, kind: input, shape index: {}]
  %s3 = inlined_call_operand.vmem [shape: f32[2,1,32], index: 3, kind: input, shape index: {}]
  %s4 = inlined_call_operand.vmem [shape: f32[2,1,32], index: 4, kind: input, shape index: {}]
  %s5 = inlined_call_operand.vmem [shape: bf16[2,32,96], index: 5, kind: input, shape index: {}]
  %s6 = inlined_call_operand.vmem [shape: f32[2,1,96], index: 6, kind: input, shape index: {}]
  %s7 = inlined_call_operand.vmem [shape: bf16[2,32,32], index: 7, kind: input, shape index: {}]
  %s8 = inlined_call_operand.vmem [shape: f32[2,1,32], index: 8, kind: input, shape index: {}]
  %s9 = inlined_call_operand.vmem [shape: f32[2,1,32], index: 9, kind: input, shape index: {}]
  %s10 = inlined_call_operand.vmem [shape: f32[2,1,32], index: 10, kind: input, shape index: {}]
  %s11 = inlined_call_operand.vmem [shape: bf16[2,32,128], index: 11, kind: input, shape index: {}]
  %s12 = inlined_call_operand.vmem [shape: f32[2,1,128], index: 12, kind: input, shape index: {}]
  %s13 = inlined_call_operand.vmem [shape: bf16[2,128,32], index: 13, kind: input, shape index: {}]
  %s14 = inlined_call_operand.vmem [shape: f32[2,1,32], index: 14, kind: input, shape index: {}]
  %s15 = inlined_call_operand.vmem [shape: f32[1,32], index: 15, kind: input, shape index: {}]
  %s16 = inlined_call_operand.vmem [shape: f32[1,32], index: 16, kind: input, shape index: {}]
  %s17 = inlined_call_operand.vmem [shape: f32[32,32], index: 17, kind: input, shape index: {}]
  %s18 = inlined_call_operand.hbm [shape: f32[2,32], index: 18, kind: output, shape index: {}]
  %s19 = sld [smem:[#allocation0]]
  $region140: #{tex_encoder_forward.1} parent=0
    _
  %s21 = ssub.s32 1, %s19
  %s22 = scalar_select 0, %s21, %s19
  %s23 = sshll.u32 %s0, 4
  %s24 = int_to_ptr.vmem [resolvable:$true] %s23
  %26 = dma.vmem_to_smem %s24, 16, [#allocation5], [#allocation4]
  %27 = dma.done [#allocation4], 16
  %28 = sfence
  $region1: #{tex_encoder_forward.1} parent=0
    #allocation6 [shape = 'u8[1024]{0}', space=vmem, size = 0x400, scoped, tag = 'output window, operand 0, single buffered']
    #allocation7 [shape = 's32[2]{0}', space=sflag, size = 0x8, scoped, tag = 'scoped memory for tex_encoder_forward.1']
    %29 = vsyncpa [#allocation7], 0
    loop: start=0, step=1, limit=4
    $region2: #{tex_encoder_forward.1} parent=1 // loop_pre_header
      _
    $region3: #{tex_encoder_forward.1} parent=1 // loop_header
      %s31 = sphi 0, %s35
      %p32 = scmp.ge.s32.totalorder %s31, 4
      %s39 = sphi 0, %s39
      %s41 = sphi 0, %s39
      %s42 = sphi 0, %s41
      %s56 = sphi 0, %s42
      %s62 = sphi 0, %s64
      %s65 = sphi 0, %s62
      %s66 = sphi 0, %s65
      %s82 = sphi 0, %s66
      %s88 = sphi 0, %s90
      %s91 = sphi 0, %s88
      %s92 = sphi 0, %s91
      %s108 = sphi 0, %s92
      %s114 = sphi 0, %s116
      %s117 = sphi 0, %s114
      %s118 = sphi 0, %s117
      %s134 = sphi 0, %s118
      %s140 = sphi 0, %s142
      %s143 = sphi 0, %s140
      %s144 = sphi 0, %s143
      %s160 = sphi 0, %s144
      %s166 = sphi 0, %s168
      %s169 = sphi 0, %s166
      %s170 = sphi 0, %s169
      %s186 = sphi 0, %s170
      %s192 = sphi 0, %s194
      %s195 = sphi 0, %s192
      %s196 = sphi 0, %s195
      %s212 = sphi 0, %s196
      %s218 = sphi 0, %s220
      %s221 = sphi 0, %s218
      %s222 = sphi 0, %s221
      %s238 = sphi 0, %s222
      %s244 = sphi 0, %s246
      %s247 = sphi 0, %s244
      %s248 = sphi 0, %s247
      %s264 = sphi 0, %s248
      %s270 = sphi 0, %s272
      %s273 = sphi 0, %s270
      %s274 = sphi 0, %s273
      %s290 = sphi 0, %s274
      %s296 = sphi 0, %s298
      %s299 = sphi 0, %s296
      %s300 = sphi 0, %s299
      %s316 = sphi 0, %s300
      %s322 = sphi 0, %s324
      %s325 = sphi 0, %s322
      %s326 = sphi 0, %s325
      %s342 = sphi 0, %s326
      %s348 = sphi 0, %s350
      %s351 = sphi 0, %s348
      %s352 = sphi 0, %s351
      %s368 = sphi 0, %s352
      %s372 = sphi 0, %s372
      %s374 = sphi 0, %s372
      %s375 = sphi 0, %s374
      %s389 = sphi 0, %s375
      %s393 = sphi 0, %s393
      %s395 = sphi 0, %s393
      %s396 = sphi 0, %s395
      %s410 = sphi 0, %s396
      %s414 = sphi 0, %s414
      %s416 = sphi 0, %s414
      %s417 = sphi 0, %s416
      %s431 = sphi 0, %s417
      %s435 = sphi 0, %s435
      %s437 = sphi 0, %s435
      %s438 = sphi 0, %s437
      %s452 = sphi 0, %s438
    $region4: #{tex_encoder_forward.1} parent=1 // loop_header_branch
      %34 = sbr.rel (%p32) target = $region8
    $region5: #{tex_encoder_forward.1} parent=1 // loop_body
      %s36 = ssub.s32 %s31, 1
      %s37 = ssub.s32 %s31, 2
      %s38 = sadd.s32 %s31, 1
      %s40 = sadd.s32 %s39, 1
      %p43 = scmp.eq.s32.totalorder %s31, 1
      %p44 = scmp.ne.s32.totalorder %s39, %s41
      %p45 = scmp.eq.s32.totalorder %s31, 0
      %p46 = por %p44, %p45
      %p47 = scmp.ne.s32.totalorder %s39, %s41
      %p48 = scmp.eq.s32.totalorder %s36, 1
      %p49 = por %p47, %p48
      %p50 = scmp.ne.s32.totalorder %s41, %s42
      %p51 = scmp.eq.s32.totalorder %s36, 0
      %p52 = por %p50, %p51
      %p53 = scmp.ne.s32.totalorder %s41, %s42
      %p54 = scmp.eq.s32.totalorder %s37, 1
      %p55 = por %p53, %p54
      %p57 = scmp.ne.s32.totalorder %s42, %s56
      %p58 = scmp.eq.s32.totalorder %s37, 0
      %p59 = por %p57, %p58
      %s60 = ssub.s32 %s31, %s38
      %p61 = scmp.eq.s32.totalorder %s60, 0
      %s63 = sadd.s32 %s62, 1
      %s64 = scalar_select %p61, %s62, %s63
      %p67 = pneg %p61
      %p68 = scmp.eq.s32.totalorder %s31, 1
      %p69 = por %p67, %p68
      %p70 = scmp.ne.s32.totalorder %s62, %s65
      %p71 = scmp.eq.s32.totalorder %s31, 0
      %p72 = por %p70, %p71
      %p73 = scmp.ne.s32.totalorder %s62, %s65
      %p74 = scmp.eq.s32.totalorder %s36, 1
      %p75 = por %p73, %p74
      %p76 = scmp.ne.s32.totalorder %s65, %s66
      %p77 = scmp.eq.s32.totalorder %s36, 0
      %p78 = por %p76, %p77
      %p79 = scmp.ne.s32.totalorder %s65, %s66
      %p80 = scmp.eq.s32.totalorder %s37, 1
      %p81 = por %p79, %p80
      %p83 = scmp.ne.s32.totalorder %s66, %s82
      %p84 = scmp.eq.s32.totalorder %s37, 0
      %p85 = por %p83, %p84
      %s86 = ssub.s32 %s31, %s38
      %p87 = scmp.eq.s32.totalorder %s86, 0
      %s89 = sadd.s32 %s88, 1
      %s90 = scalar_select %p87, %s88, %s89
      %p93 = pneg %p87
      %p94 = scmp.eq.s32.totalorder %s31, 1
      %p95 = por %p93, %p94
      %p96 = scmp.ne.s32.totalorder %s88, %s91
      %p97 = scmp.eq.s32.totalorder %s31, 0
      %p98 = por %p96, %p97
      %p99 = scmp.ne.s32.totalorder %s88, %s91
      %p100 = scmp.eq.s32.totalorder %s36, 1
      %p101 = por %p99, %p100
      %p102 = scmp.ne.s32.totalorder %s91, %s92
      %p103 = scmp.eq.s32.totalorder %s36, 0
      %p104 = por %p102, %p103
      %p105 = scmp.ne.s32.totalorder %s91, %s92
      %p106 = scmp.eq.s32.totalorder %s37, 1
      %p107 = por %p105, %p106
      %p109 = scmp.ne.s32.totalorder %s92, %s108
      %p110 = scmp.eq.s32.totalorder %s37, 0
      %p111 = por %p109, %p110
      %s112 = ssub.s32 %s31, %s38
      %p113 = scmp.eq.s32.totalorder %s112, 0
      %s115 = sadd.s32 %s114, 1
      %s116 = scalar_select %p113, %s114, %s115
      %p119 = pneg %p113
      %p120 = scmp.eq.s32.totalorder %s31, 1
      %p121 = por %p119, %p120
      %p122 = scmp.ne.s32.totalorder %s114, %s117
      %p123 = scmp.eq.s32.totalorder %s31, 0
      %p124 = por %p122, %p123
      %p125 = scmp.ne.s32.totalorder %s114, %s117
      %p126 = scmp.eq.s32.totalorder %s36, 1
      %p127 = por %p125, %p126
      %p128 = scmp.ne.s32.totalorder %s117, %s118
      %p129 = scmp.eq.s32.totalorder %s36, 0
      %p130 = por %p128, %p129
      %p131 = scmp.ne.s32.totalorder %s117, %s118
      %p132 = scmp.eq.s32.totalorder %s37, 1
      %p133 = por %p131, %p132
      %p135 = scmp.ne.s32.totalorder %s118, %s134
      %p136 = scmp.eq.s32.totalorder %s37, 0
      %p137 = por %p135, %p136
      %s138 = ssub.s32 %s31, %s38
      %p139 = scmp.eq.s32.totalorder %s138, 0
      %s141 = sadd.s32 %s140, 1
      %s142 = scalar_select %p139, %s140, %s141
      %p145 = pneg %p139
      %p146 = scmp.eq.s32.totalorder %s31, 1
      %p147 = por %p145, %p146
      %p148 = scmp.ne.s32.totalorder %s140, %s143
      %p149 = scmp.eq.s32.totalorder %s31, 0
      %p150 = por %p148, %p149
      %p151 = scmp.ne.s32.totalorder %s140, %s143
      %p152 = scmp.eq.s32.totalorder %s36, 1
      %p153 = por %p151, %p152
      %p154 = scmp.ne.s32.totalorder %s143, %s144
      %p155 = scmp.eq.s32.totalorder %s36, 0
      %p156 = por %p154, %p155
      %p157 = scmp.ne.s32.totalorder %s143, %s144
      %p158 = scmp.eq.s32.totalorder %s37, 1
      %p159 = por %p157, %p158
      %p161 = scmp.ne.s32.totalorder %s144, %s160
      %p162 = scmp.eq.s32.totalorder %s37, 0
      %p163 = por %p161, %p162
      %s164 = ssub.s32 %s31, %s38
      %p165 = scmp.eq.s32.totalorder %s164, 0
      %s167 = sadd.s32 %s166, 1
      %s168 = scalar_select %p165, %s166, %s167
      %p171 = pneg %p165
      %p172 = scmp.eq.s32.totalorder %s31, 1
      %p173 = por %p171, %p172
      %p174 = scmp.ne.s32.totalorder %s166, %s169
      %p175 = scmp.eq.s32.totalorder %s31, 0
      %p176 = por %p174, %p175
      %p177 = scmp.ne.s32.totalorder %s166, %s169
      %p178 = scmp.eq.s32.totalorder %s36, 1
      %p179 = por %p177, %p178
      %p180 = scmp.ne.s32.totalorder %s169, %s170
      %p181 = scmp.eq.s32.totalorder %s36, 0
      %p182 = por %p180, %p181
      %p183 = scmp.ne.s32.totalorder %s169, %s170
      %p184 = scmp.eq.s32.totalorder %s37, 1
      %p185 = por %p183, %p184
      %p187 = scmp.ne.s32.totalorder %s170, %s186
      %p188 = scmp.eq.s32.totalorder %s37, 0
      %p189 = por %p187, %p188
      %s190 = ssub.s32 %s31, %s38
      %p191 = scmp.eq.s32.totalorder %s190, 0
      %s193 = sadd.s32 %s192, 1
      %s194 = scalar_select %p191, %s192, %s193
      %p197 = pneg %p191
      %p198 = scmp.eq.s32.totalorder %s31, 1
      %p199 = por %p197, %p198
      %p200 = scmp.ne.s32.totalorder %s192, %s195
      %p201 = scmp.eq.s32.totalorder %s31, 0
      %p202 = por %p200, %p201
      %p203 = scmp.ne.s32.totalorder %s192, %s195
      %p204 = scmp.eq.s32.totalorder %s36, 1
      %p205 = por %p203, %p204
      %p206 = scmp.ne.s32.totalorder %s195, %s196
      %p207 = scmp.eq.s32.totalorder %s36, 0
      %p208 = por %p206, %p207
      %p209 = scmp.ne.s32.totalorder %s195, %s196
      %p210 = scmp.eq.s32.totalorder %s37, 1
      %p211 = por %p209, %p210
      %p213 = scmp.ne.s32.totalorder %s196, %s212
      %p214 = scmp.eq.s32.totalorder %s37, 0
      %p215 = por %p213, %p214
      %s216 = ssub.s32 %s31, %s38
      %p217 = scmp.eq.s32.totalorder %s216, 0
      %s219 = sadd.s32 %s218, 1
      %s220 = scalar_select %p217, %s218, %s219
      %p223 = pneg %p217
      %p224 = scmp.eq.s32.totalorder %s31, 1
      %p225 = por %p223, %p224
      %p226 = scmp.ne.s32.totalorder %s218, %s221
      %p227 = scmp.eq.s32.totalorder %s31, 0
      %p228 = por %p226, %p227
      %p229 = scmp.ne.s32.totalorder %s218, %s221
      %p230 = scmp.eq.s32.totalorder %s36, 1
      %p231 = por %p229, %p230
      %p232 = scmp.ne.s32.totalorder %s221, %s222
      %p233 = scmp.eq.s32.totalorder %s36, 0
      %p234 = por %p232, %p233
      %p235 = scmp.ne.s32.totalorder %s221, %s222
      %p236 = scmp.eq.s32.totalorder %s37, 1
      %p237 = por %p235, %p236
      %p239 = scmp.ne.s32.totalorder %s222, %s238
      %p240 = scmp.eq.s32.totalorder %s37, 0
      %p241 = por %p239, %p240
      %s242 = ssub.s32 %s31, %s38
      %p243 = scmp.eq.s32.totalorder %s242, 0
      %s245 = sadd.s32 %s244, 1
      %s246 = scalar_select %p243, %s244, %s245
      %p249 = pneg %p243
      %p250 = scmp.eq.s32.totalorder %s31, 1
      %p251 = por %p249, %p250
      %p252 = scmp.ne.s32.totalorder %s244, %s247
      %p253 = scmp.eq.s32.totalorder %s31, 0
      %p254 = por %p252, %p253
      %p255 = scmp.ne.s32.totalorder %s244, %s247
      %p256 = scmp.eq.s32.totalorder %s36, 1
      %p257 = por %p255, %p256
      %p258 = scmp.ne.s32.totalorder %s247, %s248
      %p259 = scmp.eq.s32.totalorder %s36, 0
      %p260 = por %p258, %p259
      %p261 = scmp.ne.s32.totalorder %s247, %s248
      %p262 = scmp.eq.s32.totalorder %s37, 1
      %p263 = por %p261, %p262
      %p265 = scmp.ne.s32.totalorder %s248, %s264
      %p266 = scmp.eq.s32.totalorder %s37, 0
      %p267 = por %p265, %p266
      %s268 = ssub.s32 %s31, %s38
      %p269 = scmp.eq.s32.totalorder %s268, 0
      %s271 = sadd.s32 %s270, 1
      %s272 = scalar_select %p269, %s270, %s271
      %p275 = pneg %p269
      %p276 = scmp.eq.s32.totalorder %s31, 1
      %p277 = por %p275, %p276
      %p278 = scmp.ne.s32.totalorder %s270, %s273
      %p279 = scmp.eq.s32.totalorder %s31, 0
      %p280 = por %p278, %p279
      %p281 = scmp.ne.s32.totalorder %s270, %s273
      %p282 = scmp.eq.s32.totalorder %s36, 1
      %p283 = por %p281, %p282
      %p284 = scmp.ne.s32.totalorder %s273, %s274
      %p285 = scmp.eq.s32.totalorder %s36, 0
      %p286 = por %p284, %p285
      %p287 = scmp.ne.s32.totalorder %s273, %s274
      %p288 = scmp.eq.s32.totalorder %s37, 1
      %p289 = por %p287, %p288
      %p291 = scmp.ne.s32.totalorder %s274, %s290
      %p292 = scmp.eq.s32.totalorder %s37, 0
      %p293 = por %p291, %p292
      %s294 = ssub.s32 %s31, %s38
      %p295 = scmp.eq.s32.totalorder %s294, 0
      %s297 = sadd.s32 %s296, 1
      %s298 = scalar_select %p295, %s296, %s297
      %p301 = pneg %p295
      %p302 = scmp.eq.s32.totalorder %s31, 1
      %p303 = por %p301, %p302
      %p304 = scmp.ne.s32.totalorder %s296, %s299
      %p305 = scmp.eq.s32.totalorder %s31, 0
      %p306 = por %p304, %p305
      %p307 = scmp.ne.s32.totalorder %s296, %s299
      %p308 = scmp.eq.s32.totalorder %s36, 1
      %p309 = por %p307, %p308
      %p310 = scmp.ne.s32.totalorder %s299, %s300
      %p311 = scmp.eq.s32.totalorder %s36, 0
      %p312 = por %p310, %p311
      %p313 = scmp.ne.s32.totalorder %s299, %s300
      %p314 = scmp.eq.s32.totalorder %s37, 1
      %p315 = por %p313, %p314
      %p317 = scmp.ne.s32.totalorder %s300, %s316
      %p318 = scmp.eq.s32.totalorder %s37, 0
      %p319 = por %p317, %p318
      %s320 = ssub.s32 %s31, %s38
      %p321 = scmp.eq.s32.totalorder %s320, 0
      %s323 = sadd.s32 %s322, 1
      %s324 = scalar_select %p321, %s322, %s323
      %p327 = pneg %p321
      %p328 = scmp.eq.s32.totalorder %s31, 1
      %p329 = por %p327, %p328
      %p330 = scmp.ne.s32.totalorder %s322, %s325
      %p331 = scmp.eq.s32.totalorder %s31, 0
      %p332 = por %p330, %p331
      %p333 = scmp.ne.s32.totalorder %s322, %s325
      %p334 = scmp.eq.s32.totalorder %s36, 1
      %p335 = por %p333, %p334
      %p336 = scmp.ne.s32.totalorder %s325, %s326
      %p337 = scmp.eq.s32.totalorder %s36, 0
      %p338 = por %p336, %p337
      %p339 = scmp.ne.s32.totalorder %s325, %s326
      %p340 = scmp.eq.s32.totalorder %s37, 1
      %p341 = por %p339, %p340
      %p343 = scmp.ne.s32.totalorder %s326, %s342
      %p344 = scmp.eq.s32.totalorder %s37, 0
      %p345 = por %p343, %p344
      %s346 = ssub.s32 %s31, %s38
      %p347 = scmp.eq.s32.totalorder %s346, 0
      %s349 = sadd.s32 %s348, 1
      %s350 = scalar_select %p347, %s348, %s349
      %p353 = pneg %p347
      %p354 = scmp.eq.s32.totalorder %s31, 1
      %p355 = por %p353, %p354
      %p356 = scmp.ne.s32.totalorder %s348, %s351
      %p357 = scmp.eq.s32.totalorder %s31, 0
      %p358 = por %p356, %p357
      %p359 = scmp.ne.s32.totalorder %s348, %s351
      %p360 = scmp.eq.s32.totalorder %s36, 1
      %p361 = por %p359, %p360
      %p362 = scmp.ne.s32.totalorder %s351, %s352
      %p363 = scmp.eq.s32.totalorder %s36, 0
      %p364 = por %p362, %p363
      %p365 = scmp.ne.s32.totalorder %s351, %s352
      %p366 = scmp.eq.s32.totalorder %s37, 1
      %p367 = por %p365, %p366
      %p369 = scmp.ne.s32.totalorder %s352, %s368
      %p370 = scmp.eq.s32.totalorder %s37, 0
      %p371 = por %p369, %p370
      %s373 = sadd.s32 %s372, 1
      %p376 = scmp.eq.s32.totalorder %s31, 1
      %p377 = scmp.ne.s32.totalorder %s372, %s374
      %p378 = scmp.eq.s32.totalorder %s31, 0
      %p379 = por %p377, %p378
      %p380 = scmp.ne.s32.totalorder %s372, %s374
      %p381 = scmp.eq.s32.totalorder %s36, 1
      %p382 = por %p380, %p381
      %p383 = scmp.ne.s32.totalorder %s374, %s375
      %p384 = scmp.eq.s32.totalorder %s36, 0
      %p385 = por %p383, %p384
      %p386 = scmp.ne.s32.totalorder %s374, %s375
      %p387 = scmp.eq.s32.totalorder %s37, 1
      %p388 = por %p386, %p387
      %p390 = scmp.ne.s32.totalorder %s375, %s389
      %p391 = scmp.eq.s32.totalorder %s37, 0
      %p392 = por %p390, %p391
      %s394 = sadd.s32 %s393, 1
      %p397 = scmp.eq.s32.totalorder %s31, 1
      %p398 = scmp.ne.s32.totalorder %s393, %s395
      %p399 = scmp.eq.s32.totalorder %s31, 0
      %p400 = por %p398, %p399
      %p401 = scmp.ne.s32.totalorder %s393, %s395
      %p402 = scmp.eq.s32.totalorder %s36, 1
      %p403 = por %p401, %p402
      %p404 = scmp.ne.s32.totalorder %s395, %s396
      %p405 = scmp.eq.s32.totalorder %s36, 0
      %p406 = por %p404, %p405
      %p407 = scmp.ne.s32.totalorder %s395, %s396
      %p408 = scmp.eq.s32.totalorder %s37, 1
      %p409 = por %p407, %p408
      %p411 = scmp.ne.s32.totalorder %s396, %s410
      %p412 = scmp.eq.s32.totalorder %s37, 0
      %p413 = por %p411, %p412
      %s415 = sadd.s32 %s414, 1
      %p418 = scmp.eq.s32.totalorder %s31, 1
      %p419 = scmp.ne.s32.totalorder %s414, %s416
      %p420 = scmp.eq.s32.totalorder %s31, 0
      %p421 = por %p419, %p420
      %p422 = scmp.ne.s32.totalorder %s414, %s416
      %p423 = scmp.eq.s32.totalorder %s36, 1
      %p424 = por %p422, %p423
      %p425 = scmp.ne.s32.totalorder %s416, %s417
      %p426 = scmp.eq.s32.totalorder %s36, 0
      %p427 = por %p425, %p426
      %p428 = scmp.ne.s32.totalorder %s416, %s417
      %p429 = scmp.eq.s32.totalorder %s37, 1
      %p430 = por %p428, %p429
      %p432 = scmp.ne.s32.totalorder %s417, %s431
      %p433 = scmp.eq.s32.totalorder %s37, 0
      %p434 = por %p432, %p433
      %s436 = sadd.s32 %s435, 1
      %p439 = scmp.eq.s32.totalorder %s31, 1
      %p440 = scmp.ne.s32.totalorder %s435, %s437
      %p441 = scmp.eq.s32.totalorder %s31, 0
      %p442 = por %p440, %p441
      %p443 = scmp.ne.s32.totalorder %s435, %s437
      %p444 = scmp.eq.s32.totalorder %s36, 1
      %p445 = por %p443, %p444
      %p446 = scmp.ne.s32.totalorder %s437, %s438
      %p447 = scmp.eq.s32.totalorder %s36, 0
      %p448 = por %p446, %p447
      %p449 = scmp.ne.s32.totalorder %s437, %s438
      %p450 = scmp.eq.s32.totalorder %s37, 1
      %p451 = por %p449, %p450
      %p453 = scmp.ne.s32.totalorder %s438, %s452
      %p454 = scmp.eq.s32.totalorder %s37, 0
      %p455 = por %p453, %p454
      %p456 = scmp.le.s32.totalorder 1, %s31
      %p457 = scmp.lt.s32.totalorder %s31, 3
      %p458 = pnand %p456, %p457
      %p459 = pneg %p458
      // Predicated region
      $region9: #{tex_encoder_forward.1} parent=5 // pred_check
        _
      $region10: #{tex_encoder_forward.1} parent=5 // pred_check_branch
        %461 = sbr.rel (%p458) target = $region12
      $region11: #{tex_encoder_forward.1} parent=5 // pred_region
        %s462 = ssub.s32 %s31, 1
        // Predicated region
        $region13: #{tex_encoder_forward.1} parent=11 // pred_check
          %p463 = pneg %p52
        $region14: #{tex_encoder_forward.1} parent=11 // pred_check_branch
          %465 = sbr.rel (%p463) target = $region16
        $region15: #{tex_encoder_forward.1} parent=11 // pred_region
          _
        $region16: #{tex_encoder_forward.1} parent=11 // pred_fallthru
          _
        // Predicated region
        $region17: #{tex_encoder_forward.1} parent=11 // pred_check
          %p466 = pneg %p385
        $region18: #{tex_encoder_forward.1} parent=11 // pred_check_branch
          %468 = sbr.rel (%p466) target = $region20
        $region19: #{tex_encoder_forward.1} parent=11 // pred_region
          _
        $region20: #{tex_encoder_forward.1} parent=11 // pred_fallthru
          _
        // Predicated region
        $region21: #{tex_encoder_forward.1} parent=11 // pred_check
          %p469 = pneg %p406
        $region22: #{tex_encoder_forward.1} parent=11 // pred_check_branch
          %471 = sbr.rel (%p469) target = $region24
        $region23: #{tex_encoder_forward.1} parent=11 // pred_region
          _
        $region24: #{tex_encoder_forward.1} parent=11 // pred_fallthru
          _
        // Predicated region
        $region25: #{tex_encoder_forward.1} parent=11 // pred_check
          %p472 = pneg %p427
        $region26: #{tex_encoder_forward.1} parent=11 // pred_check_branch
          %474 = sbr.rel (%p472) target = $region28
        $region27: #{tex_encoder_forward.1} parent=11 // pred_region
          _
        $region28: #{tex_encoder_forward.1} parent=11 // pred_fallthru
          _
      $region12: #{tex_encoder_forward.1} parent=5 // pred_fallthru
        _
      %p475 = scmp.lt.s32.totalorder %s31, 2
      // Predicated region
      $region29: #{tex_encoder_forward.1} parent=5 // pred_check
        %p476 = pneg %p475
      $region30: #{tex_encoder_forward.1} parent=5 // pred_check_branch
        %478 = sbr.rel (%p476) target = $region32
      $region31: #{tex_encoder_forward.1} parent=5 // pred_region
        // Predicated region
        $region33: #{tex_encoder_forward.1} parent=31 // pred_check
          %p479 = pneg %p72
        $region34: #{tex_encoder_forward.1} parent=31 // pred_check_branch
          %481 = sbr.rel (%p479) target = $region36
        $region35: #{tex_encoder_forward.1} parent=31 // pred_region
          %p482 = scmp.lt.s32.totalorder %s31, 1
          %s483 = scalar_select %p482, %s31, 1
          %s484 = scalar_lea.vmem %s3, %s483
        $region36: #{tex_encoder_forward.1} parent=31 // pred_fallthru
          _
        // Predicated region
        $region37: #{tex_encoder_forward.1} parent=31 // pred_check
          %p485 = pneg %p98
        $region38: #{tex_encoder_forward.1} parent=31 // pred_check_branch
          %487 = sbr.rel (%p485) target = $region40
        $region39: #{tex_encoder_forward.1} parent=31 // pred_region
          %p488 = scmp.lt.s32.totalorder %s31, 1
          %s489 = scalar_select %p488, %s31, 1
          %s490 = scalar_lea.vmem %s4, %s489
        $region40: #{tex_encoder_forward.1} parent=31 // pred_fallthru
          _
        // Predicated region
        $region41: #{tex_encoder_forward.1} parent=31 // pred_check
          %p491 = pneg %p124
        $region42: #{tex_encoder_forward.1} parent=31 // pred_check_branch
          %493 = sbr.rel (%p491) target = $region44
        $region43: #{tex_encoder_forward.1} parent=31 // pred_region
          %p494 = scmp.lt.s32.totalorder %s31, 1
          %s495 = scalar_select %p494, %s31, 1
          %s496 = smul.addr %s495, 4
          %s497 = smul.addr %s496, 4
          %s498 = scalar_lea.vmem %s5, %s497
        $region44: #{tex_encoder_forward.1} parent=31 // pred_fallthru
          _
        // Predicated region
        $region45: #{tex_encoder_forward.1} parent=31 // pred_check
          %p499 = pneg %p150
        $region46: #{tex_encoder_forward.1} parent=31 // pred_check_branch
          %501 = sbr.rel (%p499) target = $region48
        $region47: #{tex_encoder_forward.1} parent=31 // pred_region
          %p502 = scmp.lt.s32.totalorder %s31, 1
          %s503 = scalar_select %p502, %s31, 1
          %s504 = scalar_lea.vmem %s6, %s503
        $region48: #{tex_encoder_forward.1} parent=31 // pred_fallthru
          _
        // Predicated region
        $region49: #{tex_encoder_forward.1} parent=31 // pred_check
          %p505 = pneg %p176
        $region50: #{tex_encoder_forward.1} parent=31 // pred_check_branch
          %507 = sbr.rel (%p505) target = $region52
        $region51: #{tex_encoder_forward.1} parent=31 // pred_region
          %p508 = scmp.lt.s32.totalorder %s31, 1
          %s509 = scalar_select %p508, %s31, 1
          %s510 = smul.addr %s509, 4
          %s511 = smul.addr %s510, 4
          %s512 = scalar_lea.vmem %s7, %s511
        $region52: #{tex_encoder_forward.1} parent=31 // pred_fallthru
          _
        // Predicated region
        $region53: #{tex_encoder_forward.1} parent=31 // pred_check
          %p513 = pneg %p202
        $region54: #{tex_encoder_forward.1} parent=31 // pred_check_branch
          %515 = sbr.rel (%p513) target = $region56
        $region55: #{tex_encoder_forward.1} parent=31 // pred_region
          %p516 = scmp.lt.s32.totalorder %s31, 1
          %s517 = scalar_select %p516, %s31, 1
          %s518 = scalar_lea.vmem %s8, %s517
        $region56: #{tex_encoder_forward.1} parent=31 // pred_fallthru
          _
        // Predicated region
        $region57: #{tex_encoder_forward.1} parent=31 // pred_check
          %p519 = pneg %p228
        $region58: #{tex_encoder_forward.1} parent=31 // pred_check_branch
          %521 = sbr.rel (%p519) target = $region60
        $region59: #{tex_encoder_forward.1} parent=31 // pred_region
          %p522 = scmp.lt.s32.totalorder %s31, 1
          %s523 = scalar_select %p522, %s31, 1
          %s524 = scalar_lea.vmem %s9, %s523
        $region60: #{tex_encoder_forward.1} parent=31 // pred_fallthru
          _
        // Predicated region
        $region61: #{tex_encoder_forward.1} parent=31 // pred_check
          %p525 = pneg %p254
        $region62: #{tex_encoder_forward.1} parent=31 // pred_check_branch
          %527 = sbr.rel (%p525) target = $region64
        $region63: #{tex_encoder_forward.1} parent=31 // pred_region
          %p528 = scmp.lt.s32.totalorder %s31, 1
          %s529 = scalar_select %p528, %s31, 1
          %s530 = scalar_lea.vmem %s10, %s529
        $region64: #{tex_encoder_forward.1} parent=31 // pred_fallthru
          _
        // Predicated region
        $region65: #{tex_encoder_forward.1} parent=31 // pred_check
          %p531 = pneg %p280
        $region66: #{tex_encoder_forward.1} parent=31 // pred_check_branch
          %533 = sbr.rel (%p531) target = $region68
        $region67: #{tex_encoder_forward.1} parent=31 // pred_region
          %p534 = scmp.lt.s32.totalorder %s31, 1
          %s535 = scalar_select %p534, %s31, 1
          %s536 = smul.addr %s535, 4
          %s537 = smul.addr %s536, 4
          %s538 = scalar_lea.vmem %s11, %s537
        $region68: #{tex_encoder_forward.1} parent=31 // pred_fallthru
          _
        // Predicated region
        $region69: #{tex_encoder_forward.1} parent=31 // pred_check
          %p539 = pneg %p306
        $region70: #{tex_encoder_forward.1} parent=31 // pred_check_branch
          %541 = sbr.rel (%p539) target = $region72
        $region71: #{tex_encoder_forward.1} parent=31 // pred_region
          %p542 = scmp.lt.s32.totalorder %s31, 1
          %s543 = scalar_select %p542, %s31, 1
          %s544 = scalar_lea.vmem %s12, %s543
        $region72: #{tex_encoder_forward.1} parent=31 // pred_fallthru
          _
        // Predicated region
        $region73: #{tex_encoder_forward.1} parent=31 // pred_check
          %p545 = pneg %p332
        $region74: #{tex_encoder_forward.1} parent=31 // pred_check_branch
          %547 = sbr.rel (%p545) target = $region76
        $region75: #{tex_encoder_forward.1} parent=31 // pred_region
          %p548 = scmp.lt.s32.totalorder %s31, 1
          %s549 = scalar_select %p548, %s31, 1
          %s550 = smul.addr %s549, 16
          %s551 = smul.addr %s550, 4
          %s552 = scalar_lea.vmem %s13, %s551
        $region76: #{tex_encoder_forward.1} parent=31 // pred_fallthru
          _
        // Predicated region
        $region77: #{tex_encoder_forward.1} parent=31 // pred_check
          %p553 = pneg %p358
        $region78: #{tex_encoder_forward.1} parent=31 // pred_check_branch
          %555 = sbr.rel (%p553) target = $region80
        $region79: #{tex_encoder_forward.1} parent=31 // pred_region
          %p556 = scmp.lt.s32.totalorder %s31, 1
          %s557 = scalar_select %p556, %s31, 1
          %s558 = scalar_lea.vmem %s14, %s557
        $region80: #{tex_encoder_forward.1} parent=31 // pred_fallthru
          _
      $region32: #{tex_encoder_forward.1} parent=5 // pred_fallthru
        _
      %p559 = scmp.le.s32.totalorder 1, %s31
      %p560 = scmp.lt.s32.totalorder %s31, 3
      %p561 = pnand %p559, %p560
      %p562 = pneg %p561
      // Predicated region
      $region81: #{tex_encoder_forward.1} parent=5 // pred_check
        _
      $region82: #{tex_encoder_forward.1} parent=5 // pred_check_branch
        %564 = sbr.rel (%p561) target = $region84
      $region83: #{tex_encoder_forward.1} parent=5 // pred_region
        %s565 = ssub.s32 %s31, 1
        %p566 = pneg %p52
        %p567 = pneg %p49
        %p568 = scmp.lt.s32.totalorder %s36, 1
        %s569 = scalar_select %p568, %s36, 1
        %s570 = scalar_lea.vmem %s3, %s569
        %p571 = pneg %p78
        %p572 = pneg %p75
        %p573 = scmp.lt.s32.totalorder %s36, 1
        %s574 = scalar_select %p573, %s36, 1
        %s575 = scalar_lea.vmem %s4, %s574
        %p576 = pneg %p104
        %p577 = pneg %p101
        %p578 = scmp.lt.s32.totalorder %s36, 1
        %s579 = scalar_select %p578, %s36, 1
        %s580 = smul.addr %s579, 4
        %s581 = smul.addr %s580, 4
        %s582 = scalar_lea.vmem %s5, %s581
        %p583 = pneg %p130
        %p584 = pneg %p127
        %p585 = scmp.lt.s32.totalorder %s36, 1
        %s586 = scalar_select %p585, %s36, 1
        %s587 = scalar_lea.vmem %s6, %s586
        %p588 = pneg %p156
        %p589 = pneg %p153
        %p590 = scmp.lt.s32.totalorder %s36, 1
        %s591 = scalar_select %p590, %s36, 1
        %s592 = smul.addr %s591, 4
        %s593 = smul.addr %s592, 4
        %s594 = scalar_lea.vmem %s7, %s593
        %p595 = pneg %p182
        %p596 = pneg %p179
        %p597 = scmp.lt.s32.totalorder %s36, 1
        %s598 = scalar_select %p597, %s36, 1
        %s599 = scalar_lea.vmem %s8, %s598
        %p600 = pneg %p208
        %p601 = pneg %p205
        %p602 = scmp.lt.s32.totalorder %s36, 1
        %s603 = scalar_select %p602, %s36, 1
        %s604 = scalar_lea.vmem %s9, %s603
        %p605 = pneg %p234
        %p606 = pneg %p231
        %p607 = scmp.lt.s32.totalorder %s36, 1
        %s608 = scalar_select %p607, %s36, 1
        %s609 = scalar_lea.vmem %s10, %s608
        %p610 = pneg %p260
        %p611 = pneg %p257
        %p612 = scmp.lt.s32.totalorder %s36, 1
        %s613 = scalar_select %p612, %s36, 1
        %s614 = smul.addr %s613, 4
        %s615 = smul.addr %s614, 4
        %s616 = scalar_lea.vmem %s11, %s615
        %p617 = pneg %p286
        %p618 = pneg %p283
        %p619 = scmp.lt.s32.totalorder %s36, 1
        %s620 = scalar_select %p619, %s36, 1
        %s621 = scalar_lea.vmem %s12, %s620
        %p622 = pneg %p312
        %p623 = pneg %p309
        %p624 = scmp.lt.s32.totalorder %s36, 1
        %s625 = scalar_select %p624, %s36, 1
        %s626 = smul.addr %s625, 16
        %s627 = smul.addr %s626, 4
        %s628 = scalar_lea.vmem %s13, %s627
        %p629 = pneg %p338
        %p630 = pneg %p335
        %p631 = scmp.lt.s32.totalorder %s36, 1
        %s632 = scalar_select %p631, %s36, 1
        %s633 = scalar_lea.vmem %s14, %s632
        %p634 = pneg %p364
        %p635 = pneg %p361
        %p636 = pneg %p385
        %p637 = pneg %p382
        %p638 = pneg %p406
        %p639 = pneg %p403
        %p640 = pneg %p427
        %p641 = pneg %p424
        %p642 = pneg %p448
        %p643 = pneg %p445
        %p644 = scmp.lt.s32.totalorder %s36, 1
        %s645 = scalar_select %p644, %s36, 1
        %s646 = scalar_lea.vmem %s3, %s645
        %p647 = scmp.lt.s32.totalorder %s36, 1
        %s648 = scalar_select %p647, %s36, 1
        %s649 = scalar_lea.vmem %s4, %s648
        %p650 = scmp.lt.s32.totalorder %s36, 1
        %s651 = scalar_select %p650, %s36, 1
        %s652 = smul.addr %s651, 4
        %s653 = smul.addr %s652, 4
        %s654 = scalar_lea.vmem %s5, %s653
        %p655 = scmp.lt.s32.totalorder %s36, 1
        %s656 = scalar_select %p655, %s36, 1
        %s657 = scalar_lea.vmem %s6, %s656
        %p658 = scmp.lt.s32.totalorder %s36, 1
        %s659 = scalar_select %p658, %s36, 1
        %s660 = smul.addr %s659, 4
        %s661 = smul.addr %s660, 4
        %s662 = scalar_lea.vmem %s7, %s661
        %p663 = scmp.lt.s32.totalorder %s36, 1
        %s664 = scalar_select %p663, %s36, 1
        %s665 = scalar_lea.vmem %s8, %s664
        %p666 = scmp.lt.s32.totalorder %s36, 1
        %s667 = scalar_select %p666, %s36, 1
        %s668 = scalar_lea.vmem %s9, %s667
        %p669 = scmp.lt.s32.totalorder %s36, 1
        %s670 = scalar_select %p669, %s36, 1
        %s671 = scalar_lea.vmem %s10, %s670
        %p672 = scmp.lt.s32.totalorder %s36, 1
        %s673 = scalar_select %p672, %s36, 1
        %s674 = smul.addr %s673, 4
        %s675 = smul.addr %s674, 4
        %s676 = scalar_lea.vmem %s11, %s675
        %p677 = scmp.lt.s32.totalorder %s36, 1
        %s678 = scalar_select %p677, %s36, 1
        %s679 = scalar_lea.vmem %s12, %s678
        %p680 = scmp.lt.s32.totalorder %s36, 1
        %s681 = scalar_select %p680, %s36, 1
        %s682 = smul.addr %s681, 16
        %s683 = smul.addr %s682, 4
        %s684 = scalar_lea.vmem %s13, %s683
        %p685 = scmp.lt.s32.totalorder %s36, 1
        %s686 = scalar_select %p685, %s36, 1
        %s687 = scalar_lea.vmem %s14, %s686
        %p689 = scmp.eq.s32.totalorder %s36, 0
        // Predicated region
        $region85: #{tex_encoder_forward.1} parent=83 // pred_check
          %p690 = pneg %p689
        $region86: #{tex_encoder_forward.1} parent=83 // pred_check_branch
          %692 = sbr.rel (%p690) target = $region88
        $region87: #{tex_encoder_forward.1} parent=83 // pred_region
          $region89: #{tex_encoder_forward.1} parent=87
            #allocation8 [shape = 's32[1]{0}', space=sflag, size = 0x4, scoped, tag = 'scoped memory for tex_encoder_forward.1']
            %p694 = scmp.lt.u32.totalorder 16, 8
            %p695 = pneg %p694
            // Predicated region
            $region90: #{tex_encoder_forward.1} parent=89 // pred_check
              _
            $region91: #{tex_encoder_forward.1} parent=89 // pred_check_branch
              %697 = sbr.rel (%p694) target = $region93
            $region92: #{tex_encoder_forward.1} parent=89 // pred_region
              %s712 = sand.u32 16, 7
              %p713 = scmp.eq.s32.totalorder %s712, 0
              // Predicated region
              $region105: #{tex_encoder_forward.1} parent=92 // pred_check
                %p714 = pneg %p713
              $region106: #{tex_encoder_forward.1} parent=92 // pred_check_branch
                %716 = sbr.rel (%p714) target = $region108
              $region107: #{tex_encoder_forward.1} parent=92 // pred_region
                loop: start=0, step=1, limit=1
                $region109: #{tex_encoder_forward.1} parent=107 // loop_pre_header
                  _
                $region110: #{tex_encoder_forward.1} parent=107 // loop_header
                  %s718 = sphi 0, %s722
                  %p719 = scmp.ge.s32.totalorder %s718, 1
                  %s723 = sphi %s1, %s1
                  %s724 = sphi [#allocation2], [#allocation2]
                $region111: #{tex_encoder_forward.1} parent=107 // loop_header_branch
                  %721 = sbr.rel (%p719) target = $region115
                $region112: #{tex_encoder_forward.1} parent=107 // loop_body
                  %v725 = vld [vmem:[%s723] sm:$0xff]
                  %726 = vst [vmem:[%s724] sm:$0xff] %v725
                  %v727 = vld [vmem:[%s723 + $0x8] sm:$0xff]
                  %728 = vst [vmem:[%s724 + $0x8] sm:$0xff] %v727
                $region113: #{tex_encoder_forward.1} parent=107 // loop_footer
                  %s722 = sadd.s32 1, %s718
                $region114: #{tex_encoder_forward.1} parent=107 // loop_footer_branch
                  %717 = sbr.rel target = $region110
                $region115: #{tex_encoder_forward.1} parent=107 // loop_exit
                  _
              $region108: #{tex_encoder_forward.1} parent=92 // pred_fallthru
                _
              %p729 = pneg %p713
              // Predicated region
              $region116: #{tex_encoder_forward.1} parent=92 // pred_check
                _
              $region117: #{tex_encoder_forward.1} parent=92 // pred_check_branch
                %731 = sbr.rel (%p713) target = $region119
              $region118: #{tex_encoder_forward.1} parent=92 // pred_region
                %s732 = sand.u32 16, 7
              $region119: #{tex_encoder_forward.1} parent=92 // pred_fallthru
                _
            $region93: #{tex_encoder_forward.1} parent=89 // pred_fallthru
              _
            // Predicated region
            $region94: #{tex_encoder_forward.1} parent=89 // pred_check
              %p698 = pneg %p694
            $region95: #{tex_encoder_forward.1} parent=89 // pred_check_branch
              %700 = sbr.rel (%p698) target = $region97
            $region96: #{tex_encoder_forward.1} parent=89 // pred_region
              %s701 = sshllo.u32 0, 16
              loop: start=0, step=1, limit=1
              $region98: #{tex_encoder_forward.1} parent=96 // loop_pre_header
                _
              $region99: #{tex_encoder_forward.1} parent=96 // loop_header
                %s703 = sphi 0, %s707
                %p704 = scmp.ge.s32.totalorder %s703, 1
                %s708 = sphi %s1, %s1
                %s709 = sphi [#allocation2], [#allocation2]
              $region100: #{tex_encoder_forward.1} parent=96 // loop_header_branch
                %706 = sbr.rel (%p704) target = $region104
              $region101: #{tex_encoder_forward.1} parent=96 // loop_body
                %v710 = vld [vmem:[%s708] sm:%s701]
                %711 = vst [vmem:[%s709] sm:%s701] %v710
              $region102: #{tex_encoder_forward.1} parent=96 // loop_footer
                %s707 = sadd.s32 1, %s703
              $region103: #{tex_encoder_forward.1} parent=96 // loop_footer_branch
                %702 = sbr.rel target = $region99
              $region104: #{tex_encoder_forward.1} parent=96 // loop_exit
                _
            $region97: #{tex_encoder_forward.1} parent=89 // pred_fallthru
              _
            // Predicated region
            $region120: #{tex_encoder_forward.1} parent=89 // pred_check
              _
            $region121: #{tex_encoder_forward.1} parent=89 // pred_check_branch
              %735 = sbr.rel (0) target = $region123
            $region122: #{tex_encoder_forward.1} parent=89 // pred_region
              %736 = vsyncadd [#allocation8], 256
            $region123: #{tex_encoder_forward.1} parent=89 // pred_fallthru
              _
            %s737 = smul.u32 16, 1
            %s738 = sshll.u32 %s737, 4
            %739 = dma.done [#allocation8], %s738
        $region88: #{tex_encoder_forward.1} parent=83 // pred_fallthru
          _
        %v740 = vld [vmem:[#allocation2] sm:$0xff]
        %v741 = vld [vmem:[#allocation2 + $0x8] sm:$0xff]
        %v742 = vld [vmem:[%s646] sm:$0x1]
        %v743 = vld [vmem:[%s649] sm:$0x1]
        %vm744 = vcmask 261120
        %v745 = vsel %vm744, %v740, 0.0
        %746 = vadd.xlane.f32.xlu0 %v745
        %v747 = vpop.xlane.xlu0 %746
        %v748 = vsel %vm744, %v741, 0.0
        %749 = vadd.xlane.f32.xlu0 %v748
        %v750 = vpop.xlane.xlu0 %749
        %v751 = vrcp.pop 32.0
        %v752 = vmul.f32 %v747, %v751
        %v753 = vmul.f32 %v750, %v751
        %v754 = vsub.f32 %v740, %v752
        %v755 = vsub.f32 %v741, %v753
        %v756 = vmul.f32 %v754, %v754
        %v757 = vmul.f32 %v755, %v755
        %v758 = vsel %vm744, %v756, 0.0
        %759 = vadd.xlane.f32.xlu0 %v758
        %v760 = vpop.xlane.xlu0 %759
        %v761 = vsel %vm744, %v757, 0.0
        %762 = vadd.xlane.f32.xlu0 %v761
        %v763 = vpop.xlane.xlu0 %762
        %v764 = vmul.f32 %v760, %v751
        %v765 = vmul.f32 %v763, %v751
        %v766 = vadd.f32 %v764, 1e-05
        %v767 = vadd.f32 %v765, 1e-05
        %v768 = vrsqrt.pop %v766
        %v769 = vrsqrt.pop %v767
        %v770 = vmul.f32 %v754, %v768
        %v771 = vmul.f32 %v755, %v769
        %v773 = vlaneseq
        %v774 = vshrl.u32 %v773, 7
        %v775 = vsub.s32 0, %v774
        %v776 = vrot.slane %v742, %v775
        %v778 = vmul.f32 %v770, %v776
        %v779 = vmul.f32 %v771, %v776
        %v781 = vlaneseq
        %v782 = vshrl.u32 %v781, 7
        %v783 = vsub.s32 0, %v782
        %v784 = vrot.slane %v743, %v783
        %v786 = vadd.f32 %v778, %v784
        %v787 = vadd.f32 %v779, %v784
        %v788 = vpack.c.bf16 %v787, %v786
        %v789 = vld [vmem:[%s654] sm:$0xf]
        %v790 = vld [vmem:[%s654 + $0x4] sm:$0xf]
        %v791 = vld [vmem:[%s654 + $0x8] sm:$0xf]
        %v792 = vld [vmem:[%s654 + $0xc] sm:$0xf]
        %v793 = vld [vmem:[%s657] sm:$0x1]
        %v795 = vlaneseq
        %v796 = vshrl.u32 %v795, 7
        %v797 = vsub.s32 0, %v796
        %v798 = vrot.slane %v793, %v797
        %v804 = vunpack.c.l.b16 %v789
        %v805 = vunpack.c.l.b16 %v790
        %v806 = vunpack.c.l.b16 %v791
        %v807 = vunpack.c.l.b16 %v792
        %v808 = vpack.c.b16 %v805, %v804
        %v809 = vpack.c.b16 %v807, %v806
        %v813 = vsel %vm744, %v788, 0
        %815 = vmatprep.subr.bf16.mxu0 0
        %816 = vmatpush1.bf16.msra.mxu0 %v808
        %817 = vmatprep.subr.bf16.mxu0 0
        %818 = vmatpush1.bf16.msra.mxu0 %v809
        %819 = vmatprep.subr.bf16.mxu0 0
        %820 = vmatpush1.bf16.msra.mxu0 0
        %821 = vmatprep.subr.bf16.mxu0 0
        %822 = vmatpush1.bf16.msra.mxu0 0
        %823 = vmatprep.subr.bf16.mxu0 0
        %824 = vmatpush1.bf16.msra.mxu0 0
        %825 = vmatprep.subr.bf16.mxu0 0
        %826 = vmatpush1.bf16.msra.mxu0 0
        %827 = vmatprep.subr.bf16.mxu0 0
        %828 = vmatpush1.bf16.msra.mxu0 0
        %829 = vmatprep.subr.bf16.mxu0 0
        %830 = vmatpush1.bf16.msra.mxu0 0
        %831 = vmatprep.subr.bf16.mxu0 0
        %832 = vmatpush1.bf16.msra.mxu0 0
        %833 = vmatprep.subr.bf16.mxu0 0
        %834 = vmatpush1.bf16.msra.mxu0 0
        %835 = vmatprep.subr.bf16.mxu0 0
        %836 = vmatpush1.bf16.msra.mxu0 0
        %837 = vmatprep.subr.bf16.mxu0 0
        %838 = vmatpush1.bf16.msra.mxu0 0
        %839 = vmatprep.subr.bf16.mxu0 0
        %840 = vmatpush1.bf16.msra.mxu0 0
        %841 = vmatprep.subr.bf16.mxu0 0
        %842 = vmatpush1.bf16.msra.mxu0 0
        %843 = vmatprep.subr.bf16.mxu0 0
        %844 = vmatpush1.bf16.msra.mxu0 0
        %845 = vmatprep.subr.bf16.mxu0 0
        %846 = vmatpush1.bf16.msra.mxu0 0
        %847 = vmatprep.mubr.bf16.mxu0 0
        %848 = vmatmul.mubr.bf16.gmra.mrb[0].mxu0 %v813
        %v849 = vpop.f32.mrb[0].mxu0
        %v850 = vadd.f32 %v798, %v849
        %v851 = vpop.f32.mrb[0].mxu0
        %v852 = vpop.f32.mrb[0].mxu0
        %v853 = vadd.f32 %v798, %v852
        %v854 = vpop.f32.mrb[0].mxu0
        %855 = vdwg.mxu0
        %v856 = vmul.f32 %v850, 0.35355338
        %v857 = vmul.f32 %v853, 0.35355338
        %v858 = vpack.c.bf16 %v857, %v856
        %v859 = vpack.c.bf16 %v853, %v850
        %v860 = vld [vmem:[%s2] sm:$0xff]
        %v861 = vld [vmem:[%s662] sm:$0xf]
        %v862 = vld [vmem:[%s662 + $0x4] sm:$0xf]
        %v863 = vld [vmem:[%s662 + $0x8] sm:$0xf]
        %v864 = vld [vmem:[%s662 + $0xc] sm:$0xf]
        %v866 = vunpack.c.l.b16 %v858
        %v867 = vunpack.c.h.b16 %v858
        %v868 = vpack.c.b16 %v866, %v866
        %v869 = vpack.c.b16 %v867, %v867
        %v871 = vunpack.c.l.b16 %v859
        %v872 = vunpack.c.h.b16 %v859
        %v873 = vpack.c.b16 %v871, %v871
        %874 = vrot.lane.b32.xlu0 %v873, 96
        %v875 = vpop.permute.xlu0 %874
        %vm876 = vcmask 64512
        %v878 = vsel %vm876, %v868, 0
        %v881 = vsel %vm876, %v875, 0
        %883 = vmatprep.subr.bf16.mxu0 0
        %884 = vmatpush1.bf16.xpose.msra.mxu0 %v881
        %885 = vmatprep.subr.bf16.mxu0 0
        %886 = vmatpush1.bf16.xpose.msra.mxu0 0
        %887 = vmatprep.subr.bf16.mxu0 0
        %888 = vmatpush1.bf16.xpose.msra.mxu0 0
        %889 = vmatprep.subr.bf16.mxu0 0
        %890 = vmatpush1.bf16.xpose.msra.mxu0 0
        %891 = vmatprep.subr.bf16.mxu0 0
        %892 = vmatpush1.bf16.xpose.msra.mxu0 0
        %893 = vmatprep.subr.bf16.mxu0 0
        %894 = vmatpush1.bf16.xpose.msra.mxu0 0
        %895 = vmatprep.subr.bf16.mxu0 0
        %896 = vmatpush1.bf16.xpose.msra.mxu0 0
        %897 = vmatprep.subr.bf16.mxu0 0
        %898 = vmatpush1.bf16.xpose.msra.mxu0 0
        %899 = vmatprep.subr.bf16.mxu0 0
        %900 = vmatpush1.bf16.xpose.msra.mxu0 0
        %901 = vmatprep.subr.bf16.mxu0 0
        %902 = vmatpush1.bf16.xpose.msra.mxu0 0
        %903 = vmatprep.subr.bf16.mxu0 0
        %904 = vmatpush1.bf16.xpose.msra.mxu0 0
        %905 = vmatprep.subr.bf16.mxu0 0
        %906 = vmatpush1.bf16.xpose.msra.mxu0 0
        %907 = vmatprep.subr.bf16.mxu0 0
        %908 = vmatpush1.bf16.xpose.msra.mxu0 0
        %909 = vmatprep.subr.bf16.mxu0 0
        %910 = vmatpush1.bf16.xpose.msra.mxu0 0
        %911 = vmatprep.subr.bf16.mxu0 0
        %912 = vmatpush1.bf16.xpose.msra.mxu0 0
        %913 = vmatprep.subr.bf16.mxu0 0
        %914 = vmatpush1.bf16.xpose.msra.mxu0 0
        %915 = vmatprep.mubr.bf16.mxu0 0
        %916 = vmatmul.mubr.bf16.gmra.mrb[0].mxu0 %v878
        %v917 = vpop.f32.mrb[0].mxu0
        %v918 = vadd.f32 %v860, %v917
        %v919 = vpop.f32.mrb[0].mxu0
        %v920 = vpop.f32.mrb[0].mxu0
        %v921 = vpop.f32.mrb[0].mxu0
        %922 = vdwg.mxu0
        %v923 = vpack.c.b16 %v872, %v872
        %924 = vrot.lane.b32.xlu0 %v923, 96
        %v925 = vpop.permute.xlu0 %924
        %v927 = vsel %vm876, %v869, 0
        %v930 = vsel %vm876, %v925, 0
        %932 = vmatprep.subr.bf16.mxu0 0
        %933 = vmatpush1.bf16.xpose.msra.mxu0 %v930
        %934 = vmatprep.subr.bf16.mxu0 0
        %935 = vmatpush1.bf16.xpose.msra.mxu0 0
        %936 = vmatprep.subr.bf16.mxu0 0
        %937 = vmatpush1.bf16.xpose.msra.mxu0 0
        %938 = vmatprep.subr.bf16.mxu0 0
        %939 = vmatpush1.bf16.xpose.msra.mxu0 0
        %940 = vmatprep.subr.bf16.mxu0 0
        %941 = vmatpush1.bf16.xpose.msra.mxu0 0
        %942 = vmatprep.subr.bf16.mxu0 0
        %943 = vmatpush1.bf16.xpose.msra.mxu0 0
        %944 = vmatprep.subr.bf16.mxu0 0
        %945 = vmatpush1.bf16.xpose.msra.mxu0 0
        %946 = vmatprep.subr.bf16.mxu0 0
        %947 = vmatpush1.bf16.xpose.msra.mxu0 0
        %948 = vmatprep.subr.bf16.mxu0 0
        %949 = vmatpush1.bf16.xpose.msra.mxu0 0
        %950 = vmatprep.subr.bf16.mxu0 0
        %951 = vmatpush1.bf16.xpose.msra.mxu0 0
        %952 = vmatprep.subr.bf16.mxu0 0
        %953 = vmatpush1.bf16.xpose.msra.mxu0 0
        %954 = vmatprep.subr.bf16.mxu0 0
        %955 = vmatpush1.bf16.xpose.msra.mxu0 0
        %956 = vmatprep.subr.bf16.mxu0 0
        %957 = vmatpush1.bf16.xpose.msra.mxu0 0
        %958 = vmatprep.subr.bf16.mxu0 0
        %959 = vmatpush1.bf16.xpose.msra.mxu0 0
        %960 = vmatprep.subr.bf16.mxu0 0
        %961 = vmatpush1.bf16.xpose.msra.mxu0 0
        %962 = vmatprep.subr.bf16.mxu0 0
        %963 = vmatpush1.bf16.xpose.msra.mxu0 0
        %964 = vmatprep.mubr.bf16.mxu0 0
        %965 = vmatmul.mubr.bf16.gmra.mrb[0].mxu0 %v927
        %v966 = vpop.f32.mrb[0].mxu0
        %v967 = vadd.f32 %v860, %v966
        %v968 = vpop.f32.mrb[0].mxu0
        %v969 = vpop.f32.mrb[0].mxu0
        %v970 = vpop.f32.mrb[0].mxu0
        %971 = vdwg.mxu0
        %v972 = vsel %vm876, %v918, -inf
        %973 = vmax.xlane.f32.xlu0 %v972
        %v974 = vpop.xlane.xlu0 %973
        %v975 = vsel %vm876, %v967, -inf
        %976 = vmax.xlane.f32.xlu0 %v975
        %v977 = vpop.xlane.xlu0 %976
        %v978 = vsub.f32 %v918, %v974
        %v979 = vsub.f32 %v967, %v977
        %v980 = vmul.f32 %v978, 1.442695
        %v981 = vpow.pop %v980
        %v982 = vmul.f32 %v979, 1.442695
        %v983 = vpow.pop %v982
        %v984 = vsel %vm876, %v981, 0.0
        %985 = vadd.xlane.f32.xlu0 %v984
        %v986 = vpop.xlane.xlu0 %985
        %v987 = vsel %vm876, %v983, 0.0
        %988 = vadd.xlane.f32.xlu0 %v987
        %v989 = vpop.xlane.xlu0 %988
        %v990 = vrcp.pop %v986
        %v991 = vrcp.pop %v989
        %v992 = vmul.f32 %v981, %v990
        %v993 = vmul.f32 %v983, %v991
        %v994 = vpack.c.bf16 %v992, %v992
        %v995 = vpack.c.bf16 %v993, %v993
        %996 = vrot.lane.b32.xlu0 %v873, 64
        %v997 = vpop.permute.xlu0 %996
        %v999 = vsel %vm876, %v994, 0
        %vm1001 = vcmask 1043456
        %v1003 = vsel %vm1001, %v997, 0
        %1005 = vmatprep.subr.bf16.mxu0 0
        %1006 = vmatpush1.bf16.msra.mxu0 %v1003
        %1007 = vmatprep.subr.bf16.mxu0 0
        %1008 = vmatpush1.bf16.msra.mxu0 0
        %1009 = vmatprep.subr.bf16.mxu0 0
        %1010 = vmatpush1.bf16.msra.mxu0 0
        %1011 = vmatprep.subr.bf16.mxu0 0
        %1012 = vmatpush1.bf16.msra.mxu0 0
        %1013 = vmatprep.subr.bf16.mxu0 0
        %1014 = vmatpush1.bf16.msra.mxu0 0
        %1015 = vmatprep.subr.bf16.mxu0 0
        %1016 = vmatpush1.bf16.msra.mxu0 0
        %1017 = vmatprep.subr.bf16.mxu0 0
        %1018 = vmatpush1.bf16.msra.mxu0 0
        %1019 = vmatprep.subr.bf16.mxu0 0
        %1020 = vmatpush1.bf16.msra.mxu0 0
        %1021 = vmatprep.subr.bf16.mxu0 0
        %1022 = vmatpush1.bf16.msra.mxu0 0
        %1023 = vmatprep.subr.bf16.mxu0 0
        %1024 = vmatpush1.bf16.msra.mxu0 0
        %1025 = vmatprep.subr.bf16.mxu0 0
        %1026 = vmatpush1.bf16.msra.mxu0 0
        %1027 = vmatprep.subr.bf16.mxu0 0
        %1028 = vmatpush1.bf16.msra.mxu0 0
        %1029 = vmatprep.subr.bf16.mxu0 0
        %1030 = vmatpush1.bf16.msra.mxu0 0
        %1031 = vmatprep.subr.bf16.mxu0 0
        %1032 = vmatpush1.bf16.msra.mxu0 0
        %1033 = vmatprep.subr.bf16.mxu0 0
        %1034 = vmatpush1.bf16.msra.mxu0 0
        %1035 = vmatprep.subr.bf16.mxu0 0
        %1036 = vmatpush1.bf16.msra.mxu0 0
        %1037 = vmatprep.mubr.bf16.mxu0 0
        %1038 = vmatmul.mubr.bf16.gmra.mrb[0].mxu0 %v999
        %v1039 = vpop.f32.mrb[0].mxu0
        %v1040 = vadd.f32 0.0, %v1039
        %v1041 = vpop.f32.mrb[0].mxu0
        %v1042 = vpop.f32.mrb[0].mxu0
        %v1043 = vpop.f32.mrb[0].mxu0
        %1044 = vdwg.mxu0
        %1045 = vrot.lane.b32.xlu0 %v923, 64
        %v1046 = vpop.permute.xlu0 %1045
        %v1048 = vsel %vm876, %v995, 0
        %v1051 = vsel %vm1001, %v1046, 0
        %1053 = vmatprep.subr.bf16.mxu0 0
        %1054 = vmatpush1.bf16.msra.mxu0 %v1051
        %1055 = vmatprep.subr.bf16.mxu0 0
        %1056 = vmatpush1.bf16.msra.mxu0 0
        %1057 = vmatprep.subr.bf16.mxu0 0
        %1058 = vmatpush1.bf16.msra.mxu0 0
        %1059 = vmatprep.subr.bf16.mxu0 0
        %1060 = vmatpush1.bf16.msra.mxu0 0
        %1061 = vmatprep.subr.bf16.mxu0 0
        %1062 = vmatpush1.bf16.msra.mxu0 0
        %1063 = vmatprep.subr.bf16.mxu0 0
        %1064 = vmatpush1.bf16.msra.mxu0 0
        %1065 = vmatprep.subr.bf16.mxu0 0
        %1066 = vmatpush1.bf16.msra.mxu0 0
        %1067 = vmatprep.subr.bf16.mxu0 0
        %1068 = vmatpush1.bf16.msra.mxu0 0
        %1069 = vmatprep.subr.bf16.mxu0 0
        %1070 = vmatpush1.bf16.msra.mxu0 0
        %1071 = vmatprep.subr.bf16.mxu0 0
        %1072 = vmatpush1.bf16.msra.mxu0 0
        %1073 = vmatprep.subr.bf16.mxu0 0
        %1074 = vmatpush1.bf16.msra.mxu0 0
        %1075 = vmatprep.subr.bf16.mxu0 0
        %1076 = vmatpush1.bf16.msra.mxu0 0
        %1077 = vmatprep.subr.bf16.mxu0 0
        %1078 = vmatpush1.bf16.msra.mxu0 0
        %1079 = vmatprep.subr.bf16.mxu0 0
        %1080 = vmatpush1.bf16.msra.mxu0 0
        %1081 = vmatprep.subr.bf16.mxu0 0
        %1082 = vmatpush1.bf16.msra.mxu0 0
        %1083 = vmatprep.subr.bf16.mxu0 0
        %1084 = vmatpush1.bf16.msra.mxu0 0
        %1085 = vmatprep.mubr.bf16.mxu0 0
        %1086 = vmatmul.mubr.bf16.gmra.mrb[0].mxu0 %v1048
        %v1087 = vpop.f32.mrb[0].mxu0
        %v1088 = vadd.f32 0.0, %v1087
        %v1089 = vpop.f32.mrb[0].mxu0
        %v1090 = vpop.f32.mrb[0].mxu0
        %v1091 = vpop.f32.mrb[0].mxu0
        %1092 = vdwg.mxu0
        %v1093 = vpack.c.bf16 %v1040, %v1040
        %v1094 = vpack.c.bf16 %v1088, %v1088
        %1095 = vrot.lane.b32.xlu0 %v868, 120
        %v1096 = vpop.permute.xlu0 %1095
        %1097 = vrot.lane.b32.xlu0 %v873, 88
        %v1098 = vpop.permute.xlu0 %1097
        %v1100 = vsel %vm876, %v1096, 0
        %v1103 = vsel %vm876, %v1098, 0
        %1105 = vmatprep.subr.bf16.mxu0 0
        %1106 = vmatpush1.bf16.xpose.msra.mxu0 %v1103
        %1107 = vmatprep.subr.bf16.mxu0 0
        %1108 = vmatpush1.bf16.xpose.msra.mxu0 0
        %1109 = vmatprep.subr.bf16.mxu0 0
        %1110 = vmatpush1.bf16.xpose.msra.mxu0 0
        %1111 = vmatprep.subr.bf16.mxu0 0
        %1112 = vmatpush1.bf16.xpose.msra.mxu0 0
        %1113 = vmatprep.subr.bf16.mxu0 0
        %1114 = vmatpush1.bf16.xpose.msra.mxu0 0
        %1115 = vmatprep.subr.bf16.mxu0 0
        %1116 = vmatpush1.bf16.xpose.msra.mxu0 0
        %1117 = vmatprep.subr.bf16.mxu0 0
        %1118 = vmatpush1.bf16.xpose.msra.mxu0 0
        %1119 = vmatprep.subr.bf16.mxu0 0
        %1120 = vmatpush1.bf16.xpose.msra.mxu0 0
        %1121 = vmatprep.subr.bf16.mxu0 0
        %1122 = vmatpush1.bf16.xpose.msra.mxu0 0
        %1123 = vmatprep.subr.bf16.mxu0 0
        %1124 = vmatpush1.bf16.xpose.msra.mxu0 0
        %1125 = vmatprep.subr.bf16.mxu0 0
        %1126 = vmatpush1.bf16.xpose.msra.mxu0 0
        %1127 = vmatprep.subr.bf16.mxu0 0
        %1128 = vmatpush1.bf16.xpose.msra.mxu0 0
        %1129 = vmatprep.subr.bf16.mxu0 0
        %1130 = vmatpush1.bf16.xpose.msra.mxu0 0
        %1131 = vmatprep.subr.bf16.mxu0 0
        %1132 = vmatpush1.bf16.xpose.msra.mxu0 0
        %1133 = vmatprep.subr.bf16.mxu0 0
        %1134 = vmatpush1.bf16.xpose.msra.mxu0 0
        %1135 = vmatprep.subr.bf16.mxu0 0
        %1136 = vmatpush1.bf16.xpose.msra.mxu0 0
        %1137 = vmatprep.mubr.bf16.mxu0 0
        %1138 = vmatmul.mubr.bf16.gmra.mrb[0].mxu0 %v1100
        %v1139 = vpop.f32.mrb[0].mxu0
        %v1140 = vadd.f32 %v860, %v1139
        %v1141 = vpop.f32.mrb[0].mxu0
        %v1142 = vpop.f32.mrb[0].mxu0
        %v1143 = vpop.f32.mrb[0].mxu0
        %1144 = vdwg.mxu0
        %1145 = vrot.lane.b32.xlu0 %v869, 120
        %v1146 = vpop.permute.xlu0 %1145
        %1147 = vrot.lane.b32.xlu0 %v923, 88
        %v1148 = vpop.permute.xlu0 %1147
        %v1150 = vsel %vm876, %v1146, 0
        %v1153 = vsel %vm876, %v1148, 0
        %1155 = vmatprep.subr.bf16.mxu0 0
        %1156 = vmatpush1.bf16.xpose.msra.mxu0 %v1153
        %1157 = vmatprep.subr.bf16.mxu0 0
        %1158 = vmatpush1.bf16.xpose.msra.mxu0 0
        %1159 = vmatprep.subr.bf16.mxu0 0
        %1160 = vmatpush1.bf16.xpose.msra.mxu0 0
        %1161 = vmatprep.subr.bf16.mxu0 0
        %1162 = vmatpush1.bf16.xpose.msra.mxu0 0
        %1163 = vmatprep.subr.bf16.mxu0 0
        %1164 = vmatpush1.bf16.xpose.msra.mxu0 0
        %1165 = vmatprep.subr.bf16.mxu0 0
        %1166 = vmatpush1.bf16.xpose.msra.mxu0 0
        %1167 = vmatprep.subr.bf16.mxu0 0
        %1168 = vmatpush1.bf16.xpose.msra.mxu0 0
        %1169 = vmatprep.subr.bf16.mxu0 0
        %1170 = vmatpush1.bf16.xpose.msra.mxu0 0
        %1171 = vmatprep.subr.bf16.mxu0 0
        %1172 = vmatpush1.bf16.xpose.msra.mxu0 0
        %1173 = vmatprep.subr.bf16.mxu0 0
        %1174 = vmatpush1.bf16.xpose.msra.mxu0 0
        %1175 = vmatprep.subr.bf16.mxu0 0
        %1176 = vmatpush1.bf16.xpose.msra.mxu0 0
        %1177 = vmatprep.subr.bf16.mxu0 0
        %1178 = vmatpush1.bf16.xpose.msra.mxu0 0
        %1179 = vmatprep.subr.bf16.mxu0 0
        %1180 = vmatpush1.bf16.xpose.msra.mxu0 0
        %1181 = vmatprep.subr.bf16.mxu0 0
        %1182 = vmatpush1.bf16.xpose.msra.mxu0 0
        %1183 = vmatprep.subr.bf16.mxu0 0
        %1184 = vmatpush1.bf16.xpose.msra.mxu0 0
        %1185 = vmatprep.subr.bf16.mxu0 0
        %1186 = vmatpush1.bf16.xpose.msra.mxu0 0
        %1187 = vmatprep.mubr.bf16.mxu0 0
        %1188 = vmatmul.mubr.bf16.gmra.mrb[0].mxu0 %v1150
        %v1189 = vpop.f32.mrb[0].mxu0
        %v1190 = vadd.f32 %v860, %v1189
        %v1191 = vpop.f32.mrb[0].mxu0
        %v1192 = vpop.f32.mrb[0].mxu0
        %v1193 = vpop.f32.mrb[0].mxu0
        %1194 = vdwg.mxu0
        %v1195 = vsel %vm876, %v1140, -inf
        %1196 = vmax.xlane.f32.xlu0 %v1195
        %v1197 = vpop.xlane.xlu0 %1196
        %v1198 = vsel %vm876, %v1190, -inf
        %1199 = vmax.xlane.f32.xlu0 %v1198
        %v1200 = vpop.xlane.xlu0 %1199
        %v1201 = vsub.f32 %v1140, %v1197
        %v1202 = vsub.f32 %v1190, %v1200
        %v1203 = vmul.f32 %v1201, 1.442695
        %v1204 = vpow.pop %v1203
        %v1205 = vmul.f32 %v1202, 1.442695
        %v1206 = vpow.pop %v1205
        %v1207 = vsel %vm876, %v1204, 0.0
        %1208 = vadd.xlane.f32.xlu0 %v1207
        %v1209 = vpop.xlane.xlu0 %1208
        %v1210 = vsel %vm876, %v1206, 0.0
        %1211 = vadd.xlane.f32.xlu0 %v1210
        %v1212 = vpop.xlane.xlu0 %1211
        %v1213 = vrcp.pop %v1209
        %v1214 = vrcp.pop %v1212
        %v1215 = vmul.f32 %v1204, %v1213
        %v1216 = vmul.f32 %v1206, %v1214
        %v1217 = vpack.c.bf16 %v1215, %v1215
        %v1218 = vpack.c.bf16 %v1216, %v1216
        %1219 = vrot.lane.b32.xlu0 %v873, 56
        %v1220 = vpop.permute.xlu0 %1219
        %v1222 = vsel %vm876, %v1217, 0
        %v1225 = vsel %vm1001, %v1220, 0
        %1227 = vmatprep.subr.bf16.mxu0 0
        %1228 = vmatpush1.bf16.msra.mxu0 %v1225
        %1229 = vmatprep.subr.bf16.mxu0 0
        %1230 = vmatpush1.bf16.msra.mxu0 0
        %1231 = vmatprep.subr.bf16.mxu0 0
        %1232 = vmatpush1.bf16.msra.mxu0 0
        %1233 = vmatprep.subr.bf16.mxu0 0
        %1234 = vmatpush1.bf16.msra.mxu0 0
        %1235 = vmatprep.subr.bf16.mxu0 0
        %1236 = vmatpush1.bf16.msra.mxu0 0
        %1237 = vmatprep.subr.bf16.mxu0 0
        %1238 = vmatpush1.bf16.msra.mxu0 0
        %1239 = vmatprep.subr.bf16.mxu0 0
        %1240 = vmatpush1.bf16.msra.mxu0 0
        %1241 = vmatprep.subr.bf16.mxu0 0
        %1242 = vmatpush1.bf16.msra.mxu0 0
        %1243 = vmatprep.subr.bf16.mxu0 0
        %1244 = vmatpush1.bf16.msra.mxu0 0
        %1245 = vmatprep.subr.bf16.mxu0 0
        %1246 = vmatpush1.bf16.msra.mxu0 0
        %1247 = vmatprep.subr.bf16.mxu0 0
        %1248 = vmatpush1.bf16.msra.mxu0 0
        %1249 = vmatprep.subr.bf16.mxu0 0
        %1250 = vmatpush1.bf16.msra.mxu0 0
        %1251 = vmatprep.subr.bf16.mxu0 0
        %1252 = vmatpush1.bf16.msra.mxu0 0
        %1253 = vmatprep.subr.bf16.mxu0 0
        %1254 = vmatpush1.bf16.msra.mxu0 0
        %1255 = vmatprep.subr.bf16.mxu0 0
        %1256 = vmatpush1.bf16.msra.mxu0 0
        %1257 = vmatprep.subr.bf16.mxu0 0
        %1258 = vmatpush1.bf16.msra.mxu0 0
        %1259 = vmatprep.mubr.bf16.mxu0 0
        %1260 = vmatmul.mubr.bf16.gmra.mrb[0].mxu0 %v1222
        %v1261 = vpop.f32.mrb[0].mxu0
        %v1262 = vadd.f32 0.0, %v1261
        %v1263 = vpop.f32.mrb[0].mxu0
        %v1264 = vpop.f32.mrb[0].mxu0
        %v1265 = vpop.f32.mrb[0].mxu0
        %1266 = vdwg.mxu0
        %1267 = vrot.lane.b32.xlu0 %v923, 56
        %v1268 = vpop.permute.xlu0 %1267
        %v1270 = vsel %vm876, %v1218, 0
        %v1273 = vsel %vm1001, %v1268, 0
        %1275 = vmatprep.subr.bf16.mxu0 0
        %1276 = vmatpush1.bf16.msra.mxu0 %v1273
        %1277 = vmatprep.subr.bf16.mxu0 0
        %1278 = vmatpush1.bf16.msra.mxu0 0
        %1279 = vmatprep.subr.bf16.mxu0 0
        %1280 = vmatpush1.bf16.msra.mxu0 0
        %1281 = vmatprep.subr.bf16.mxu0 0
        %1282 = vmatpush1.bf16.msra.mxu0 0
        %1283 = vmatprep.subr.bf16.mxu0 0
        %1284 = vmatpush1.bf16.msra.mxu0 0
        %1285 = vmatprep.subr.bf16.mxu0 0
        %1286 = vmatpush1.bf16.msra.mxu0 0
        %1287 = vmatprep.subr.bf16.mxu0 0
        %1288 = vmatpush1.bf16.msra.mxu0 0
        %1289 = vmatprep.subr.bf16.mxu0 0
        %1290 = vmatpush1.bf16.msra.mxu0 0
        %1291 = vmatprep.subr.bf16.mxu0 0
        %1292 = vmatpush1.bf16.msra.mxu0 0
        %1293 = vmatprep.subr.bf16.mxu0 0
        %1294 = vmatpush1.bf16.msra.mxu0 0
        %1295 = vmatprep.subr.bf16.mxu0 0
        %1296 = vmatpush1.bf16.msra.mxu0 0
        %1297 = vmatprep.subr.bf16.mxu0 0
        %1298 = vmatpush1.bf16.msra.mxu0 0
        %1299 = vmatprep.subr.bf16.mxu0 0
        %1300 = vmatpush1.bf16.msra.mxu0 0
        %1301 = vmatprep.subr.bf16.mxu0 0
        %1302 = vmatpush1.bf16.msra.mxu0 0
        %1303 = vmatprep.subr.bf16.mxu0 0
        %1304 = vmatpush1.bf16.msra.mxu0 0
        %1305 = vmatprep.subr.bf16.mxu0 0
        %1306 = vmatpush1.bf16.msra.mxu0 0
        %1307 = vmatprep.mubr.bf16.mxu0 0
        %1308 = vmatmul.mubr.bf16.gmra.mrb[0].mxu0 %v1270
        %v1309 = vpop.f32.mrb[0].mxu0
        %v1310 = vadd.f32 0.0, %v1309
        %v1311 = vpop.f32.mrb[0].mxu0
        %v1312 = vpop.f32.mrb[0].mxu0
        %v1313 = vpop.f32.mrb[0].mxu0
        %1314 = vdwg.mxu0
        %v1315 = vpack.c.bf16 %v1262, %v1262
        %v1316 = vpack.c.bf16 %v1310, %v1310
        %v1319 = vunpack.c.l.b16 %v1315
        %v1320 = vunpack.c.l.b16 %v1316
        %v1321 = vpack.c.b16 %v1320, %v1319
        %v1323 = vsel %vm876, %v1321, 0
        %v1326 = vsel %vm1001, %v862, 0
        %1328 = vmatprep.subr.bf16.mxu0 0
        %1329 = vmatpush1.bf16.msra.mxu0 %v1326
        %1330 = vmatprep.subr.bf16.mxu0 0
        %1331 = vmatpush1.bf16.msra.mxu0 0
        %1332 = vmatprep.subr.bf16.mxu0 0
        %1333 = vmatpush1.bf16.msra.mxu0 0
        %1334 = vmatprep.subr.bf16.mxu0 0
        %1335 = vmatpush1.bf16.msra.mxu0 0
        %1336 = vmatprep.subr.bf16.mxu0 0
        %1337 = vmatpush1.bf16.msra.mxu0 0
        %1338 = vmatprep.subr.bf16.mxu0 0
        %1339 = vmatpush1.bf16.msra.mxu0 0
        %1340 = vmatprep.subr.bf16.mxu0 0
        %1341 = vmatpush1.bf16.msra.mxu0 0
        %1342 = vmatprep.subr.bf16.mxu0 0
        %1343 = vmatpush1.bf16.msra.mxu0 0
        %1344 = vmatprep.subr.bf16.mxu0 0
        %1345 = vmatpush1.bf16.msra.mxu0 0
        %1346 = vmatprep.subr.bf16.mxu0 0
        %1347 = vmatpush1.bf16.msra.mxu0 0
        %1348 = vmatprep.subr.bf16.mxu0 0
        %1349 = vmatpush1.bf16.msra.mxu0 0
        %1350 = vmatprep.subr.bf16.mxu0 0
        %1351 = vmatpush1.bf16.msra.mxu0 0
        %1352 = vmatprep.subr.bf16.mxu0 0
        %1353 = vmatpush1.bf16.msra.mxu0 0
        %1354 = vmatprep.subr.bf16.mxu0 0
        %1355 = vmatpush1.bf16.msra.mxu0 0
        %1356 = vmatprep.subr.bf16.mxu0 0
        %1357 = vmatpush1.bf16.msra.mxu0 0
        %1358 = vmatprep.subr.bf16.mxu0 0
        %1359 = vmatpush1.bf16.msra.mxu0 0
        %1360 = vmatprep.mubr.bf16.mxu0 0
        %1361 = vmatmul.mubr.bf16.gmra.mrb[0].mxu0 %v1323
        %v1362 = vpop.f32.mrb[0].mxu0
        %v1363 = vadd.f32 0.0, %v1362
        %v1364 = vpop.f32.mrb[0].mxu0
        %v1365 = vpop.f32.mrb[0].mxu0
        %v1366 = vadd.f32 0.0, %v1365
        %v1367 = vpop.f32.mrb[0].mxu0
        %1368 = vdwg.mxu0
        %v1371 = vunpack.c.l.b16 %v1093
        %v1372 = vunpack.c.l.b16 %v1094
        %v1373 = vpack.c.b16 %v1372, %v1371
        %v1375 = vsel %vm876, %v1373, 0
        %v1378 = vsel %vm1001, %v861, 0
        %1380 = vmatprep.subr.bf16.mxu0 0
        %1381 = vmatpush1.bf16.msra.mxu0 %v1378
        %1382 = vmatprep.subr.bf16.mxu0 0
        %1383 = vmatpush1.bf16.msra.mxu0 0
        %1384 = vmatprep.subr.bf16.mxu0 0
        %1385 = vmatpush1.bf16.msra.mxu0 0
        %1386 = vmatprep.subr.bf16.mxu0 0
        %1387 = vmatpush1.bf16.msra.mxu0 0
        %1388 = vmatprep.subr.bf16.mxu0 0
        %1389 = vmatpush1.bf16.msra.mxu0 0
        %1390 = vmatprep.subr.bf16.mxu0 0
        %1391 = vmatpush1.bf16.msra.mxu0 0
        %1392 = vmatprep.subr.bf16.mxu0 0
        %1393 = vmatpush1.bf16.msra.mxu0 0
        %1394 = vmatprep.subr.bf16.mxu0 0
        %1395 = vmatpush1.bf16.msra.mxu0 0
        %1396 = vmatprep.subr.bf16.mxu0 0
        %1397 = vmatpush1.bf16.msra.mxu0 0
        %1398 = vmatprep.subr.bf16.mxu0 0
        %1399 = vmatpush1.bf16.msra.mxu0 0
        %1400 = vmatprep.subr.bf16.mxu0 0
        %1401 = vmatpush1.bf16.msra.mxu0 0
        %1402 = vmatprep.subr.bf16.mxu0 0
        %1403 = vmatpush1.bf16.msra.mxu0 0
        %1404 = vmatprep.subr.bf16.mxu0 0
        %1405 = vmatpush1.bf16.msra.mxu0 0
        %1406 = vmatprep.subr.bf16.mxu0 0
        %1407 = vmatpush1.bf16.msra.mxu0 0
        %1408 = vmatprep.subr.bf16.mxu0 0
        %1409 = vmatpush1.bf16.msra.mxu0 0
        %1410 = vmatprep.subr.bf16.mxu0 0
        %1411 = vmatpush1.bf16.msra.mxu0 0
        %1412 = vmatprep.mubr.bf16.mxu0 0
        %1413 = vmatmul.mubr.bf16.gmra.mrb[0].mxu0 %v1375
        %v1414 = vpop.f32.mrb[0].mxu0
        %v1415 = vadd.f32 %v1363, %v1414
        %v1416 = vpop.f32.mrb[0].mxu0
        %v1417 = vpop.f32.mrb[0].mxu0
        %v1418 = vadd.f32 %v1366, %v1417
        %v1419 = vpop.f32.mrb[0].mxu0
        %1420 = vdwg.mxu0
        %1421 = vrot.lane.b32.xlu0 %v868, 112
        %v1422 = vpop.permute.xlu0 %1421
        %1423 = vrot.lane.b32.xlu0 %v873, 80
        %v1424 = vpop.permute.xlu0 %1423
        %v1426 = vsel %vm876, %v1422, 0
        %v1429 = vsel %vm876, %v1424, 0
        %1431 = vmatprep.subr.bf16.mxu0 0
        %1432 = vmatpush1.bf16.xpose.msra.mxu0 %v1429
        %1433 = vmatprep.subr.bf16.mxu0 0
        %1434 = vmatpush1.bf16.xpose.msra.mxu0 0
        %1435 = vmatprep.subr.bf16.mxu0 0
        %1436 = vmatpush1.bf16.xpose.msra.mxu0 0
        %1437 = vmatprep.subr.bf16.mxu0 0
        %1438 = vmatpush1.bf16.xpose.msra.mxu0 0
        %1439 = vmatprep.subr.bf16.mxu0 0
        %1440 = vmatpush1.bf16.xpose.msra.mxu0 0
        %1441 = vmatprep.subr.bf16.mxu0 0
        %1442 = vmatpush1.bf16.xpose.msra.mxu0 0
        %1443 = vmatprep.subr.bf16.mxu0 0
        %1444 = vmatpush1.bf16.xpose.msra.mxu0 0
        %1445 = vmatprep.subr.bf16.mxu0 0
        %1446 = vmatpush1.bf16.xpose.msra.mxu0 0
        %1447 = vmatprep.subr.bf16.mxu0 0
        %1448 = vmatpush1.bf16.xpose.msra.mxu0 0
        %1449 = vmatprep.subr.bf16.mxu0 0
        %1450 = vmatpush1.bf16.xpose.msra.mxu0 0
        %1451 = vmatprep.subr.bf16.mxu0 0
        %1452 = vmatpush1.bf16.xpose.msra.mxu0 0
        %1453 = vmatprep.subr.bf16.mxu0 0
        %1454 = vmatpush1.bf16.xpose.msra.mxu0 0
        %1455 = vmatprep.subr.bf16.mxu0 0
        %1456 = vmatpush1.bf16.xpose.msra.mxu0 0
        %1457 = vmatprep.subr.bf16.mxu0 0
        %1458 = vmatpush1.bf16.xpose.msra.mxu0 0
        %1459 = vmatprep.subr.bf16.mxu0 0
        %1460 = vmatpush1.bf16.xpose.msra.mxu0 0
        %1461 = vmatprep.subr.bf16.mxu0 0
        %1462 = vmatpush1.bf16.xpose.msra.mxu0 0
        %1463 = vmatprep.mubr.bf16.mxu0 0
        %1464 = vmatmul.mubr.bf16.gmra.mrb[0].mxu0 %v1426
        %v1465 = vpop.f32.mrb[0].mxu0
        %v1466 = vadd.f32 %v860, %v1465
        %v1467 = vpop.f32.mrb[0].mxu0
        %v1468 = vpop.f32.mrb[0].mxu0
        %v1469 = vpop.f32.mrb[0].mxu0
        %1470 = vdwg.mxu0
        %1471 = vrot.lane.b32.xlu0 %v869, 112
        %v1472 = vpop.permute.xlu0 %1471
        %1473 = vrot.lane.b32.xlu0 %v923, 80
        %v1474 = vpop.permute.xlu0 %1473
        %v1476 = vsel %vm876, %v1472, 0
        %v1479 = vsel %vm876, %v1474, 0
        %1481 = vmatprep.subr.bf16.mxu0 0
        %1482 = vmatpush1.bf16.xpose.msra.mxu0 %v1479
        %1483 = vmatprep.subr.bf16.mxu0 0
        %1484 = vmatpush1.bf16.xpose.msra.mxu0 0
        %1485 = vmatprep.subr.bf16.mxu0 0
        %1486 = vmatpush1.bf16.xpose.msra.mxu0 0
        %1487 = vmatprep.subr.bf16.mxu0 0
        %1488 = vmatpush1.bf16.xpose.msra.mxu0 0
        %1489 = vmatprep.subr.bf16.mxu0 0
        %1490 = vmatpush1.bf16.xpose.msra.mxu0 0
        %1491 = vmatprep.subr.bf16.mxu0 0
        %1492 = vmatpush1.bf16.xpose.msra.mxu0 0
        %1493 = vmatprep.subr.bf16.mxu0 0
        %1494 = vmatpush1.bf16.xpose.msra.mxu0 0
        %1495 = vmatprep.subr.bf16.mxu0 0
        %1496 = vmatpush1.bf16.xpose.msra.mxu0 0
        %1497 = vmatprep.subr.bf16.mxu0 0
        %1498 = vmatpush1.bf16.xpose.msra.mxu0 0
        %1499 = vmatprep.subr.bf16.mxu0 0
        %1500 = vmatpush1.bf16.xpose.msra.mxu0 0
        %1501 = vmatprep.subr.bf16.mxu0 0
        %1502 = vmatpush1.bf16.xpose.msra.mxu0 0
        %1503 = vmatprep.subr.bf16.mxu0 0
        %1504 = vmatpush1.bf16.xpose.msra.mxu0 0
        %1505 = vmatprep.subr.bf16.mxu0 0
        %1506 = vmatpush1.bf16.xpose.msra.mxu0 0
        %1507 = vmatprep.subr.bf16.mxu0 0
        %1508 = vmatpush1.bf16.xpose.msra.mxu0 0
        %1509 = vmatprep.subr.bf16.mxu0 0
        %1510 = vmatpush1.bf16.xpose.msra.mxu0 0
        %1511 = vmatprep.subr.bf16.mxu0 0
        %1512 = vmatpush1.bf16.xpose.msra.mxu0 0
        %1513 = vmatprep.mubr.bf16.mxu0 0
        %1514 = vmatmul.mubr.bf16.gmra.mrb[0].mxu0 %v1476
        %v1515 = vpop.f32.mrb[0].mxu0
        %v1516 = vadd.f32 %v860, %v1515
        %v1517 = vpop.f32.mrb[0].mxu0
        %v1518 = vpop.f32.mrb[0].mxu0
        %v1519 = vpop.f32.mrb[0].mxu0
        %1520 = vdwg.mxu0
        %v1521 = vsel %vm876, %v1466, -inf
        %1522 = vmax.xlane.f32.xlu0 %v1521
        %v1523 = vpop.xlane.xlu0 %1522
        %v1524 = vsel %vm876, %v1516, -inf
        %1525 = vmax.xlane.f32.xlu0 %v1524
        %v1526 = vpop.xlane.xlu0 %1525
        %v1527 = vsub.f32 %v1466, %v1523
        %v1528 = vsub.f32 %v1516, %v1526
        %v1529 = vmul.f32 %v1527, 1.442695
        %v1530 = vpow.pop %v1529
        %v1531 = vmul.f32 %v1528, 1.442695
        %v1532 = vpow.pop %v1531
        %v1533 = vsel %vm876, %v1530, 0.0
        %1534 = vadd.xlane.f32.xlu0 %v1533
        %v1535 = vpop.xlane.xlu0 %1534
        %v1536 = vsel %vm876, %v1532, 0.0
        %1537 = vadd.xlane.f32.xlu0 %v1536
        %v1538 = vpop.xlane.xlu0 %1537
        %v1539 = vrcp.pop %v1535
        %v1540 = vrcp.pop %v1538
        %v1541 = vmul.f32 %v1530, %v1539
        %v1542 = vmul.f32 %v1532, %v1540
        %v1543 = vpack.c.bf16 %v1541, %v1541
        %v1544 = vpack.c.bf16 %v1542, %v1542
        %1545 = vrot.lane.b32.xlu0 %v873, 48
        %v1546 = vpop.permute.xlu0 %1545
        %v1548 = vsel %vm876, %v1543, 0
        %v1551 = vsel %vm1001, %v1546, 0
        %1553 = vmatprep.subr.bf16.mxu0 0
        %1554 = vmatpush1.bf16.msra.mxu0 %v1551
        %1555 = vmatprep.subr.bf16.mxu0 0
        %1556 = vmatpush1.bf16.msra.mxu0 0
        %1557 = vmatprep.subr.bf16.mxu0 0
        %1558 = vmatpush1.bf16.msra.mxu0 0
        %1559 = vmatprep.subr.bf16.mxu0 0
        %1560 = vmatpush1.bf16.msra.mxu0 0
        %1561 = vmatprep.subr.bf16.mxu0 0
        %1562 = vmatpush1.bf16.msra.mxu0 0
        %1563 = vmatprep.subr.bf16.mxu0 0
        %1564 = vmatpush1.bf16.msra.mxu0 0
        %1565 = vmatprep.subr.bf16.mxu0 0
        %1566 = vmatpush1.bf16.msra.mxu0 0
        %1567 = vmatprep.subr.bf16.mxu0 0
        %1568 = vmatpush1.bf16.msra.mxu0 0
        %1569 = vmatprep.subr.bf16.mxu0 0
        %1570 = vmatpush1.bf16.msra.mxu0 0
        %1571 = vmatprep.subr.bf16.mxu0 0
        %1572 = vmatpush1.bf16.msra.mxu0 0
        %1573 = vmatprep.subr.bf16.mxu0 0
        %1574 = vmatpush1.bf16.msra.mxu0 0
        %1575 = vmatprep.subr.bf16.mxu0 0
        %1576 = vmatpush1.bf16.msra.mxu0 0
        %1577 = vmatprep.subr.bf16.mxu0 0
        %1578 = vmatpush1.bf16.msra.mxu0 0
        %1579 = vmatprep.subr.bf16.mxu0 0
        %1580 = vmatpush1.bf16.msra.mxu0 0
        %1581 = vmatprep.subr.bf16.mxu0 0
        %1582 = vmatpush1.bf16.msra.mxu0 0
        %1583 = vmatprep.subr.bf16.mxu0 0
        %1584 = vmatpush1.bf16.msra.mxu0 0
        %1585 = vmatprep.mubr.bf16.mxu0 0
        %1586 = vmatmul.mubr.bf16.gmra.mrb[0].mxu0 %v1548
        %v1587 = vpop.f32.mrb[0].mxu0
        %v1588 = vadd.f32 0.0, %v1587
        %v1589 = vpop.f32.mrb[0].mxu0
        %v1590 = vpop.f32.mrb[0].mxu0
        %v1591 = vpop.f32.mrb[0].mxu0
        %1592 = vdwg.mxu0
        %1593 = vrot.lane.b32.xlu0 %v923, 48
        %v1594 = vpop.permute.xlu0 %1593
        %v1596 = vsel %vm876, %v1544, 0
        %v1599 = vsel %vm1001, %v1594, 0
        %1601 = vmatprep.subr.bf16.mxu0 0
        %1602 = vmatpush1.bf16.msra.mxu0 %v1599
        %1603 = vmatprep.subr.bf16.mxu0 0
        %1604 = vmatpush1.bf16.msra.mxu0 0
        %1605 = vmatprep.subr.bf16.mxu0 0
        %1606 = vmatpush1.bf16.msra.mxu0 0
        %1607 = vmatprep.subr.bf16.mxu0 0
        %1608 = vmatpush1.bf16.msra.mxu0 0
        %1609 = vmatprep.subr.bf16.mxu0 0
        %1610 = vmatpush1.bf16.msra.mxu0 0
        %1611 = vmatprep.subr.bf16.mxu0 0
        %1612 = vmatpush1.bf16.msra.mxu0 0
        %1613 = vmatprep.subr.bf16.mxu0 0
        %1614 = vmatpush1.bf16.msra.mxu0 0
        %1615 = vmatprep.subr.bf16.mxu0 0
        %1616 = vmatpush1.bf16.msra.mxu0 0
        %1617 = vmatprep.subr.bf16.mxu0 0
        %1618 = vmatpush1.bf16.msra.mxu0 0
        %1619 = vmatprep.subr.bf16.mxu0 0
        %1620 = vmatpush1.bf16.msra.mxu0 0
        %1621 = vmatprep.subr.bf16.mxu0 0
        %1622 = vmatpush1.bf16.msra.mxu0 0
        %1623 = vmatprep.subr.bf16.mxu0 0
        %1624 = vmatpush1.bf16.msra.mxu0 0
        %1625 = vmatprep.subr.bf16.mxu0 0
        %1626 = vmatpush1.bf16.msra.mxu0 0
        %1627 = vmatprep.subr.bf16.mxu0 0
        %1628 = vmatpush1.bf16.msra.mxu0 0
        %1629 = vmatprep.subr.bf16.mxu0 0
        %1630 = vmatpush1.bf16.msra.mxu0 0
        %1631 = vmatprep.subr.bf16.mxu0 0
        %1632 = vmatpush1.bf16.msra.mxu0 0
        %1633 = vmatprep.mubr.bf16.mxu0 0
        %1634 = vmatmul.mubr.bf16.gmra.mrb[0].mxu0 %v1596
        %v1635 = vpop.f32.mrb[0].mxu0
        %v1636 = vadd.f32 0.0, %v1635
        %v1637 = vpop.f32.mrb[0].mxu0
        %v1638 = vpop.f32.mrb[0].mxu0
        %v1639 = vpop.f32.mrb[0].mxu0
        %1640 = vdwg.mxu0
        %v1641 = vpack.c.bf16 %v1588, %v1588
        %v1642 = vpack.c.bf16 %v1636, %v1636
        %v1645 = vunpack.c.l.b16 %v1641
        %v1646 = vunpack.c.l.b16 %v1642
        %v1647 = vpack.c.b16 %v1646, %v1645
        %v1649 = vsel %vm876, %v1647, 0
        %v1652 = vsel %vm1001, %v863, 0
        %1654 = vmatprep.subr.bf16.mxu0 0
        %1655 = vmatpush1.bf16.msra.mxu0 %v1652
        %1656 = vmatprep.subr.bf16.mxu0 0
        %1657 = vmatpush1.bf16.msra.mxu0 0
        %1658 = vmatprep.subr.bf16.mxu0 0
        %1659 = vmatpush1.bf16.msra.mxu0 0
        %1660 = vmatprep.subr.bf16.mxu0 0
        %1661 = vmatpush1.bf16.msra.mxu0 0
        %1662 = vmatprep.subr.bf16.mxu0 0
        %1663 = vmatpush1.bf16.msra.mxu0 0
        %1664 = vmatprep.subr.bf16.mxu0 0
        %1665 = vmatpush1.bf16.msra.mxu0 0
        %1666 = vmatprep.subr.bf16.mxu0 0
        %1667 = vmatpush1.bf16.msra.mxu0 0
        %1668 = vmatprep.subr.bf16.mxu0 0
        %1669 = vmatpush1.bf16.msra.mxu0 0
        %1670 = vmatprep.subr.bf16.mxu0 0
        %1671 = vmatpush1.bf16.msra.mxu0 0
        %1672 = vmatprep.subr.bf16.mxu0 0
        %1673 = vmatpush1.bf16.msra.mxu0 0
        %1674 = vmatprep.subr.bf16.mxu0 0
        %1675 = vmatpush1.bf16.msra.mxu0 0
        %1676 = vmatprep.subr.bf16.mxu0 0
        %1677 = vmatpush1.bf16.msra.mxu0 0
        %1678 = vmatprep.subr.bf16.mxu0 0
        %1679 = vmatpush1.bf16.msra.mxu0 0
        %1680 = vmatprep.subr.bf16.mxu0 0
        %1681 = vmatpush1.bf16.msra.mxu0 0
        %1682 = vmatprep.subr.bf16.mxu0 0
        %1683 = vmatpush1.bf16.msra.mxu0 0
        %1684 = vmatprep.subr.bf16.mxu0 0
        %1685 = vmatpush1.bf16.msra.mxu0 0
        %1686 = vmatprep.mubr.bf16.mxu0 0
        %1687 = vmatmul.mubr.bf16.gmra.mrb[0].mxu0 %v1649
        %v1688 = vpop.f32.mrb[0].mxu0
        %v1689 = vadd.f32 0.0, %v1688
        %v1690 = vpop.f32.mrb[0].mxu0
        %v1691 = vpop.f32.mrb[0].mxu0
        %v1692 = vadd.f32 0.0, %v1691
        %v1693 = vpop.f32.mrb[0].mxu0
        %1694 = vdwg.mxu0
        %v1695 = vadd.f32 %v1415, %v1689
        %v1696 = vadd.f32 %v1418, %v1692
        %1697 = vrot.lane.b32.xlu0 %v868, 104
        %v1698 = vpop.permute.xlu0 %1697
        %1699 = vrot.lane.b32.xlu0 %v873, 72
        %v1700 = vpop.permute.xlu0 %1699
        %v1702 = vsel %vm876, %v1698, 0
        %v1705 = vsel %vm876, %v1700, 0
        %1707 = vmatprep.subr.bf16.mxu0 0
        %1708 = vmatpush1.bf16.xpose.msra.mxu0 %v1705
        %1709 = vmatprep.subr.bf16.mxu0 0
        %1710 = vmatpush1.bf16.xpose.msra.mxu0 0
        %1711 = vmatprep.subr.bf16.mxu0 0
        %1712 = vmatpush1.bf16.xpose.msra.mxu0 0
        %1713 = vmatprep.subr.bf16.mxu0 0
        %1714 = vmatpush1.bf16.xpose.msra.mxu0 0
        %1715 = vmatprep.subr.bf16.mxu0 0
        %1716 = vmatpush1.bf16.xpose.msra.mxu0 0
        %1717 = vmatprep.subr.bf16.mxu0 0
        %1718 = vmatpush1.bf16.xpose.msra.mxu0 0
        %1719 = vmatprep.subr.bf16.mxu0 0
        %1720 = vmatpush1.bf16.xpose.msra.mxu0 0
        %1721 = vmatprep.subr.bf16.mxu0 0
        %1722 = vmatpush1.bf16.xpose.msra.mxu0 0
        %1723 = vmatprep.subr.bf16.mxu0 0
        %1724 = vmatpush1.bf16.xpose.msra.mxu0 0
        %1725 = vmatprep.subr.bf16.mxu0 0
        %1726 = vmatpush1.bf16.xpose.msra.mxu0 0
        %1727 = vmatprep.subr.bf16.mxu0 0
        %1728 = vmatpush1.bf16.xpose.msra.mxu0 0
        %1729 = vmatprep.subr.bf16.mxu0 0
        %1730 = vmatpush1.bf16.xpose.msra.mxu0 0
        %1731 = vmatprep.subr.bf16.mxu0 0
        %1732 = vmatpush1.bf16.xpose.msra.mxu0 0
        %1733 = vmatprep.subr.bf16.mxu0 0
        %1734 = vmatpush1.bf16.xpose.msra.mxu0 0
        %1735 = vmatprep.subr.bf16.mxu0 0
        %1736 = vmatpush1.bf16.xpose.msra.mxu0 0
        %1737 = vmatprep.subr.bf16.mxu0 0
        %1738 = vmatpush1.bf16.xpose.msra.mxu0 0
        %1739 = vmatprep.mubr.bf16.mxu0 0
        %1740 = vmatmul.mubr.bf16.gmra.mrb[0].mxu0 %v1702
        %v1741 = vpop.f32.mrb[0].mxu0
        %v1742 = vadd.f32 %v860, %v1741
        %v1743 = vpop.f32.mrb[0].mxu0
        %v1744 = vpop.f32.mrb[0].mxu0
        %v1745 = vpop.f32.mrb[0].mxu0
        %1746 = vdwg.mxu0
        %1747 = vrot.lane.b32.xlu0 %v869, 104
        %v1748 = vpop.permute.xlu0 %1747
        %1749 = vrot.lane.b32.xlu0 %v923, 72
        %v1750 = vpop.permute.xlu0 %1749
        %v1752 = vsel %vm876, %v1748, 0
        %v1755 = vsel %vm876, %v1750, 0
        %1757 = vmatprep.subr.bf16.mxu0 0
        %1758 = vmatpush1.bf16.xpose.msra.mxu0 %v1755
        %1759 = vmatprep.subr.bf16.mxu0 0
        %1760 = vmatpush1.bf16.xpose.msra.mxu0 0
        %1761 = vmatprep.subr.bf16.mxu0 0
        %1762 = vmatpush1.bf16.xpose.msra.mxu0 0
        %1763 = vmatprep.subr.bf16.mxu0 0
        %1764 = vmatpush1.bf16.xpose.msra.mxu0 0
        %1765 = vmatprep.subr.bf16.mxu0 0
        %1766 = vmatpush1.bf16.xpose.msra.mxu0 0
        %1767 = vmatprep.subr.bf16.mxu0 0
        %1768 = vmatpush1.bf16.xpose.msra.mxu0 0
        %1769 = vmatprep.subr.bf16.mxu0 0
        %1770 = vmatpush1.bf16.xpose.msra.mxu0 0
        %1771 = vmatprep.subr.bf16.mxu0 0
        %1772 = vmatpush1.bf16.xpose.msra.mxu0 0
        %1773 = vmatprep.subr.bf16.mxu0 0
        %1774 = vmatpush1.bf16.xpose.msra.mxu0 0
        %1775 = vmatprep.subr.bf16.mxu0 0
        %1776 = vmatpush1.bf16.xpose.msra.mxu0 0
        %1777 = vmatprep.subr.bf16.mxu0 0
        %1778 = vmatpush1.bf16.xpose.msra.mxu0 0
        %1779 = vmatprep.subr.bf16.mxu0 0
        %1780 = vmatpush1.bf16.xpose.msra.mxu0 0
        %1781 = vmatprep.subr.bf16.mxu0 0
        %1782 = vmatpush1.bf16.xpose.msra.mxu0 0
        %1783 = vmatprep.subr.bf16.mxu0 0
        %1784 = vmatpush1.bf16.xpose.msra.mxu0 0
        %1785 = vmatprep.subr.bf16.mxu0 0
        %1786 = vmatpush1.bf16.xpose.msra.mxu0 0
        %1787 = vmatprep.subr.bf16.mxu0 0
        %1788 = vmatpush1.bf16.xpose.msra.mxu0 0
        %1789 = vmatprep.mubr.bf16.mxu0 0
        %1790 = vmatmul.mubr.bf16.gmra.mrb[0].mxu0 %v1752
        %v1791 = vpop.f32.mrb[0].mxu0
        %v1792 = vadd.f32 %v860, %v1791
        %v1793 = vpop.f32.mrb[0].mxu0
        %v1794 = vpop.f32.mrb[0].mxu0
        %v1795 = vpop.f32.mrb[0].mxu0
        %1796 = vdwg.mxu0
        %v1797 = vsel %vm876, %v1742, -inf
        %1798 = vmax.xlane.f32.xlu0 %v1797
        %v1799 = vpop.xlane.xlu0 %1798
        %v1800 = vsel %vm876, %v1792, -inf
        %1801 = vmax.xlane.f32.xlu0 %v1800
        %v1802 = vpop.xlane.xlu0 %1801
        %v1803 = vsub.f32 %v1742, %v1799
        %v1804 = vsub.f32 %v1792, %v1802
        %v1805 = vmul.f32 %v1803, 1.442695
        %v1806 = vpow.pop %v1805
        %v1807 = vmul.f32 %v1804, 1.442695
        %v1808 = vpow.pop %v1807
        %v1809 = vsel %vm876, %v1806, 0.0
        %1810 = vadd.xlane.f32.xlu0 %v1809
        %v1811 = vpop.xlane.xlu0 %1810
        %v1812 = vsel %vm876, %v1808, 0.0
        %1813 = vadd.xlane.f32.xlu0 %v1812
        %v1814 = vpop.xlane.xlu0 %1813
        %v1815 = vrcp.pop %v1811
        %v1816 = vrcp.pop %v1814
        %v1817 = vmul.f32 %v1806, %v1815
        %v1818 = vmul.f32 %v1808, %v1816
        %v1819 = vpack.c.bf16 %v1817, %v1817
        %v1820 = vpack.c.bf16 %v1818, %v1818
        %1821 = vrot.lane.b32.xlu0 %v873, 40
        %v1822 = vpop.permute.xlu0 %1821
        %v1824 = vsel %vm876, %v1819, 0
        %v1827 = vsel %vm1001, %v1822, 0
        %1829 = vmatprep.subr.bf16.mxu0 0
        %1830 = vmatpush1.bf16.msra.mxu0 %v1827
        %1831 = vmatprep.subr.bf16.mxu0 0
        %1832 = vmatpush1.bf16.msra.mxu0 0
        %1833 = vmatprep.subr.bf16.mxu0 0
        %1834 = vmatpush1.bf16.msra.mxu0 0
        %1835 = vmatprep.subr.bf16.mxu0 0
        %1836 = vmatpush1.bf16.msra.mxu0 0
        %1837 = vmatprep.subr.bf16.mxu0 0
        %1838 = vmatpush1.bf16.msra.mxu0 0
        %1839 = vmatprep.subr.bf16.mxu0 0
        %1840 = vmatpush1.bf16.msra.mxu0 0
        %1841 = vmatprep.subr.bf16.mxu0 0
        %1842 = vmatpush1.bf16.msra.mxu0 0
        %1843 = vmatprep.subr.bf16.mxu0 0
        %1844 = vmatpush1.bf16.msra.mxu0 0
        %1845 = vmatprep.subr.bf16.mxu0 0
        %1846 = vmatpush1.bf16.msra.mxu0 0
        %1847 = vmatprep.subr.bf16.mxu0 0
        %1848 = vmatpush1.bf16.msra.mxu0 0
        %1849 = vmatprep.subr.bf16.mxu0 0
        %1850 = vmatpush1.bf16.msra.mxu0 0
        %1851 = vmatprep.subr.bf16.mxu0 0
        %1852 = vmatpush1.bf16.msra.mxu0 0
        %1853 = vmatprep.subr.bf16.mxu0 0
        %1854 = vmatpush1.bf16.msra.mxu0 0
        %1855 = vmatprep.subr.bf16.mxu0 0
        %1856 = vmatpush1.bf16.msra.mxu0 0
        %1857 = vmatprep.subr.bf16.mxu0 0
        %1858 = vmatpush1.bf16.msra.mxu0 0
        %1859 = vmatprep.subr.bf16.mxu0 0
        %1860 = vmatpush1.bf16.msra.mxu0 0
        %1861 = vmatprep.mubr.bf16.mxu0 0
        %1862 = vmatmul.mubr.bf16.gmra.mrb[0].mxu0 %v1824
        %v1863 = vpop.f32.mrb[0].mxu0
        %v1864 = vadd.f32 0.0, %v1863
        %v1865 = vpop.f32.mrb[0].mxu0
        %v1866 = vpop.f32.mrb[0].mxu0
        %v1867 = vpop.f32.mrb[0].mxu0
        %1868 = vdwg.mxu0
        %1869 = vrot.lane.b32.xlu0 %v923, 40
        %v1870 = vpop.permute.xlu0 %1869
        %v1872 = vsel %vm876, %v1820, 0
        %v1875 = vsel %vm1001, %v1870, 0
        %1877 = vmatprep.subr.bf16.mxu0 0
        %1878 = vmatpush1.bf16.msra.mxu0 %v1875
        %1879 = vmatprep.subr.bf16.mxu0 0
        %1880 = vmatpush1.bf16.msra.mxu0 0
        %1881 = vmatprep.subr.bf16.mxu0 0
        %1882 = vmatpush1.bf16.msra.mxu0 0
        %1883 = vmatprep.subr.bf16.mxu0 0
        %1884 = vmatpush1.bf16.msra.mxu0 0
        %1885 = vmatprep.subr.bf16.mxu0 0
        %1886 = vmatpush1.bf16.msra.mxu0 0
        %1887 = vmatprep.subr.bf16.mxu0 0
        %1888 = vmatpush1.bf16.msra.mxu0 0
        %1889 = vmatprep.subr.bf16.mxu0 0
        %1890 = vmatpush1.bf16.msra.mxu0 0
        %1891 = vmatprep.subr.bf16.mxu0 0
        %1892 = vmatpush1.bf16.msra.mxu0 0
        %1893 = vmatprep.subr.bf16.mxu0 0
        %1894 = vmatpush1.bf16.msra.mxu0 0
        %1895 = vmatprep.subr.bf16.mxu0 0
        %1896 = vmatpush1.bf16.msra.mxu0 0
        %1897 = vmatprep.subr.bf16.mxu0 0
        %1898 = vmatpush1.bf16.msra.mxu0 0
        %1899 = vmatprep.subr.bf16.mxu0 0
        %1900 = vmatpush1.bf16.msra.mxu0 0
        %1901 = vmatprep.subr.bf16.mxu0 0
        %1902 = vmatpush1.bf16.msra.mxu0 0
        %1903 = vmatprep.subr.bf16.mxu0 0
        %1904 = vmatpush1.bf16.msra.mxu0 0
        %1905 = vmatprep.subr.bf16.mxu0 0
        %1906 = vmatpush1.bf16.msra.mxu0 0
        %1907 = vmatprep.subr.bf16.mxu0 0
        %1908 = vmatpush1.bf16.msra.mxu0 0
        %1909 = vmatprep.mubr.bf16.mxu0 0
        %1910 = vmatmul.mubr.bf16.gmra.mrb[0].mxu0 %v1872
        %v1911 = vpop.f32.mrb[0].mxu0
        %v1912 = vadd.f32 0.0, %v1911
        %v1913 = vpop.f32.mrb[0].mxu0
        %v1914 = vpop.f32.mrb[0].mxu0
        %v1915 = vpop.f32.mrb[0].mxu0
        %1916 = vdwg.mxu0
        %v1917 = vpack.c.bf16 %v1864, %v1864
        %v1918 = vpack.c.bf16 %v1912, %v1912
        %v1921 = vunpack.c.l.b16 %v1917
        %v1922 = vunpack.c.l.b16 %v1918
        %v1923 = vpack.c.b16 %v1922, %v1921
        %v1925 = vsel %vm876, %v1923, 0
        %v1928 = vsel %vm1001, %v864, 0
        %1930 = vmatprep.subr.bf16.mxu0 0
        %1931 = vmatpush1.bf16.msra.mxu0 %v1928
        %1932 = vmatprep.subr.bf16.mxu0 0
        %1933 = vmatpush1.bf16.msra.mxu0 0
        %1934 = vmatprep.subr.bf16.mxu0 0
        %1935 = vmatpush1.bf16.msra.mxu0 0
        %1936 = vmatprep.subr.bf16.mxu0 0
        %1937 = vmatpush1.bf16.msra.mxu0 0
        %1938 = vmatprep.subr.bf16.mxu0 0
        %1939 = vmatpush1.bf16.msra.mxu0 0
        %1940 = vmatprep.subr.bf16.mxu0 0
        %1941 = vmatpush1.bf16.msra.mxu0 0
        %1942 = vmatprep.subr.bf16.mxu0 0
        %1943 = vmatpush1.bf16.msra.mxu0 0
        %1944 = vmatprep.subr.bf16.mxu0 0
        %1945 = vmatpush1.bf16.msra.mxu0 0
        %1946 = vmatprep.subr.bf16.mxu0 0
        %1947 = vmatpush1.bf16.msra.mxu0 0
        %1948 = vmatprep.subr.bf16.mxu0 0
        %1949 = vmatpush1.bf16.msra.mxu0 0
        %1950 = vmatprep.subr.bf16.mxu0 0
        %1951 = vmatpush1.bf16.msra.mxu0 0
        %1952 = vmatprep.subr.bf16.mxu0 0
        %1953 = vmatpush1.bf16.msra.mxu0 0
        %1954 = vmatprep.subr.bf16.mxu0 0
        %1955 = vmatpush1.bf16.msra.mxu0 0
        %1956 = vmatprep.subr.bf16.mxu0 0
        %1957 = vmatpush1.bf16.msra.mxu0 0
        %1958 = vmatprep.subr.bf16.mxu0 0
        %1959 = vmatpush1.bf16.msra.mxu0 0
        %1960 = vmatprep.subr.bf16.mxu0 0
        %1961 = vmatpush1.bf16.msra.mxu0 0
        %1962 = vmatprep.mubr.bf16.mxu0 0
        %1963 = vmatmul.mubr.bf16.gmra.mrb[0].mxu0 %v1925
        %v1964 = vpop.f32.mrb[0].mxu0
        %v1965 = vadd.f32 0.0, %v1964
        %v1966 = vpop.f32.mrb[0].mxu0
        %v1967 = vpop.f32.mrb[0].mxu0
        %v1968 = vadd.f32 0.0, %v1967
        %v1969 = vpop.f32.mrb[0].mxu0
        %1970 = vdwg.mxu0
        %v1971 = vadd.f32 %v1695, %v1965
        %v1972 = vadd.f32 %v1696, %v1968
        %v1973 = vadd.f32 %v740, %v1971
        %v1974 = vadd.f32 %v741, %v1972
        %v1975 = vld [vmem:[%s665] sm:$0x1]
        %v1977 = vlaneseq
        %v1978 = vshrl.u32 %v1977, 7
        %v1979 = vsub.s32 0, %v1978
        %v1980 = vrot.slane %v1975, %v1979
        %v1982 = vadd.f32 %v1973, %v1980
        %v1983 = vadd.f32 %v1974, %v1980
        %v1984 = vld [vmem:[%s668] sm:$0x1]
        %v1985 = vld [vmem:[%s671] sm:$0x1]
        %v1986 = vsel %vm744, %v1982, 0.0
        %1987 = vadd.xlane.f32.xlu0 %v1986
        %v1988 = vpop.xlane.xlu0 %1987
        %v1989 = vsel %vm744, %v1983, 0.0
        %1990 = vadd.xlane.f32.xlu0 %v1989
        %v1991 = vpop.xlane.xlu0 %1990
        %v1992 = vmul.f32 %v1988, %v751
        %v1993 = vmul.f32 %v1991, %v751
        %v1994 = vsub.f32 %v1982, %v1992
        %v1995 = vsub.f32 %v1983, %v1993
        %v1996 = vmul.f32 %v1994, %v1994
        %v1997 = vmul.f32 %v1995, %v1995
        %v1998 = vsel %vm744, %v1996, 0.0
        %1999 = vadd.xlane.f32.xlu0 %v1998
        %v2000 = vpop.xlane.xlu0 %1999
        %v2001 = vsel %vm744, %v1997, 0.0
        %2002 = vadd.xlane.f32.xlu0 %v2001
        %v2003 = vpop.xlane.xlu0 %2002
        %v2004 = vmul.f32 %v2000, %v751
        %v2005 = vmul.f32 %v2003, %v751
        %v2006 = vadd.f32 %v2004, 1e-05
        %v2007 = vadd.f32 %v2005, 1e-05
        %v2008 = vrsqrt.pop %v2006
        %v2009 = vrsqrt.pop %v2007
        %v2010 = vmul.f32 %v1994, %v2008
        %v2011 = vmul.f32 %v1995, %v2009
        %v2013 = vlaneseq
        %v2014 = vshrl.u32 %v2013, 7
        %v2015 = vsub.s32 0, %v2014
        %v2016 = vrot.slane %v1984, %v2015
        %v2018 = vmul.f32 %v2010, %v2016
        %v2019 = vmul.f32 %v2011, %v2016
        %v2021 = vlaneseq
        %v2022 = vshrl.u32 %v2021, 7
        %v2023 = vsub.s32 0, %v2022
        %v2024 = vrot.slane %v1985, %v2023
        %v2026 = vadd.f32 %v2018, %v2024
        %v2027 = vadd.f32 %v2019, %v2024
        %v2028 = vpack.c.bf16 %v2027, %v2026
        %v2029 = vld [vmem:[%s676] sm:$0xf]
        %v2030 = vld [vmem:[%s676 + $0x4] sm:$0xf]
        %v2031 = vld [vmem:[%s676 + $0x8] sm:$0xf]
        %v2032 = vld [vmem:[%s676 + $0xc] sm:$0xf]
        %v2033 = vld [vmem:[%s679] sm:$0x1]
        %v2035 = vlaneseq
        %v2036 = vshrl.u32 %v2035, 7
        %v2037 = vsub.s32 0, %v2036
        %v2038 = vrot.slane %v2033, %v2037
        %v2044 = vunpack.c.l.b16 %v2029
        %v2045 = vunpack.c.l.b16 %v2030
        %v2046 = vunpack.c.l.b16 %v2031
        %v2047 = vunpack.c.l.b16 %v2032
        %v2048 = vpack.c.b16 %v2045, %v2044
        %v2049 = vpack.c.b16 %v2047, %v2046
        %v2053 = vsel %vm744, %v2028, 0
        %2055 = vmatprep.subr.bf16.mxu0 0
        %2056 = vmatpush1.bf16.msra.mxu0 %v2048
        %2057 = vmatprep.subr.bf16.mxu0 0
        %2058 = vmatpush1.bf16.msra.mxu0 %v2049
        %2059 = vmatprep.subr.bf16.mxu0 0
        %2060 = vmatpush1.bf16.msra.mxu0 0
        %2061 = vmatprep.subr.bf16.mxu0 0
        %2062 = vmatpush1.bf16.msra.mxu0 0
        %2063 = vmatprep.subr.bf16.mxu0 0
        %2064 = vmatpush1.bf16.msra.mxu0 0
        %2065 = vmatprep.subr.bf16.mxu0 0
        %2066 = vmatpush1.bf16.msra.mxu0 0
        %2067 = vmatprep.subr.bf16.mxu0 0
        %2068 = vmatpush1.bf16.msra.mxu0 0
        %2069 = vmatprep.subr.bf16.mxu0 0
        %2070 = vmatpush1.bf16.msra.mxu0 0
        %2071 = vmatprep.subr.bf16.mxu0 0
        %2072 = vmatpush1.bf16.msra.mxu0 0
        %2073 = vmatprep.subr.bf16.mxu0 0
        %2074 = vmatpush1.bf16.msra.mxu0 0
        %2075 = vmatprep.subr.bf16.mxu0 0
        %2076 = vmatpush1.bf16.msra.mxu0 0
        %2077 = vmatprep.subr.bf16.mxu0 0
        %2078 = vmatpush1.bf16.msra.mxu0 0
        %2079 = vmatprep.subr.bf16.mxu0 0
        %2080 = vmatpush1.bf16.msra.mxu0 0
        %2081 = vmatprep.subr.bf16.mxu0 0
        %2082 = vmatpush1.bf16.msra.mxu0 0
        %2083 = vmatprep.subr.bf16.mxu0 0
        %2084 = vmatpush1.bf16.msra.mxu0 0
        %2085 = vmatprep.subr.bf16.mxu0 0
        %2086 = vmatpush1.bf16.msra.mxu0 0
        %2087 = vmatprep.mubr.bf16.mxu0 0
        %2088 = vmatmul.mubr.bf16.gmra.mrb[0].mxu0 %v2053
        %v2089 = vpop.f32.mrb[0].mxu0
        %v2090 = vadd.f32 %v2038, %v2089
        %v2091 = vpop.f32.mrb[0].mxu0
        %v2092 = vpop.f32.mrb[0].mxu0
        %v2093 = vadd.f32 %v2038, %v2092
        %v2094 = vpop.f32.mrb[0].mxu0
        %2095 = vdwg.mxu0
        %v2096 = vmul.f32 %v2090, 1.702
        %v2097 = vmul.f32 %v2093, 1.702
        %v2098 = vxor.u32 %v2096, 2147483648
        %v2099 = vxor.u32 %v2097, 2147483648
        %v2100 = vmul.f32 %v2098, 1.442695
        %v2101 = vpow.pop %v2100
        %v2102 = vmul.f32 %v2099, 1.442695
        %v2103 = vpow.pop %v2102
        %v2104 = vadd.f32 %v2101, 1.0
        %v2105 = vadd.f32 %v2103, 1.0
        %v2106 = vrcp.pop %v2104
        %v2107 = vmul.f32 1.0, %v2106
        %v2108 = vrcp.pop %v2105
        %v2109 = vmul.f32 1.0, %v2108
        %v2110 = vmul.f32 %v2090, %v2107
        %v2111 = vmul.f32 %v2093, %v2109
        %v2112 = vpack.c.bf16 %v2111, %v2110
        %v2113 = vld [vmem:[%s684] sm:$0xf]
        %v2114 = vld [vmem:[%s684 + $0x4] sm:$0xf]
        %v2115 = vld [vmem:[%s684 + $0x8] sm:$0xf]
        %v2116 = vld [vmem:[%s684 + $0xc] sm:$0xf]
        %v2117 = vld [vmem:[%s684 + $0x10] sm:$0xf]
        %v2118 = vld [vmem:[%s684 + $0x14] sm:$0xf]
        %v2119 = vld [vmem:[%s684 + $0x18] sm:$0xf]
        %v2120 = vld [vmem:[%s684 + $0x1c] sm:$0xf]
        %v2121 = vld [vmem:[%s684 + $0x20] sm:$0xf]
        %v2122 = vld [vmem:[%s684 + $0x24] sm:$0xf]
        %v2123 = vld [vmem:[%s684 + $0x28] sm:$0xf]
        %v2124 = vld [vmem:[%s684 + $0x2c] sm:$0xf]
        %v2125 = vld [vmem:[%s684 + $0x30] sm:$0xf]
        %v2126 = vld [vmem:[%s684 + $0x34] sm:$0xf]
        %v2127 = vld [vmem:[%s684 + $0x38] sm:$0xf]
        %v2128 = vld [vmem:[%s684 + $0x3c] sm:$0xf]
        %v2145 = vunpack.c.l.b16 %v2113
        %v2146 = vunpack.c.l.b16 %v2114
        %v2147 = vunpack.c.l.b16 %v2115
        %v2148 = vunpack.c.l.b16 %v2116
        %v2149 = vunpack.c.l.b16 %v2117
        %v2150 = vunpack.c.l.b16 %v2118
        %v2151 = vunpack.c.l.b16 %v2119
        %v2152 = vunpack.c.l.b16 %v2120
        %v2153 = vunpack.c.l.b16 %v2121
        %v2154 = vunpack.c.l.b16 %v2122
        %v2155 = vunpack.c.l.b16 %v2123
        %v2156 = vunpack.c.l.b16 %v2124
        %v2157 = vunpack.c.l.b16 %v2125
        %v2158 = vunpack.c.l.b16 %v2126
        %v2159 = vunpack.c.l.b16 %v2127
        %v2160 = vunpack.c.l.b16 %v2128
        %v2161 = vpack.c.b16 %v2146, %v2145
        %v2162 = vpack.c.b16 %v2148, %v2147
        %v2163 = vpack.c.b16 %v2150, %v2149
        %v2164 = vpack.c.b16 %v2152, %v2151
        %v2165 = vpack.c.b16 %v2154, %v2153
        %v2166 = vpack.c.b16 %v2156, %v2155
        %v2167 = vpack.c.b16 %v2158, %v2157
        %v2168 = vpack.c.b16 %v2160, %v2159
        %2177 = vmatprep.subr.bf16.mxu0 0
        %2178 = vmatpush1.bf16.msra.mxu0 %v2161
        %2179 = vmatprep.subr.bf16.mxu0 0
        %2180 = vmatpush1.bf16.msra.mxu0 %v2162
        %2181 = vmatprep.subr.bf16.mxu0 0
        %2182 = vmatpush1.bf16.msra.mxu0 %v2163
        %2183 = vmatprep.subr.bf16.mxu0 0
        %2184 = vmatpush1.bf16.msra.mxu0 %v2164
        %2185 = vmatprep.subr.bf16.mxu0 0
        %2186 = vmatpush1.bf16.msra.mxu0 %v2165
        %2187 = vmatprep.subr.bf16.mxu0 0
        %2188 = vmatpush1.bf16.msra.mxu0 %v2166
        %2189 = vmatprep.subr.bf16.mxu0 0
        %2190 = vmatpush1.bf16.msra.mxu0 %v2167
        %2191 = vmatprep.subr.bf16.mxu0 0
        %2192 = vmatpush1.bf16.msra.mxu0 %v2168
        %2193 = vmatprep.subr.bf16.mxu0 0
        %2194 = vmatpush1.bf16.msra.mxu0 0
        %2195 = vmatprep.subr.bf16.mxu0 0
        %2196 = vmatpush1.bf16.msra.mxu0 0
        %2197 = vmatprep.subr.bf16.mxu0 0
        %2198 = vmatpush1.bf16.msra.mxu0 0
        %2199 = vmatprep.subr.bf16.mxu0 0
        %2200 = vmatpush1.bf16.msra.mxu0 0
        %2201 = vmatprep.subr.bf16.mxu0 0
        %2202 = vmatpush1.bf16.msra.mxu0 0
        %2203 = vmatprep.subr.bf16.mxu0 0
        %2204 = vmatpush1.bf16.msra.mxu0 0
        %2205 = vmatprep.subr.bf16.mxu0 0
        %2206 = vmatpush1.bf16.msra.mxu0 0
        %2207 = vmatprep.subr.bf16.mxu0 0
        %2208 = vmatpush1.bf16.msra.mxu0 0
        %2209 = vmatprep.mubr.bf16.mxu0 0
        %2210 = vmatmul.mubr.bf16.gmra.mrb[0].mxu0 %v2112
        %v2211 = vpop.f32.mrb[0].mxu0
        %v2212 = vadd.f32 0.0, %v2211
        %v2213 = vpop.f32.mrb[0].mxu0
        %v2214 = vpop.f32.mrb[0].mxu0
        %v2215 = vadd.f32 0.0, %v2214
        %v2216 = vpop.f32.mrb[0].mxu0
        %2217 = vdwg.mxu0
        %v2218 = vadd.f32 %v1982, %v2212
        %v2219 = vadd.f32 %v1983, %v2215
        %v2220 = vld [vmem:[%s687] sm:$0x1]
        %v2222 = vlaneseq
        %v2223 = vshrl.u32 %v2222, 7
        %v2224 = vsub.s32 0, %v2223
        %v2225 = vrot.slane %v2220, %v2224
        %v2227 = vadd.f32 %v2218, %v2225
        %v2228 = vadd.f32 %v2219, %v2225
        %2229 = vst.msk [vmem:[#allocation2] sm:$0xff] %vm744, %v2227
        %2230 = vst.msk [vmem:[#allocation2 + $0x8] sm:$0xff] %vm744, %v2228
        %p2231 = scmp.eq.s32.totalorder %s36, 1
        // Predicated region
        $region124: #{tex_encoder_forward.1} parent=83 // pred_check
          %p2232 = pneg %p2231
        $region125: #{tex_encoder_forward.1} parent=83 // pred_check_branch
          %2234 = sbr.rel (%p2232) target = $region127
        $region126: #{tex_encoder_forward.1} parent=83 // pred_region
          %s2235 = sld [smem:[#allocation5]]
          %s2236 = scalar_lea.vmem [#allocation2], %s2235
          %v2237 = vld [vmem:[%s2236] sm:$0x1]
          %vm2238 = vcmask 253952
          %2239 = vst.msk [vmem:[#allocation3] sm:$0x1] %vm2238, %v2237
          %s2240 = sld [smem:[#allocation5 + $0x1]]
          %s2241 = sadd.s32 %s2240, 8
          %s2242 = scalar_lea.vmem [#allocation2], %s2241
          %v2243 = vld [vmem:[%s2242] sm:$0x1]
          %2244 = vst.msk [vmem:[#allocation3 + $0x1] sm:$0x1] %vm2238, %v2243
          %v2245 = vld [vmem:[#allocation3] sm:$0x3]
          %v2246 = vld [vmem:[%s15] sm:$0x1]
          %v2247 = vld [vmem:[%s16] sm:$0x1]
          %vm2248 = vcmask 254976
          %v2249 = vsel %vm2248, %v2245, 0.0
          %2250 = vadd.xlane.f32.xlu0 %v2249
          %v2251 = vpop.xlane.xlu0 %2250
          %v2252 = vmul.f32 %v2251, %v751
          %v2253 = vsub.f32 %v2245, %v2252
          %v2254 = vmul.f32 %v2253, %v2253
          %v2255 = vsel %vm2248, %v2254, 0.0
          %2256 = vadd.xlane.f32.xlu0 %v2255
          %v2257 = vpop.xlane.xlu0 %2256
          %v2258 = vmul.f32 %v2257, %v751
          %v2259 = vadd.f32 %v2258, 1e-05
          %v2260 = vrsqrt.pop %v2259
          %v2261 = vmul.f32 %v2253, %v2260
          %v2263 = vlaneseq
          %v2264 = vshrl.u32 %v2263, 7
          %v2265 = vsub.s32 0, %v2264
          %v2266 = vrot.slane %v2246, %v2265
          %v2268 = vmul.f32 %v2261, %v2266
          %v2270 = vlaneseq
          %v2271 = vshrl.u32 %v2270, 7
          %v2272 = vsub.s32 0, %v2271
          %v2273 = vrot.slane %v2247, %v2272
          %v2275 = vadd.f32 %v2268, %v2273
          %v2276 = vld [vmem:[%s17] sm:$0xff]
          %v2277 = vld [vmem:[%s17 + $0x8] sm:$0xff]
          %v2278 = vld [vmem:[%s17 + $0x10] sm:$0xff]
          %v2279 = vld [vmem:[%s17 + $0x18] sm:$0xff]
          %v2281 = vsel %vm744, %v2275, 0
          %2283 = vmatprep.subr.mxu0 0.0
          %2284 = vmatpush1.msra.mxu0 %v2276
          %2285 = vmatprep.subr.mxu0 0.0
          %2286 = vmatpush1.msra.mxu0 %v2277
          %2287 = vmatprep.subr.mxu0 0.0
          %2288 = vmatpush1.msra.mxu0 %v2278
          %2289 = vmatprep.subr.mxu0 0.0
          %2290 = vmatpush1.msra.mxu0 %v2279
          %2291 = vmatprep.subr.mxu0 0.0
          %2292 = vmatpush1.msra.mxu0 0.0
          %2293 = vmatprep.subr.mxu0 0.0
          %2294 = vmatpush1.msra.mxu0 0.0
          %2295 = vmatprep.subr.mxu0 0.0
          %2296 = vmatpush1.msra.mxu0 0.0
          %2297 = vmatprep.subr.mxu0 0.0
          %2298 = vmatpush1.msra.mxu0 0.0
          %2299 = vmatprep.subr.mxu0 0.0
          %2300 = vmatpush1.msra.mxu0 0.0
          %2301 = vmatprep.subr.mxu0 0.0
          %2302 = vmatpush1.msra.mxu0 0.0
          %2303 = vmatprep.subr.mxu0 0.0
          %2304 = vmatpush1.msra.mxu0 0.0
          %2305 = vmatprep.subr.mxu0 0.0
          %2306 = vmatpush1.msra.mxu0 0.0
          %2307 = vmatprep.subr.mxu0 0.0
          %2308 = vmatpush1.msra.mxu0 0.0
          %2309 = vmatprep.subr.mxu0 0.0
          %2310 = vmatpush1.msra.mxu0 0.0
          %2311 = vmatprep.subr.mxu0 0.0
          %2312 = vmatpush1.msra.mxu0 0.0
          %2313 = vmatprep.subr.mxu0 0.0
          %2314 = vmatpush1.msra.mxu0 0.0
          %2315 = vmatprep.subr.mxu0 0.0
          %2316 = vmatpush1.msra.mxu0 0.0
          %2317 = vmatprep.subr.mxu0 0.0
          %2318 = vmatpush1.msra.mxu0 0.0
          %2319 = vmatprep.subr.mxu0 0.0
          %2320 = vmatpush1.msra.mxu0 0.0
          %2321 = vmatprep.subr.mxu0 0.0
          %2322 = vmatpush1.msra.mxu0 0.0
          %2323 = vmatprep.subr.mxu0 0.0
          %2324 = vmatpush1.msra.mxu0 0.0
          %2325 = vmatprep.subr.mxu0 0.0
          %2326 = vmatpush1.msra.mxu0 0.0
          %2327 = vmatprep.subr.mxu0 0.0
          %2328 = vmatpush1.msra.mxu0 0.0
          %2329 = vmatprep.subr.mxu0 0.0
          %2330 = vmatpush1.msra.mxu0 0.0
          %2331 = vmatprep.subr.mxu0 0.0
          %2332 = vmatpush1.msra.mxu0 0.0
          %2333 = vmatprep.subr.mxu0 0.0
          %2334 = vmatpush1.msra.mxu0 0.0
          %2335 = vmatprep.subr.mxu0 0.0
          %2336 = vmatpush1.msra.mxu0 0.0
          %2337 = vmatprep.subr.mxu0 0.0
          %2338 = vmatpush1.msra.mxu0 0.0
          %2339 = vmatprep.subr.mxu0 0.0
          %2340 = vmatpush1.msra.mxu0 0.0
          %2341 = vmatprep.subr.mxu0 0.0
          %2342 = vmatpush1.msra.mxu0 0.0
          %2343 = vmatprep.subr.mxu0 0.0
          %2344 = vmatpush1.msra.mxu0 0.0
          %2345 = vmatprep.subr.mxu0 0.0
          %2346 = vmatpush1.msra.mxu0 0.0
          %2347 = vmatprep.mubr.f32.mxu0 0.0
          %2348 = vmatmul.mubr.f32.gmra.mrb[0].mxu0 %v2281
          %v2349 = vpop.f32.mrb[0].mxu0
          %v2350 = vadd.f32 0.0, %v2349
          %v2351 = vpop.f32.mrb[0].mxu0
          %2352 = vdwg.mxu0
          %2353 = vst.msk [vmem:[#allocation6] sm:$0x3] %vm2248, %v2350
        $region127: #{tex_encoder_forward.1} parent=83 // pred_fallthru
          _
        // Predicated region
        $region128: #{tex_encoder_forward.1} parent=83 // pred_check
          %p2354 = pneg %p445
        $region129: #{tex_encoder_forward.1} parent=83 // pred_check_branch
          %2356 = sbr.rel (%p2354) target = $region131
        $region130: #{tex_encoder_forward.1} parent=83 // pred_region
          %s2358 = ssub.s32 32, 32
          %2359 = vsyncadd [#allocation7], %s2358
          %s2361 = sshll.u32 [#allocation6], 4
          %s2362 = int_to_ptr.vmem [resolvable:$true] %s2361
          %2364 = dma.vmem_to_hbm [thread:$0]  %s2362, 32, %s18, [#allocation7]
        $region131: #{tex_encoder_forward.1} parent=83 // pred_fallthru
          _
        // Predicated region
        $region132: #{tex_encoder_forward.1} parent=83 // pred_check
          %p2365 = pneg %p445
        $region133: #{tex_encoder_forward.1} parent=83 // pred_check_branch
          %2367 = sbr.rel (%p2365) target = $region135
        $region134: #{tex_encoder_forward.1} parent=83 // pred_region
          %2368 = dma.done [#allocation7], 32
        $region135: #{tex_encoder_forward.1} parent=83 // pred_fallthru
          _
      $region84: #{tex_encoder_forward.1} parent=5 // pred_fallthru
        _
      %p2369 = scmp.le.s32.totalorder 2, %s31
      // Predicated region
      $region136: #{tex_encoder_forward.1} parent=5 // pred_check
        %p2370 = pneg %p2369
      $region137: #{tex_encoder_forward.1} parent=5 // pred_check_branch
        %2372 = sbr.rel (%p2370) target = $region139
      $region138: #{tex_encoder_forward.1} parent=5 // pred_region
        %s2373 = ssub.s32 %s31, 2
      $region139: #{tex_encoder_forward.1} parent=5 // pred_fallthru
        _
    $region6: #{tex_encoder_forward.1} parent=1 // loop_footer
      %s35 = sadd.s32 1, %s31
    $region7: #{tex_encoder_forward.1} parent=1 // loop_footer_branch
      %30 = sbr.rel target = $region3
    $region8: #{tex_encoder_forward.1} parent=1 // loop_exit
      _
    %2374 = vsyncpa [#allocation7], 1
    %s2375 = scalar_lea.sflag [#allocation7], 1
    %2376 = vsyncpa %s2375, 1

</llo_original>
